<compile_context>
chip_gen: v7x
topology: tpu7x:2x2x1
jax: 0.10.0
libtpu: 0.0.40
codegen_flags: <defaults>
</compile_context>

<pallas_src>
import functools

import jax
import jax.numpy as jnp
from jax.experimental import pallas as pl
from jax.experimental.pallas import tpu as pltpu


def _round_up(a, b):
    return (a + b - 1) // b * b


def _agg_kernel(adj_ref, xw_ref, b_ref, out_ref, *, relu, tk, resident):
    """out = A @ XW + b (optional ReLU), accumulated directly into out_ref.

    Grid = (row tiles of A, reduction tiles over A's columns / XW's rows).
    out_ref's block index is constant across the reduction axis, so it stays
    VMEM-resident and serves as the f32 accumulator.
    """
    k = pl.program_id(1)

    @pl.when(k == 0)
    def _():
        out_ref[...] = jnp.zeros_like(out_ref)

    if resident:
        # XW is fully VMEM-resident; slice the (tk, c_out) rows for this step.
        row0 = pl.multiple_of(k * tk, tk)
        xw = xw_ref[pl.ds(row0, tk), :]
    else:
        xw = xw_ref[...]

    # bf16 x bf16 MXU matmul with f32 accumulation (no in-register adj cast).
    out_ref[...] += jnp.dot(adj_ref[...], xw, preferred_element_type=jnp.float32)

    @pl.when(k == pl.num_programs(1) - 1)
    def _():
        r = out_ref[...] + b_ref[...]
        if relu:
            r = jnp.maximum(r, 0.0)
        out_ref[...] = r


def _aggregate(adj, xw, bias, *, relu, tm, tk):
    """pallas_call wrapper: adj [n_pad, n_pad] bf16, xw [n_pad, c_out] bf16."""
    n_pad = adj.shape[0]
    c_out = xw.shape[1]
    grid = (n_pad // tm, n_pad // tk)

    # Keep XW fully resident in VMEM when small enough (budgeted so that even
    # double-buffered it stays well inside v7x's 64 MiB VMEM); else stream it
    # one (tk, c_out) reduction tile at a time.
    xw_bytes = n_pad * c_out * 2
    resident = xw_bytes <= 8 * 1024 * 1024
    if resident:
        xw_spec = pl.BlockSpec((n_pad, c_out), lambda i, k: (0, 0))
    else:
        xw_spec = pl.BlockSpec((tk, c_out), lambda i, k: (k, 0))

    kernel = functools.partial(_agg_kernel, relu=relu, tk=tk, resident=resident)

    # Explicit VMEM budget: double-buffered adj tiles + xw + f32 output tile,
    # with 2x slack; capped at 48 MiB so it is valid on v5e/v6e (128 MiB) and
    # v7x (64 MiB) alike.
    needed = (2 * tm * tk * 2
              + 2 * (n_pad * c_out * 2 if resident else tk * c_out * 2)
              + 2 * tm * c_out * 4
              + 2 * c_out * 4)
    vmem_limit = int(min(max(2 * needed, 32 * 1024 * 1024), 48 * 1024 * 1024))

    return pl.pallas_call(
        kernel,
        out_shape=jax.ShapeDtypeStruct((n_pad, c_out), jnp.float32),
        grid_spec=pltpu.PrefetchScalarGridSpec(
            num_scalar_prefetch=0,
            grid=grid,
            in_specs=[
                pl.BlockSpec((tm, tk), lambda i, k: (i, k)),     # adj tile (bf16)
                xw_spec,                                         # XW (bf16)
                pl.BlockSpec((1, c_out), lambda i, k: (0, 0)),   # bias (resident)
            ],
            out_specs=pl.BlockSpec((tm, c_out), lambda i, k: (i, 0)),
        ),
        compiler_params=pltpu.CompilerParams(
            dimension_semantics=("parallel", "arbitrary"),
            vmem_limit_bytes=vmem_limit),
    )(adj, xw, bias)


def gcn_encoder(x, edge_index, params):
    """x: [N, in_channels] f32, edge_index: [2, E] int32 (row 0 = src, row 1 = dst)."""
    n, c_in = x.shape
    w1, b1, w2, b2, w3, b3 = params
    hidden = w1.shape[1]
    out_c = w2.shape[1]

    # --- tiling: pad node count to a multiple of 512, pick large tiles ---
    n_pad = _round_up(n, 512)
    tm = 512                                     # divides n_pad by construction
    tk = 1024 if (n_pad % 1024 == 0 and n_pad >= 2048) else 512

    # --- dense adjacency: exact f32 scatter build, cast once to bf16 ---
    src, dst = edge_index[0], edge_index[1]
    adj = (jnp.zeros((n_pad, n_pad), jnp.float32)
           .at[dst, src].add(1.0)
           .astype(jnp.bfloat16))
    # TODO(synk): for large sparse graphs, densify adj per (tm, tk) tile on the
    # fly from a CSR edge list via PrefetchScalarGridSpec scalar prefetch
    # instead of materializing and streaming the dense N x N matrix.

    x_pad = jnp.zeros((n_pad, c_in), jnp.float32).at[:n, :].set(x)

    # --- pad channel dims to 128 for lane-dense kernel outputs; fuse mu/logvar ---
    # (for real channel counts >= 256 on v6e/v7x, 256-wide output tiles would
    #  fill the 2x256 MXU; irrelevant at the 32/16-channel demo sizes)
    hid_p = _round_up(hidden, 128)
    out2_p = _round_up(2 * out_c, 128)
    w1_p = jnp.zeros((c_in, hid_p), jnp.float32).at[:, :hidden].set(w1)
    b1_p = jnp.zeros((1, hid_p), jnp.float32).at[:, :hidden].set(b1)
    w23 = jnp.concatenate([w2, w3], axis=1)                      # [H, 2*out]
    b23 = jnp.concatenate([b2, b3], axis=1)                      # [1, 2*out]
    w23_p = jnp.zeros((hid_p, out2_p), jnp.float32).at[:hidden, :2 * out_c].set(w23)
    b23_p = jnp.zeros((1, out2_p), jnp.float32).at[:, :2 * out_c].set(b23)

    # --- hoisted feature transforms (tiny XLA matmuls), stored bf16 ---
    xw1 = (x_pad @ w1_p).astype(jnp.bfloat16)                    # [n_pad, hid_p]
    # shared layer: h = relu(A @ (x @ W1) + b1)                  (adj pass #1)
    h = _aggregate(adj, xw1, b1_p, relu=True, tm=tm, tk=tk)      # f32
    hw23 = (h @ w23_p).astype(jnp.bfloat16)                      # [n_pad, out2_p]
    # fused heads: [mu | logvar] = A @ (h @ [W2|W3]) + [b2|b3]   (adj pass #2)
    heads = _aggregate(adj, hw23, b23_p, relu=False, tm=tm, tk=tk)

    mu = heads[:n, :out_c]
    logvar = heads[:n, out_c:2 * out_c]
    return mu, logvar


def init_params(key, in_channels, hidden_channels, out_channels):
    """Glorot-uniform weights, zero biases (matches GCNConv.reset_parameters)."""
    def glorot(k, fan_in, fan_out):
        limit = jnp.sqrt(6.0 / (fan_in + fan_out))
        return jax.random.uniform(k, (fan_in, fan_out), jnp.float32, -limit, limit)

    k1, k2, k3 = jax.random.split(key, 3)
    w1 = glorot(k1, in_channels, hidden_channels)
    b1 = jnp.zeros((1, hidden_channels), jnp.float32)
    w2 = glorot(k2, hidden_channels, out_channels)
    b2 = jnp.zeros((1, out_channels), jnp.float32)
    w3 = glorot(k3, hidden_channels, out_channels)
    b3 = jnp.zeros((1, out_channels), jnp.float32)
    return (w1, b1, w2, b2, w3, b3)


def _reference(x, edge_index, params):
    """Pure f32 reference matching PyG GCNConv(normalize=False) semantics."""
    n = x.shape[0]
    src, dst = edge_index[0], edge_index[1]
    adj = jnp.zeros((n, n), jnp.float32).at[dst, src].add(1.0)
    w1, b1, w2, b2, w3, b3 = params
    h = jnp.maximum(adj @ (x @ w1) + b1, 0.0)
    return adj @ (h @ w2) + b2, adj @ (h @ w3) + b3


if __name__ == "__main__":
    key = jax.random.PRNGKey(0)
    k_x, k_e, k_p = jax.random.split(key, 3)

    num_nodes = 600                      # pads to 1024 -> (2, 2) grid of 512-tiles
    in_channels, hidden_channels, out_channels = 8, 32, 16
    num_edges = 2400

    x = jax.random.normal(k_x, (num_nodes, in_channels), jnp.float32)
    edge_index = jax.random.randint(k_e, (2, num_edges), 0, num_nodes, jnp.int32)
    params = init_params(k_p, in_channels, hidden_channels, out_channels)

    mu, logvar = jax.jit(gcn_encoder)(x, edge_index, params)
    jax.block_until_ready((mu, logvar))

    mu_ref, logvar_ref = _reference(x, edge_index, params)

    def _max_rel(a, b):
        return float(jnp.max(jnp.abs(a - b)) / (jnp.max(jnp.abs(b)) + 1e-6))

    # bf16 feature operands (f32 accumulation) -> expect <~1% scaled error.
    assert _max_rel(mu, mu_ref) < 2e-2, f"mu err {_max_rel(mu, mu_ref)}"
    assert _max_rel(logvar, logvar_ref) < 2e-2, f"logvar err {_max_rel(logvar, logvar_ref)}"

    print("KERNEL_OK")
</pallas_src>

<mosaic_0001>
module attributes {stable_mosaic.version = 11 : i64} {
  func.func private @main(%arg0: i32) attributes {dimension_semantics = [#tpu.dimension_semantics<core_parallel>], iteration_bounds = array<i64: 2>, tpu.core_type = #tpu.core_type<sc_scalar_subcore>, window_params = []} {
    return
  }
}

module attributes {stable_mosaic.version = 11 : i64} {
  func.func private @main(%arg0: i32) attributes {dimension_semantics = [#tpu.dimension_semantics<core_parallel>], iteration_bounds = array<i64: 2>, tpu.core_type = #tpu.core_type<sc_scalar_subcore>, window_params = []} {
    return
  }
}

module attributes {stable_mosaic.version = 11 : i64} {
  func.func @_agg_kernel(%arg0: i32, %arg1: i32, %arg2: memref<512x512xbf16, #tpu.memory_space<vmem>>, %arg3: memref<1024x128xbf16, #tpu.memory_space<vmem>>, %arg4: memref<1x128xf32, #tpu.memory_space<vmem>>, %arg5: memref<512x128xf32, #tpu.memory_space<vmem>>) attributes {dimension_semantics = [#tpu.dimension_semantics<parallel>, #tpu.dimension_semantics<arbitrary>], iteration_bounds = array<i64: 2, 2>, scalar_prefetch = 0 : i64, scratch_operands = 0 : i64, tpu.core_type = #tpu.core_type<tc>, window_params = [{transform_indices = @transform_0, window_bounds = array<i64: 512, 512>}, {pipeline_mode = #tpu.pipeline_mode<synchronous>, transform_indices = @transform_1, window_bounds = array<i64: 1024, 128>}, {pipeline_mode = #tpu.pipeline_mode<synchronous>, transform_indices = @transform_2, window_bounds = array<i64: 1, 128>}, {transform_indices = @transform_3, window_bounds = array<i64: 512, 128>}]} {
    %c0_i32 = arith.constant 0 : i32
    %0 = arith.cmpi eq, %arg1, %c0_i32 : i32
    %1 = arith.extui %0 : i1 to i32
    %c0_i32_0 = arith.constant 0 : i32
    %2 = arith.cmpi ne, %1, %c0_i32_0 : i32
    scf.if %2 {
      %cst_8 = arith.constant 0.000000e+00 : f32
      %15 = vector.broadcast %cst_8 : f32 to vector<512x128xf32>
      %c0_9 = arith.constant 0 : index
      %c0_10 = arith.constant 0 : index
      %16 = vector.load %arg5[%c0_9, %c0_10] : memref<512x128xf32, #tpu.memory_space<vmem>>, vector<512x128xf32>
      tpu.vector_store %arg5[%c0_9, %c0_10], %15 {strides = array<i32>} : memref<512x128xf32, #tpu.memory_space<vmem>>, vector<512x128xf32>,
    } else {
    }
    %c512_i32 = arith.constant 512 : i32
    %3 = arith.muli %arg1, %c512_i32 : i32
    %4 = tpu.assume_multiple %3, 512 : i32
    %5 = arith.index_cast %4 : i32 to index
    %c0 = arith.constant 0 : index
    %6 = vector.load %arg3[%5, %c0] : memref<1024x128xbf16, #tpu.memory_space<vmem>>, vector<512x128xbf16>
    %c0_1 = arith.constant 0 : index
    %c0_2 = arith.constant 0 : index
    %7 = vector.load %arg5[%c0_1, %c0_2] : memref<512x128xf32, #tpu.memory_space<vmem>>, vector<512x128xf32>
    %c0_3 = arith.constant 0 : index
    %c0_4 = arith.constant 0 : index
    %8 = vector.load %arg2[%c0_3, %c0_4] : memref<512x512xbf16, #tpu.memory_space<vmem>>, vector<512x512xbf16>
    %cst = arith.constant dense<0.000000e+00> : vector<512x128xf32>
    %9 = tpu.matmul %8, %6, %cst {dimension_numbers = #tpu.dot_dimension_numbers<[1], [0], [0], [1], [0, 0, 1, 1], [], []>} : vector<512x512xbf16>, vector<512x128xbf16>, vector<512x128xf32> -> vector<512x128xf32>
    %10 = arith.addf %7, %9 : vector<512x128xf32>
    %c0_5 = arith.constant 0 : index
    %c0_6 = arith.constant 0 : index
    %11 = vector.load %arg5[%c0_5, %c0_6] : memref<512x128xf32, #tpu.memory_space<vmem>>, vector<512x128xf32>
    tpu.vector_store %arg5[%c0_5, %c0_6], %10 {strides = array<i32>} : memref<512x128xf32, #tpu.memory_space<vmem>>, vector<512x128xf32>,
    %c1_i32 = arith.constant 1 : i32
    %12 = arith.cmpi eq, %arg1, %c1_i32 : i32
    %13 = arith.extui %12 : i1 to i32
    %c0_i32_7 = arith.constant 0 : i32
    %14 = arith.cmpi ne, %13, %c0_i32_7 : i32
    scf.if %14 {
      %c0_8 = arith.constant 0 : index
      %c0_9 = arith.constant 0 : index
      %15 = vector.load %arg5[%c0_8, %c0_9] : memref<512x128xf32, #tpu.memory_space<vmem>>, vector<512x128xf32>
      %c0_10 = arith.constant 0 : index
      %c0_11 = arith.constant 0 : index
      %16 = vector.load %arg4[%c0_10, %c0_11] : memref<1x128xf32, #tpu.memory_space<vmem>>, vector<1x128xf32>
      %17 = vector.broadcast %16 : vector<1x128xf32> to vector<512x128xf32>
      %18 = arith.addf %15, %17 : vector<512x128xf32>
      %cst_12 = arith.constant 0.000000e+00 : f32
      %19 = vector.broadcast %cst_12 : f32 to vector<512x128xf32>
      %20 = arith.maximumf %18, %19 : vector<512x128xf32>
      %c0_13 = arith.constant 0 : index
      %c0_14 = arith.constant 0 : index
      %21 = vector.load %arg5[%c0_13, %c0_14] : memref<512x128xf32, #tpu.memory_space<vmem>>, vector<512x128xf32>
      tpu.vector_store %arg5[%c0_13, %c0_14], %20 {strides = array<i32>} : memref<512x128xf32, #tpu.memory_space<vmem>>, vector<512x128xf32>,
    } else {
    }
    return
  }
  func.func @transform_0(%arg0: i32, %arg1: i32) -> (i32, i32) {
    %c0_i32 = arith.constant 0 : i32
    return %arg0, %arg1 : i32, i32
  }
  func.func @transform_1(%arg0: i32, %arg1: i32) -> (i32, i32) {
    %c0_i32 = arith.constant 0 : i32
    %c0_i32_0 = arith.constant 0 : i32
    %c0_i32_1 = arith.constant 0 : i32
    return %c0_i32, %c0_i32_0 : i32, i32
  }
  func.func @transform_2(%arg0: i32, %arg1: i32) -> (i32, i32) {
    %c0_i32 = arith.constant 0 : i32
    %c0_i32_0 = arith.constant 0 : i32
    %c0_i32_1 = arith.constant 0 : i32
    return %c0_i32, %c0_i32_0 : i32, i32
  }
  func.func @transform_3(%arg0: i32, %arg1: i32) -> (i32, i32) {
    %c0_i32 = arith.constant 0 : i32
    %c0_i32_0 = arith.constant 0 : i32
    return %arg0, %c0_i32 : i32, i32
  }
}

module attributes {stable_mosaic.version = 11 : i64} {
  func.func @_agg_kernel(%arg0: i32, %arg1: i32, %arg2: memref<512x512xbf16, #tpu.memory_space<vmem>>, %arg3: memref<1024x128xbf16, #tpu.memory_space<vmem>>, %arg4: memref<1x128xf32, #tpu.memory_space<vmem>>, %arg5: memref<512x128xf32, #tpu.memory_space<vmem>>) attributes {dimension_semantics = [#tpu.dimension_semantics<parallel>, #tpu.dimension_semantics<arbitrary>], iteration_bounds = array<i64: 2, 2>, scalar_prefetch = 0 : i64, scratch_operands = 0 : i64, tpu.core_type = #tpu.core_type<tc>, window_params = [{transform_indices = @transform_0, window_bounds = array<i64: 512, 512>}, {pipeline_mode = #tpu.pipeline_mode<synchronous>, transform_indices = @transform_1, window_bounds = array<i64: 1024, 128>}, {pipeline_mode = #tpu.pipeline_mode<synchronous>, transform_indices = @transform_2, window_bounds = array<i64: 1, 128>}, {transform_indices = @transform_3, window_bounds = array<i64: 512, 128>}]} {
    %c0_i32 = arith.constant 0 : i32
    %0 = arith.cmpi eq, %arg1, %c0_i32 : i32
    %1 = arith.extui %0 : i1 to i32
    %c0_i32_0 = arith.constant 0 : i32
    %2 = arith.cmpi ne, %1, %c0_i32_0 : i32
    scf.if %2 {
      %cst_8 = arith.constant 0.000000e+00 : f32
      %15 = vector.broadcast %cst_8 : f32 to vector<512x128xf32>
      %c0_9 = arith.constant 0 : index
      %c0_10 = arith.constant 0 : index
      %16 = vector.load %arg5[%c0_9, %c0_10] : memref<512x128xf32, #tpu.memory_space<vmem>>, vector<512x128xf32>
      tpu.vector_store %arg5[%c0_9, %c0_10], %15 {strides = array<i32>} : memref<512x128xf32, #tpu.memory_space<vmem>>, vector<512x128xf32>,
    } else {
    }
    %c512_i32 = arith.constant 512 : i32
    %3 = arith.muli %arg1, %c512_i32 : i32
    %4 = tpu.assume_multiple %3, 512 : i32
    %5 = arith.index_cast %4 : i32 to index
    %c0 = arith.constant 0 : index
    %6 = vector.load %arg3[%5, %c0] : memref<1024x128xbf16, #tpu.memory_space<vmem>>, vector<512x128xbf16>
    %c0_1 = arith.constant 0 : index
    %c0_2 = arith.constant 0 : index
    %7 = vector.load %arg5[%c0_1, %c0_2] : memref<512x128xf32, #tpu.memory_space<vmem>>, vector<512x128xf32>
    %c0_3 = arith.constant 0 : index
    %c0_4 = arith.constant 0 : index
    %8 = vector.load %arg2[%c0_3, %c0_4] : memref<512x512xbf16, #tpu.memory_space<vmem>>, vector<512x512xbf16>
    %cst = arith.constant dense<0.000000e+00> : vector<512x128xf32>
    %9 = tpu.matmul %8, %6, %cst {dimension_numbers = #tpu.dot_dimension_numbers<[1], [0], [0], [1], [0, 0, 1, 1], [], []>} : vector<512x512xbf16>, vector<512x128xbf16>, vector<512x128xf32> -> vector<512x128xf32>
    %10 = arith.addf %7, %9 : vector<512x128xf32>
    %c0_5 = arith.constant 0 : index
    %c0_6 = arith.constant 0 : index
    %11 = vector.load %arg5[%c0_5, %c0_6] : memref<512x128xf32, #tpu.memory_space<vmem>>, vector<512x128xf32>
    tpu.vector_store %arg5[%c0_5, %c0_6], %10 {strides = array<i32>} : memref<512x128xf32, #tpu.memory_space<vmem>>, vector<512x128xf32>,
    %c1_i32 = arith.constant 1 : i32
    %12 = arith.cmpi eq, %arg1, %c1_i32 : i32
    %13 = arith.extui %12 : i1 to i32
    %c0_i32_7 = arith.constant 0 : i32
    %14 = arith.cmpi ne, %13, %c0_i32_7 : i32
    scf.if %14 {
      %c0_8 = arith.constant 0 : index
      %c0_9 = arith.constant 0 : index
      %15 = vector.load %arg5[%c0_8, %c0_9] : memref<512x128xf32, #tpu.memory_space<vmem>>, vector<512x128xf32>
      %c0_10 = arith.constant 0 : index
      %c0_11 = arith.constant 0 : index
      %16 = vector.load %arg4[%c0_10, %c0_11] : memref<1x128xf32, #tpu.memory_space<vmem>>, vector<1x128xf32>
      %17 = vector.broadcast %16 : vector<1x128xf32> to vector<512x128xf32>
      %18 = arith.addf %15, %17 : vector<512x128xf32>
      %c0_12 = arith.constant 0 : index
      %c0_13 = arith.constant 0 : index
      %19 = vector.load %arg5[%c0_12, %c0_13] : memref<512x128xf32, #tpu.memory_space<vmem>>, vector<512x128xf32>
      tpu.vector_store %arg5[%c0_12, %c0_13], %18 {strides = array<i32>} : memref<512x128xf32, #tpu.memory_space<vmem>>, vector<512x128xf32>,
    } else {
    }
    return
  }
  func.func @transform_0(%arg0: i32, %arg1: i32) -> (i32, i32) {
    %c0_i32 = arith.constant 0 : i32
    return %arg0, %arg1 : i32, i32
  }
  func.func @transform_1(%arg0: i32, %arg1: i32) -> (i32, i32) {
    %c0_i32 = arith.constant 0 : i32
    %c0_i32_0 = arith.constant 0 : i32
    %c0_i32_1 = arith.constant 0 : i32
    return %c0_i32, %c0_i32_0 : i32, i32
  }
  func.func @transform_2(%arg0: i32, %arg1: i32) -> (i32, i32) {
    %c0_i32 = arith.constant 0 : i32
    %c0_i32_0 = arith.constant 0 : i32
    %c0_i32_1 = arith.constant 0 : i32
    return %c0_i32, %c0_i32_0 : i32, i32
  }
  func.func @transform_3(%arg0: i32, %arg1: i32) -> (i32, i32) {
    %c0_i32 = arith.constant 0 : i32
    %c0_i32_0 = arith.constant 0 : i32
    return %arg0, %c0_i32 : i32, i32
  }
}

</mosaic_0001>

<llo_original>
// kernel: gcn_encoder.2
$region0: #{gcn_encoder.2}
  #allocation0 [shape = 'u32[]', space=smem, size = 0x4, offset = 0x4, fixed_abs, tag = 'smem constant byte address 0x4 - core index']
  #allocation1 [shape = 'u32[144,128]{1,0:T(1,128)}', space=vmem, size = 0x12000, scoped, tag = 'internal scratch']
  %s0 = inlined_call_operand.vmem [shape: bf16[1024,1024], index: 0, kind: input, shape index: {}]
  %s1 = inlined_call_operand.vmem [shape: bf16[1024,128], index: 1, kind: input, shape index: {}]
  %s2 = inlined_call_operand.vmem [shape: f32[1,128], index: 2, kind: input, shape index: {}]
  %s3 = inlined_call_operand.vmem [shape: f32[1024,128], index: 3, kind: output, shape index: {}]
  %s4 = sld [smem:[#allocation0]]
  $region76: #{gcn_encoder.2} parent=0
    _
  %s6 = ssub.s32 1, %s4
  %s7 = scalar_select 0, %s6, %s4
  $region1: #{gcn_encoder.2} parent=0
    #allocation2 [shape = 'u8[1048576]{0}', space=vmem, size = 0x100000, scoped, tag = 'input window, operand 0']
    loop: start=0, step=1, limit=6
    $region2: #{gcn_encoder.2} parent=1 // loop_pre_header
      _
    $region3: #{gcn_encoder.2} parent=1 // loop_header
      %s9 = sphi 0, %s13
      %p10 = scmp.ge.s32.totalorder %s9, 6
      %s16 = sphi 0, %s28
      %s17 = sphi 0, %s24
      %s18 = sphi 0, %s16
      %s19 = sphi 0, %s17
      %s20 = sphi 0, %s18
      %s21 = sphi 0, %s19
      %s33 = sphi 0, %s35
      %s36 = sphi 0, %s33
      %s37 = sphi 0, %s36
      %s53 = sphi 0, %s37
      %s57 = sphi 0, %s57
      %s59 = sphi 0, %s57
      %s60 = sphi 0, %s59
      %s74 = sphi 0, %s60
      %s78 = sphi 0, %s78
      %s80 = sphi 0, %s78
      %s81 = sphi 0, %s80
      %s95 = sphi 0, %s81
      %s101 = sphi 0, %s103
      %s104 = sphi 0, %s101
      %s105 = sphi 0, %s104
      %s121 = sphi 0, %s105
    $region4: #{gcn_encoder.2} parent=1 // loop_header_branch
      %12 = sbr.rel (%p10) target = $region8
    $region5: #{gcn_encoder.2} parent=1 // loop_body
      %s14 = ssub.s32 %s9, 1
      %s15 = ssub.s32 %s9, 2
      %s22 = sadd.s32 1, %s17
      %p23 = scmp.ge.s32.totalorder %s22, 2
      %s24 = scalar_select %p23, 0, %s22
      %s25 = sadd.s32 1, %s16
      %s26 = scalar_select %p23, %s25, %s16
      %p27 = scmp.ge.s32.totalorder %s26, 2
      %s28 = scalar_select %p27, 0, %s26
      %s29 = ssub.s32 %s16, %s28
      %s30 = ssub.s32 %s17, %s24
      %s31 = sor.u32 %s29, %s30
      %p32 = scmp.eq.s32.totalorder %s31, 0
      %s34 = sadd.s32 %s33, 1
      %s35 = scalar_select %p32, %s33, %s34
      %p38 = pneg %p32
      %p39 = scmp.eq.s32.totalorder %s9, 3
      %p40 = por %p38, %p39
      %p41 = scmp.ne.s32.totalorder %s33, %s36
      %p42 = scmp.eq.s32.totalorder %s9, 0
      %p43 = por %p41, %p42
      %p44 = scmp.ne.s32.totalorder %s33, %s36
      %p45 = scmp.eq.s32.totalorder %s14, 3
      %p46 = por %p44, %p45
      %p47 = scmp.ne.s32.totalorder %s36, %s37
      %p48 = scmp.eq.s32.totalorder %s14, 0
      %p49 = por %p47, %p48
      %p50 = scmp.ne.s32.totalorder %s36, %s37
      %p51 = scmp.eq.s32.totalorder %s15, 3
      %p52 = por %p50, %p51
      %p54 = scmp.ne.s32.totalorder %s37, %s53
      %p55 = scmp.eq.s32.totalorder %s15, 0
      %p56 = por %p54, %p55
      %s58 = sadd.s32 %s57, 1
      %p61 = scmp.eq.s32.totalorder %s9, 3
      %p62 = scmp.ne.s32.totalorder %s57, %s59
      %p63 = scmp.eq.s32.totalorder %s9, 0
      %p64 = por %p62, %p63
      %p65 = scmp.ne.s32.totalorder %s57, %s59
      %p66 = scmp.eq.s32.totalorder %s14, 3
      %p67 = por %p65, %p66
      %p68 = scmp.ne.s32.totalorder %s59, %s60
      %p69 = scmp.eq.s32.totalorder %s14, 0
      %p70 = por %p68, %p69
      %p71 = scmp.ne.s32.totalorder %s59, %s60
      %p72 = scmp.eq.s32.totalorder %s15, 3
      %p73 = por %p71, %p72
      %p75 = scmp.ne.s32.totalorder %s60, %s74
      %p76 = scmp.eq.s32.totalorder %s15, 0
      %p77 = por %p75, %p76
      %s79 = sadd.s32 %s78, 1
      %p82 = scmp.eq.s32.totalorder %s9, 3
      %p83 = scmp.ne.s32.totalorder %s78, %s80
      %p84 = scmp.eq.s32.totalorder %s9, 0
      %p85 = por %p83, %p84
      %p86 = scmp.ne.s32.totalorder %s78, %s80
      %p87 = scmp.eq.s32.totalorder %s14, 3
      %p88 = por %p86, %p87
      %p89 = scmp.ne.s32.totalorder %s80, %s81
      %p90 = scmp.eq.s32.totalorder %s14, 0
      %p91 = por %p89, %p90
      %p92 = scmp.ne.s32.totalorder %s80, %s81
      %p93 = scmp.eq.s32.totalorder %s15, 3
      %p94 = por %p92, %p93
      %p96 = scmp.ne.s32.totalorder %s81, %s95
      %p97 = scmp.eq.s32.totalorder %s15, 0
      %p98 = por %p96, %p97
      %s99 = ssub.s32 %s16, %s28
      %p100 = scmp.eq.s32.totalorder %s99, 0
      %s102 = sadd.s32 %s101, 1
      %s103 = scalar_select %p100, %s101, %s102
      %p106 = pneg %p100
      %p107 = scmp.eq.s32.totalorder %s9, 3
      %p108 = por %p106, %p107
      %p109 = scmp.ne.s32.totalorder %s101, %s104
      %p110 = scmp.eq.s32.totalorder %s9, 0
      %p111 = por %p109, %p110
      %p112 = scmp.ne.s32.totalorder %s101, %s104
      %p113 = scmp.eq.s32.totalorder %s14, 3
      %p114 = por %p112, %p113
      %p115 = scmp.ne.s32.totalorder %s104, %s105
      %p116 = scmp.eq.s32.totalorder %s14, 0
      %p117 = por %p115, %p116
      %p118 = scmp.ne.s32.totalorder %s104, %s105
      %p119 = scmp.eq.s32.totalorder %s15, 3
      %p120 = por %p118, %p119
      %p122 = scmp.ne.s32.totalorder %s105, %s121
      %p123 = scmp.eq.s32.totalorder %s15, 0
      %p124 = por %p122, %p123
      %p125 = scmp.le.s32.totalorder 1, %s9
      %p126 = scmp.lt.s32.totalorder %s9, 5
      %p127 = pnand %p125, %p126
      %p128 = pneg %p127
      // Predicated region
      $region9: #{gcn_encoder.2} parent=5 // pred_check
        _
      $region10: #{gcn_encoder.2} parent=5 // pred_check_branch
        %130 = sbr.rel (%p127) target = $region12
      $region11: #{gcn_encoder.2} parent=5 // pred_region
        %s131 = ssub.s32 %s9, 1
        // Predicated region
        $region13: #{gcn_encoder.2} parent=11 // pred_check
          %p132 = pneg %p70
        $region14: #{gcn_encoder.2} parent=11 // pred_check_branch
          %134 = sbr.rel (%p132) target = $region16
        $region15: #{gcn_encoder.2} parent=11 // pred_region
          _
        $region16: #{gcn_encoder.2} parent=11 // pred_fallthru
          _
        // Predicated region
        $region17: #{gcn_encoder.2} parent=11 // pred_check
          %p135 = pneg %p91
        $region18: #{gcn_encoder.2} parent=11 // pred_check_branch
          %137 = sbr.rel (%p135) target = $region20
        $region19: #{gcn_encoder.2} parent=11 // pred_region
          _
        $region20: #{gcn_encoder.2} parent=11 // pred_fallthru
          _
      $region12: #{gcn_encoder.2} parent=5 // pred_fallthru
        _
      %p138 = scmp.lt.s32.totalorder %s9, 4
      // Predicated region
      $region21: #{gcn_encoder.2} parent=5 // pred_check
        %p139 = pneg %p138
      $region22: #{gcn_encoder.2} parent=5 // pred_check_branch
        %141 = sbr.rel (%p139) target = $region24
      $region23: #{gcn_encoder.2} parent=5 // pred_region
        // Predicated region
        $region25: #{gcn_encoder.2} parent=23 // pred_check
          %p142 = pneg %p43
        $region26: #{gcn_encoder.2} parent=23 // pred_check_branch
          %144 = sbr.rel (%p142) target = $region28
        $region27: #{gcn_encoder.2} parent=23 // pred_region
          %s145 = sand.u32 %s33, 1
          %s146 = sand.u32 %s33, 1
          %s147 = smul.addr %s146, 1024
          %s148 = scalar_lea.vmem [#allocation2], %s147
          %s149 = smul.u32 64, %s16
          %s150 = smul.u32 4, %s17
          %s151 = smul.addr %s149, 8
          %s152 = sadd.s32 %s150, %s151
          %s153 = smul.addr %s152, 4
          %s154 = scalar_lea.vmem %s0, %s153
          // Predicated region
          $region29: #{gcn_encoder.2} parent=27 // pred_check
            _
          $region30: #{gcn_encoder.2} parent=27 // pred_check_branch
            %156 = sbr.rel (0) target = $region32
          $region31: #{gcn_encoder.2} parent=27 // pred_region
            // Predicated region
            $region33: #{gcn_encoder.2} parent=31 // pred_check
              _
            $region34: #{gcn_encoder.2} parent=31 // pred_check_branch
              %158 = sbr.rel (0) target = $region36
            $region35: #{gcn_encoder.2} parent=31 // pred_region
              loop: start=0, step=1, limit=1
              $region37: #{gcn_encoder.2} parent=35 // loop_pre_header
                _
              $region38: #{gcn_encoder.2} parent=35 // loop_header
                %s160 = sphi 0, %s164
                %p161 = scmp.ge.s32.totalorder %s160, 1
                %s165 = sphi %s154, %s154
                %s166 = sphi %s148, %s148
              $region39: #{gcn_encoder.2} parent=35 // loop_header_branch
                %163 = sbr.rel (%p161) target = $region43
              $region40: #{gcn_encoder.2} parent=35 // loop_body
                %v167 = vld [vmem:[%s165] sm:$0xff]
                %168 = vst [vmem:[%s166] sm:$0xff] %v167
                %v169 = vld [vmem:[%s165 + $0x8] sm:$0xff]
                %170 = vst [vmem:[%s166 + $0x8] sm:$0xff] %v169
                %v171 = vld [vmem:[%s165 + $0x20] sm:$0xff]
                %172 = vst [vmem:[%s166 + $0x10] sm:$0xff] %v171
                %v173 = vld [vmem:[%s165 + $0x28] sm:$0xff]
                %174 = vst [vmem:[%s166 + $0x18] sm:$0xff] %v173
                %v175 = vld [vmem:[%s165 + $0x40] sm:$0xff]
                %176 = vst [vmem:[%s166 + $0x20] sm:$0xff] %v175
                %v177 = vld [vmem:[%s165 + $0x48] sm:$0xff]
                %178 = vst [vmem:[%s166 + $0x28] sm:$0xff] %v177
                %v179 = vld [vmem:[%s165 + $0x60] sm:$0xff]
                %180 = vst [vmem:[%s166 + $0x30] sm:$0xff] %v179
                %v181 = vld [vmem:[%s165 + $0x68] sm:$0xff]
                %182 = vst [vmem:[%s166 + $0x38] sm:$0xff] %v181
                %v183 = vld [vmem:[%s165 + $0x80] sm:$0xff]
                %184 = vst [vmem:[%s166 + $0x40] sm:$0xff] %v183
                %v185 = vld [vmem:[%s165 + $0x88] sm:$0xff]
                %186 = vst [vmem:[%s166 + $0x48] sm:$0xff] %v185
                %v187 = vld [vmem:[%s165 + $0xa0] sm:$0xff]
                %188 = vst [vmem:[%s166 + $0x50] sm:$0xff] %v187
                %v189 = vld [vmem:[%s165 + $0xa8] sm:$0xff]
                %190 = vst [vmem:[%s166 + $0x58] sm:$0xff] %v189
                %v191 = vld [vmem:[%s165 + $0xc0] sm:$0xff]
                %192 = vst [vmem:[%s166 + $0x60] sm:$0xff] %v191
                %v193 = vld [vmem:[%s165 + $0xc8] sm:$0xff]
                %194 = vst [vmem:[%s166 + $0x68] sm:$0xff] %v193
                %v195 = vld [vmem:[%s165 + $0xe0] sm:$0xff]
                %196 = vst [vmem:[%s166 + $0x70] sm:$0xff] %v195
                %v197 = vld [vmem:[%s165 + $0xe8] sm:$0xff]
                %198 = vst [vmem:[%s166 + $0x78] sm:$0xff] %v197
                %v199 = vld [vmem:[%s165 + $0x100] sm:$0xff]
                %200 = vst [vmem:[%s166 + $0x80] sm:$0xff] %v199
                %v201 = vld [vmem:[%s165 + $0x108] sm:$0xff]
                %202 = vst [vmem:[%s166 + $0x88] sm:$0xff] %v201
                %v203 = vld [vmem:[%s165 + $0x120] sm:$0xff]
                %204 = vst [vmem:[%s166 + $0x90] sm:$0xff] %v203
                %v205 = vld [vmem:[%s165 + $0x128] sm:$0xff]
                %206 = vst [vmem:[%s166 + $0x98] sm:$0xff] %v205
                %v207 = vld [vmem:[%s165 + $0x140] sm:$0xff]
                %208 = vst [vmem:[%s166 + $0xa0] sm:$0xff] %v207
                %v209 = vld [vmem:[%s165 + $0x148] sm:$0xff]
                %210 = vst [vmem:[%s166 + $0xa8] sm:$0xff] %v209
                %v211 = vld [vmem:[%s165 + $0x160] sm:$0xff]
                %212 = vst [vmem:[%s166 + $0xb0] sm:$0xff] %v211
                %v213 = vld [vmem:[%s165 + $0x168] sm:$0xff]
                %214 = vst [vmem:[%s166 + $0xb8] sm:$0xff] %v213
                %v215 = vld [vmem:[%s165 + $0x180] sm:$0xff]
                %216 = vst [vmem:[%s166 + $0xc0] sm:$0xff] %v215
                %v217 = vld [vmem:[%s165 + $0x188] sm:$0xff]
                %218 = vst [vmem:[%s166 + $0xc8] sm:$0xff] %v217
                %v219 = vld [vmem:[%s165 + $0x1a0] sm:$0xff]
                %220 = vst [vmem:[%s166 + $0xd0] sm:$0xff] %v219
                %v221 = vld [vmem:[%s165 + $0x1a8] sm:$0xff]
                %222 = vst [vmem:[%s166 + $0xd8] sm:$0xff] %v221
                %v223 = vld [vmem:[%s165 + $0x1c0] sm:$0xff]
                %224 = vst [vmem:[%s166 + $0xe0] sm:$0xff] %v223
                %v225 = vld [vmem:[%s165 + $0x1c8] sm:$0xff]
                %226 = vst [vmem:[%s166 + $0xe8] sm:$0xff] %v225
                %v227 = vld [vmem:[%s165 + $0x1e0] sm:$0xff]
                %228 = vst [vmem:[%s166 + $0xf0] sm:$0xff] %v227
                %v229 = vld [vmem:[%s165 + $0x1e8] sm:$0xff]
                %230 = vst [vmem:[%s166 + $0xf8] sm:$0xff] %v229
                %v231 = vld [vmem:[%s165 + $0x200] sm:$0xff]
                %232 = vst [vmem:[%s166 + $0x100] sm:$0xff] %v231
                %v233 = vld [vmem:[%s165 + $0x208] sm:$0xff]
                %234 = vst [vmem:[%s166 + $0x108] sm:$0xff] %v233
                %v235 = vld [vmem:[%s165 + $0x220] sm:$0xff]
                %236 = vst [vmem:[%s166 + $0x110] sm:$0xff] %v235
                %v237 = vld [vmem:[%s165 + $0x228] sm:$0xff]
                %238 = vst [vmem:[%s166 + $0x118] sm:$0xff] %v237
                %v239 = vld [vmem:[%s165 + $0x240] sm:$0xff]
                %240 = vst [vmem:[%s166 + $0x120] sm:$0xff] %v239
                %v241 = vld [vmem:[%s165 + $0x248] sm:$0xff]
                %242 = vst [vmem:[%s166 + $0x128] sm:$0xff] %v241
                %v243 = vld [vmem:[%s165 + $0x260] sm:$0xff]
                %244 = vst [vmem:[%s166 + $0x130] sm:$0xff] %v243
                %v245 = vld [vmem:[%s165 + $0x268] sm:$0xff]
                %246 = vst [vmem:[%s166 + $0x138] sm:$0xff] %v245
                %v247 = vld [vmem:[%s165 + $0x280] sm:$0xff]
                %248 = vst [vmem:[%s166 + $0x140] sm:$0xff] %v247
                %v249 = vld [vmem:[%s165 + $0x288] sm:$0xff]
                %250 = vst [vmem:[%s166 + $0x148] sm:$0xff] %v249
                %v251 = vld [vmem:[%s165 + $0x2a0] sm:$0xff]
                %252 = vst [vmem:[%s166 + $0x150] sm:$0xff] %v251
                %v253 = vld [vmem:[%s165 + $0x2a8] sm:$0xff]
                %254 = vst [vmem:[%s166 + $0x158] sm:$0xff] %v253
                %v255 = vld [vmem:[%s165 + $0x2c0] sm:$0xff]
                %256 = vst [vmem:[%s166 + $0x160] sm:$0xff] %v255
                %v257 = vld [vmem:[%s165 + $0x2c8] sm:$0xff]
                %258 = vst [vmem:[%s166 + $0x168] sm:$0xff] %v257
                %v259 = vld [vmem:[%s165 + $0x2e0] sm:$0xff]
                %260 = vst [vmem:[%s166 + $0x170] sm:$0xff] %v259
                %v261 = vld [vmem:[%s165 + $0x2e8] sm:$0xff]
                %262 = vst [vmem:[%s166 + $0x178] sm:$0xff] %v261
                %v263 = vld [vmem:[%s165 + $0x300] sm:$0xff]
                %264 = vst [vmem:[%s166 + $0x180] sm:$0xff] %v263
                %v265 = vld [vmem:[%s165 + $0x308] sm:$0xff]
                %266 = vst [vmem:[%s166 + $0x188] sm:$0xff] %v265
                %v267 = vld [vmem:[%s165 + $0x320] sm:$0xff]
                %268 = vst [vmem:[%s166 + $0x190] sm:$0xff] %v267
                %v269 = vld [vmem:[%s165 + $0x328] sm:$0xff]
                %270 = vst [vmem:[%s166 + $0x198] sm:$0xff] %v269
                %v271 = vld [vmem:[%s165 + $0x340] sm:$0xff]
                %272 = vst [vmem:[%s166 + $0x1a0] sm:$0xff] %v271
                %v273 = vld [vmem:[%s165 + $0x348] sm:$0xff]
                %274 = vst [vmem:[%s166 + $0x1a8] sm:$0xff] %v273
                %v275 = vld [vmem:[%s165 + $0x360] sm:$0xff]
                %276 = vst [vmem:[%s166 + $0x1b0] sm:$0xff] %v275
                %v277 = vld [vmem:[%s165 + $0x368] sm:$0xff]
                %278 = vst [vmem:[%s166 + $0x1b8] sm:$0xff] %v277
                %v279 = vld [vmem:[%s165 + $0x380] sm:$0xff]
                %280 = vst [vmem:[%s166 + $0x1c0] sm:$0xff] %v279
                %v281 = vld [vmem:[%s165 + $0x388] sm:$0xff]
                %282 = vst [vmem:[%s166 + $0x1c8] sm:$0xff] %v281
                %v283 = vld [vmem:[%s165 + $0x3a0] sm:$0xff]
                %284 = vst [vmem:[%s166 + $0x1d0] sm:$0xff] %v283
                %v285 = vld [vmem:[%s165 + $0x3a8] sm:$0xff]
                %286 = vst [vmem:[%s166 + $0x1d8] sm:$0xff] %v285
                %v287 = vld [vmem:[%s165 + $0x3c0] sm:$0xff]
                %288 = vst [vmem:[%s166 + $0x1e0] sm:$0xff] %v287
                %v289 = vld [vmem:[%s165 + $0x3c8] sm:$0xff]
                %290 = vst [vmem:[%s166 + $0x1e8] sm:$0xff] %v289
                %v291 = vld [vmem:[%s165 + $0x3e0] sm:$0xff]
                %292 = vst [vmem:[%s166 + $0x1f0] sm:$0xff] %v291
                %v293 = vld [vmem:[%s165 + $0x3e8] sm:$0xff]
                %294 = vst [vmem:[%s166 + $0x1f8] sm:$0xff] %v293
                %v295 = vld [vmem:[%s165 + $0x400] sm:$0xff]
                %296 = vst [vmem:[%s166 + $0x200] sm:$0xff] %v295
                %v297 = vld [vmem:[%s165 + $0x408] sm:$0xff]
                %298 = vst [vmem:[%s166 + $0x208] sm:$0xff] %v297
                %v299 = vld [vmem:[%s165 + $0x420] sm:$0xff]
                %300 = vst [vmem:[%s166 + $0x210] sm:$0xff] %v299
                %v301 = vld [vmem:[%s165 + $0x428] sm:$0xff]
                %302 = vst [vmem:[%s166 + $0x218] sm:$0xff] %v301
                %v303 = vld [vmem:[%s165 + $0x440] sm:$0xff]
                %304 = vst [vmem:[%s166 + $0x220] sm:$0xff] %v303
                %v305 = vld [vmem:[%s165 + $0x448] sm:$0xff]
                %306 = vst [vmem:[%s166 + $0x228] sm:$0xff] %v305
                %v307 = vld [vmem:[%s165 + $0x460] sm:$0xff]
                %308 = vst [vmem:[%s166 + $0x230] sm:$0xff] %v307
                %v309 = vld [vmem:[%s165 + $0x468] sm:$0xff]
                %310 = vst [vmem:[%s166 + $0x238] sm:$0xff] %v309
                %v311 = vld [vmem:[%s165 + $0x480] sm:$0xff]
                %312 = vst [vmem:[%s166 + $0x240] sm:$0xff] %v311
                %v313 = vld [vmem:[%s165 + $0x488] sm:$0xff]
                %314 = vst [vmem:[%s166 + $0x248] sm:$0xff] %v313
                %v315 = vld [vmem:[%s165 + $0x4a0] sm:$0xff]
                %316 = vst [vmem:[%s166 + $0x250] sm:$0xff] %v315
                %v317 = vld [vmem:[%s165 + $0x4a8] sm:$0xff]
                %318 = vst [vmem:[%s166 + $0x258] sm:$0xff] %v317
                %v319 = vld [vmem:[%s165 + $0x4c0] sm:$0xff]
                %320 = vst [vmem:[%s166 + $0x260] sm:$0xff] %v319
                %v321 = vld [vmem:[%s165 + $0x4c8] sm:$0xff]
                %322 = vst [vmem:[%s166 + $0x268] sm:$0xff] %v321
                %v323 = vld [vmem:[%s165 + $0x4e0] sm:$0xff]
                %324 = vst [vmem:[%s166 + $0x270] sm:$0xff] %v323
                %v325 = vld [vmem:[%s165 + $0x4e8] sm:$0xff]
                %326 = vst [vmem:[%s166 + $0x278] sm:$0xff] %v325
                %v327 = vld [vmem:[%s165 + $0x500] sm:$0xff]
                %328 = vst [vmem:[%s166 + $0x280] sm:$0xff] %v327
                %v329 = vld [vmem:[%s165 + $0x508] sm:$0xff]
                %330 = vst [vmem:[%s166 + $0x288] sm:$0xff] %v329
                %v331 = vld [vmem:[%s165 + $0x520] sm:$0xff]
                %332 = vst [vmem:[%s166 + $0x290] sm:$0xff] %v331
                %v333 = vld [vmem:[%s165 + $0x528] sm:$0xff]
                %334 = vst [vmem:[%s166 + $0x298] sm:$0xff] %v333
                %v335 = vld [vmem:[%s165 + $0x540] sm:$0xff]
                %336 = vst [vmem:[%s166 + $0x2a0] sm:$0xff] %v335
                %v337 = vld [vmem:[%s165 + $0x548] sm:$0xff]
                %338 = vst [vmem:[%s166 + $0x2a8] sm:$0xff] %v337
                %v339 = vld [vmem:[%s165 + $0x560] sm:$0xff]
                %340 = vst [vmem:[%s166 + $0x2b0] sm:$0xff] %v339
                %v341 = vld [vmem:[%s165 + $0x568] sm:$0xff]
                %342 = vst [vmem:[%s166 + $0x2b8] sm:$0xff] %v341
                %v343 = vld [vmem:[%s165 + $0x580] sm:$0xff]
                %344 = vst [vmem:[%s166 + $0x2c0] sm:$0xff] %v343
                %v345 = vld [vmem:[%s165 + $0x588] sm:$0xff]
                %346 = vst [vmem:[%s166 + $0x2c8] sm:$0xff] %v345
                %v347 = vld [vmem:[%s165 + $0x5a0] sm:$0xff]
                %348 = vst [vmem:[%s166 + $0x2d0] sm:$0xff] %v347
                %v349 = vld [vmem:[%s165 + $0x5a8] sm:$0xff]
                %350 = vst [vmem:[%s166 + $0x2d8] sm:$0xff] %v349
                %v351 = vld [vmem:[%s165 + $0x5c0] sm:$0xff]
                %352 = vst [vmem:[%s166 + $0x2e0] sm:$0xff] %v351
                %v353 = vld [vmem:[%s165 + $0x5c8] sm:$0xff]
                %354 = vst [vmem:[%s166 + $0x2e8] sm:$0xff] %v353
                %v355 = vld [vmem:[%s165 + $0x5e0] sm:$0xff]
                %356 = vst [vmem:[%s166 + $0x2f0] sm:$0xff] %v355
                %v357 = vld [vmem:[%s165 + $0x5e8] sm:$0xff]
                %358 = vst [vmem:[%s166 + $0x2f8] sm:$0xff] %v357
                %v359 = vld [vmem:[%s165 + $0x600] sm:$0xff]
                %360 = vst [vmem:[%s166 + $0x300] sm:$0xff] %v359
                %v361 = vld [vmem:[%s165 + $0x608] sm:$0xff]
                %362 = vst [vmem:[%s166 + $0x308] sm:$0xff] %v361
                %v363 = vld [vmem:[%s165 + $0x620] sm:$0xff]
                %364 = vst [vmem:[%s166 + $0x310] sm:$0xff] %v363
                %v365 = vld [vmem:[%s165 + $0x628] sm:$0xff]
                %366 = vst [vmem:[%s166 + $0x318] sm:$0xff] %v365
                %v367 = vld [vmem:[%s165 + $0x640] sm:$0xff]
                %368 = vst [vmem:[%s166 + $0x320] sm:$0xff] %v367
                %v369 = vld [vmem:[%s165 + $0x648] sm:$0xff]
                %370 = vst [vmem:[%s166 + $0x328] sm:$0xff] %v369
                %v371 = vld [vmem:[%s165 + $0x660] sm:$0xff]
                %372 = vst [vmem:[%s166 + $0x330] sm:$0xff] %v371
                %v373 = vld [vmem:[%s165 + $0x668] sm:$0xff]
                %374 = vst [vmem:[%s166 + $0x338] sm:$0xff] %v373
                %v375 = vld [vmem:[%s165 + $0x680] sm:$0xff]
                %376 = vst [vmem:[%s166 + $0x340] sm:$0xff] %v375
                %v377 = vld [vmem:[%s165 + $0x688] sm:$0xff]
                %378 = vst [vmem:[%s166 + $0x348] sm:$0xff] %v377
                %v379 = vld [vmem:[%s165 + $0x6a0] sm:$0xff]
                %380 = vst [vmem:[%s166 + $0x350] sm:$0xff] %v379
                %v381 = vld [vmem:[%s165 + $0x6a8] sm:$0xff]
                %382 = vst [vmem:[%s166 + $0x358] sm:$0xff] %v381
                %v383 = vld [vmem:[%s165 + $0x6c0] sm:$0xff]
                %384 = vst [vmem:[%s166 + $0x360] sm:$0xff] %v383
                %v385 = vld [vmem:[%s165 + $0x6c8] sm:$0xff]
                %386 = vst [vmem:[%s166 + $0x368] sm:$0xff] %v385
                %v387 = vld [vmem:[%s165 + $0x6e0] sm:$0xff]
                %388 = vst [vmem:[%s166 + $0x370] sm:$0xff] %v387
                %v389 = vld [vmem:[%s165 + $0x6e8] sm:$0xff]
                %390 = vst [vmem:[%s166 + $0x378] sm:$0xff] %v389
                %v391 = vld [vmem:[%s165 + $0x700] sm:$0xff]
                %392 = vst [vmem:[%s166 + $0x380] sm:$0xff] %v391
                %v393 = vld [vmem:[%s165 + $0x708] sm:$0xff]
                %394 = vst [vmem:[%s166 + $0x388] sm:$0xff] %v393
                %v395 = vld [vmem:[%s165 + $0x720] sm:$0xff]
                %396 = vst [vmem:[%s166 + $0x390] sm:$0xff] %v395
                %v397 = vld [vmem:[%s165 + $0x728] sm:$0xff]
                %398 = vst [vmem:[%s166 + $0x398] sm:$0xff] %v397
                %v399 = vld [vmem:[%s165 + $0x740] sm:$0xff]
                %400 = vst [vmem:[%s166 + $0x3a0] sm:$0xff] %v399
                %v401 = vld [vmem:[%s165 + $0x748] sm:$0xff]
                %402 = vst [vmem:[%s166 + $0x3a8] sm:$0xff] %v401
                %v403 = vld [vmem:[%s165 + $0x760] sm:$0xff]
                %404 = vst [vmem:[%s166 + $0x3b0] sm:$0xff] %v403
                %v405 = vld [vmem:[%s165 + $0x768] sm:$0xff]
                %406 = vst [vmem:[%s166 + $0x3b8] sm:$0xff] %v405
                %v407 = vld [vmem:[%s165 + $0x780] sm:$0xff]
                %408 = vst [vmem:[%s166 + $0x3c0] sm:$0xff] %v407
                %v409 = vld [vmem:[%s165 + $0x788] sm:$0xff]
                %410 = vst [vmem:[%s166 + $0x3c8] sm:$0xff] %v409
                %v411 = vld [vmem:[%s165 + $0x7a0] sm:$0xff]
                %412 = vst [vmem:[%s166 + $0x3d0] sm:$0xff] %v411
                %v413 = vld [vmem:[%s165 + $0x7a8] sm:$0xff]
                %414 = vst [vmem:[%s166 + $0x3d8] sm:$0xff] %v413
                %v415 = vld [vmem:[%s165 + $0x7c0] sm:$0xff]
                %416 = vst [vmem:[%s166 + $0x3e0] sm:$0xff] %v415
                %v417 = vld [vmem:[%s165 + $0x7c8] sm:$0xff]
                %418 = vst [vmem:[%s166 + $0x3e8] sm:$0xff] %v417
                %v419 = vld [vmem:[%s165 + $0x7e0] sm:$0xff]
                %420 = vst [vmem:[%s166 + $0x3f0] sm:$0xff] %v419
                %v421 = vld [vmem:[%s165 + $0x7e8] sm:$0xff]
                %422 = vst [vmem:[%s166 + $0x3f8] sm:$0xff] %v421
              $region41: #{gcn_encoder.2} parent=35 // loop_footer
                %s164 = sadd.s32 1, %s160
              $region42: #{gcn_encoder.2} parent=35 // loop_footer_branch
                %159 = sbr.rel target = $region38
              $region43: #{gcn_encoder.2} parent=35 // loop_exit
                _
            $region36: #{gcn_encoder.2} parent=31 // pred_fallthru
              _
            // Predicated region
            $region44: #{gcn_encoder.2} parent=31 // pred_check
              _
            $region45: #{gcn_encoder.2} parent=31 // pred_check_branch
              %424 = sbr.rel target = $region47
            $region46: #{gcn_encoder.2} parent=31 // pred_region
              _
            $region47: #{gcn_encoder.2} parent=31 // pred_fallthru
              _
          $region32: #{gcn_encoder.2} parent=27 // pred_fallthru
            _
          %425 = vnop
        $region28: #{gcn_encoder.2} parent=23 // pred_fallthru
          _
      $region24: #{gcn_encoder.2} parent=5 // pred_fallthru
        _
      %p426 = scmp.le.s32.totalorder 1, %s9
      %p427 = scmp.lt.s32.totalorder %s9, 5
      %p428 = pnand %p426, %p427
      %p429 = pneg %p428
      // Predicated region
      $region48: #{gcn_encoder.2} parent=5 // pred_check
        _
      $region49: #{gcn_encoder.2} parent=5 // pred_check_branch
        %431 = sbr.rel (%p428) target = $region51
      $region50: #{gcn_encoder.2} parent=5 // pred_region
        %s432 = ssub.s32 %s9, 1
        %s433 = sand.u32 %s36, 1
        %s434 = sand.u32 %s36, 1
        %s435 = smul.addr %s434, 1024
        %s436 = scalar_lea.vmem [#allocation2], %s435
        // Predicated region
        $region52: #{gcn_encoder.2} parent=50 // pred_check
          %p437 = pneg %p49
        $region53: #{gcn_encoder.2} parent=50 // pred_check_branch
          %439 = sbr.rel (%p437) target = $region55
        $region54: #{gcn_encoder.2} parent=50 // pred_region
          _
        $region55: #{gcn_encoder.2} parent=50 // pred_fallthru
          _
        %s440 = sand.u32 %s36, 1
        %s441 = sand.u32 %s36, 1
        %s442 = smul.addr %s441, 1024
        %s443 = scalar_lea.vmem [#allocation2], %s442
        %p444 = pneg %p49
        %p445 = pneg %p46
        %p446 = pneg %p70
        %p447 = pneg %p67
        %p448 = pneg %p91
        %p449 = pneg %p88
        %p450 = pneg %p117
        %p451 = pneg %p114
        %s452 = smul.u32 64, %s18
        %p453 = scmp.lt.s32.totalorder %s452, 127
        %s454 = scalar_select %p453, %s452, 127
        %s455 = smul.addr %s454, 8
        %s456 = scalar_lea.vmem %s3, %s455
        %s457 = smul.u32 64, %s18
        %s458 = smul.u32 4, %s19
        %s459 = smul.u32 64, %s18
        %p460 = scmp.lt.s32.totalorder %s459, 127
        %s461 = scalar_select %p460, %s459, 127
        %s462 = smul.addr %s461, 8
        %s463 = scalar_lea.vmem %s3, %s462
        %s464 = smul.u32 64, %s18
        %p466 = scmp.eq.s32.totalorder %s19, 0
        // Predicated region
        $region56: #{gcn_encoder.2} parent=50 // pred_check
          %p467 = pneg %p466
        $region57: #{gcn_encoder.2} parent=50 // pred_check_branch
          %469 = sbr.rel (%p467) target = $region59
        $region58: #{gcn_encoder.2} parent=50 // pred_region
          %470 = vst [vmem:[%s463] sm:$0xff] 0.0
          %471 = vst [vmem:[%s463 + $0x8] sm:$0xff] 0.0
          %472 = vst [vmem:[%s463 + $0x10] sm:$0xff] 0.0
          %473 = vst [vmem:[%s463 + $0x18] sm:$0xff] 0.0
          %474 = vst [vmem:[%s463 + $0x20] sm:$0xff] 0.0
          %475 = vst [vmem:[%s463 + $0x28] sm:$0xff] 0.0
          %476 = vst [vmem:[%s463 + $0x30] sm:$0xff] 0.0
          %477 = vst [vmem:[%s463 + $0x38] sm:$0xff] 0.0
          %478 = vst [vmem:[%s463 + $0x40] sm:$0xff] 0.0
          %479 = vst [vmem:[%s463 + $0x48] sm:$0xff] 0.0
          %480 = vst [vmem:[%s463 + $0x50] sm:$0xff] 0.0
          %481 = vst [vmem:[%s463 + $0x58] sm:$0xff] 0.0
          %482 = vst [vmem:[%s463 + $0x60] sm:$0xff] 0.0
          %483 = vst [vmem:[%s463 + $0x68] sm:$0xff] 0.0
          %484 = vst [vmem:[%s463 + $0x70] sm:$0xff] 0.0
          %485 = vst [vmem:[%s463 + $0x78] sm:$0xff] 0.0
          %486 = vst [vmem:[%s463 + $0x80] sm:$0xff] 0.0
          %487 = vst [vmem:[%s463 + $0x88] sm:$0xff] 0.0
          %488 = vst [vmem:[%s463 + $0x90] sm:$0xff] 0.0
          %489 = vst [vmem:[%s463 + $0x98] sm:$0xff] 0.0
          %490 = vst [vmem:[%s463 + $0xa0] sm:$0xff] 0.0
          %491 = vst [vmem:[%s463 + $0xa8] sm:$0xff] 0.0
          %492 = vst [vmem:[%s463 + $0xb0] sm:$0xff] 0.0
          %493 = vst [vmem:[%s463 + $0xb8] sm:$0xff] 0.0
          %494 = vst [vmem:[%s463 + $0xc0] sm:$0xff] 0.0
          %495 = vst [vmem:[%s463 + $0xc8] sm:$0xff] 0.0
          %496 = vst [vmem:[%s463 + $0xd0] sm:$0xff] 0.0
          %497 = vst [vmem:[%s463 + $0xd8] sm:$0xff] 0.0
          %498 = vst [vmem:[%s463 + $0xe0] sm:$0xff] 0.0
          %499 = vst [vmem:[%s463 + $0xe8] sm:$0xff] 0.0
          %500 = vst [vmem:[%s463 + $0xf0] sm:$0xff] 0.0
          %501 = vst [vmem:[%s463 + $0xf8] sm:$0xff] 0.0
          %502 = vst [vmem:[%s463 + $0x100] sm:$0xff] 0.0
          %503 = vst [vmem:[%s463 + $0x108] sm:$0xff] 0.0
          %504 = vst [vmem:[%s463 + $0x110] sm:$0xff] 0.0
          %505 = vst [vmem:[%s463 + $0x118] sm:$0xff] 0.0
          %506 = vst [vmem:[%s463 + $0x120] sm:$0xff] 0.0
          %507 = vst [vmem:[%s463 + $0x128] sm:$0xff] 0.0
          %508 = vst [vmem:[%s463 + $0x130] sm:$0xff] 0.0
          %509 = vst [vmem:[%s463 + $0x138] sm:$0xff] 0.0
          %510 = vst [vmem:[%s463 + $0x140] sm:$0xff] 0.0
          %511 = vst [vmem:[%s463 + $0x148] sm:$0xff] 0.0
          %512 = vst [vmem:[%s463 + $0x150] sm:$0xff] 0.0
          %513 = vst [vmem:[%s463 + $0x158] sm:$0xff] 0.0
          %514 = vst [vmem:[%s463 + $0x160] sm:$0xff] 0.0
          %515 = vst [vmem:[%s463 + $0x168] sm:$0xff] 0.0
          %516 = vst [vmem:[%s463 + $0x170] sm:$0xff] 0.0
          %517 = vst [vmem:[%s463 + $0x178] sm:$0xff] 0.0
          %518 = vst [vmem:[%s463 + $0x180] sm:$0xff] 0.0
          %519 = vst [vmem:[%s463 + $0x188] sm:$0xff] 0.0
          %520 = vst [vmem:[%s463 + $0x190] sm:$0xff] 0.0
          %521 = vst [vmem:[%s463 + $0x198] sm:$0xff] 0.0
          %522 = vst [vmem:[%s463 + $0x1a0] sm:$0xff] 0.0
          %523 = vst [vmem:[%s463 + $0x1a8] sm:$0xff] 0.0
          %524 = vst [vmem:[%s463 + $0x1b0] sm:$0xff] 0.0
          %525 = vst [vmem:[%s463 + $0x1b8] sm:$0xff] 0.0
          %526 = vst [vmem:[%s463 + $0x1c0] sm:$0xff] 0.0
          %527 = vst [vmem:[%s463 + $0x1c8] sm:$0xff] 0.0
          %528 = vst [vmem:[%s463 + $0x1d0] sm:$0xff] 0.0
          %529 = vst [vmem:[%s463 + $0x1d8] sm:$0xff] 0.0
          %530 = vst [vmem:[%s463 + $0x1e0] sm:$0xff] 0.0
          %531 = vst [vmem:[%s463 + $0x1e8] sm:$0xff] 0.0
          %532 = vst [vmem:[%s463 + $0x1f0] sm:$0xff] 0.0
          %533 = vst [vmem:[%s463 + $0x1f8] sm:$0xff] 0.0
        $region59: #{gcn_encoder.2} parent=50 // pred_fallthru
          _
        %s534 = smul.u32 %s19, 512
        %s535 = sshra.s32 %s534, 3
        %s536 = sand.u32 %s534, 7
        %s537 = smul.addr %s535, 4
        %s538 = scalar_lea.vmem %s1, %s537
        %v539 = vld [vmem:[%s538] sm:$0xf]
        %v540 = vld [vmem:[%s538 + $0x4] sm:$0xf]
        %v541 = vld [vmem:[%s538 + $0x8] sm:$0xf]
        %v542 = vld [vmem:[%s538 + $0xc] sm:$0xf]
        %v543 = vld [vmem:[%s538 + $0x10] sm:$0xf]
        %v544 = vld [vmem:[%s538 + $0x14] sm:$0xf]
        %v545 = vld [vmem:[%s538 + $0x18] sm:$0xf]
        %v546 = vld [vmem:[%s538 + $0x1c] sm:$0xf]
        %v547 = vld [vmem:[%s538 + $0x20] sm:$0xf]
        %v548 = vld [vmem:[%s538 + $0x24] sm:$0xf]
        %v549 = vld [vmem:[%s538 + $0x28] sm:$0xf]
        %v550 = vld [vmem:[%s538 + $0x2c] sm:$0xf]
        %v551 = vld [vmem:[%s538 + $0x30] sm:$0xf]
        %v552 = vld [vmem:[%s538 + $0x34] sm:$0xf]
        %v553 = vld [vmem:[%s538 + $0x38] sm:$0xf]
        %v554 = vld [vmem:[%s538 + $0x3c] sm:$0xf]
        %v555 = vld [vmem:[%s538 + $0x40] sm:$0xf]
        %v556 = vld [vmem:[%s538 + $0x44] sm:$0xf]
        %v557 = vld [vmem:[%s538 + $0x48] sm:$0xf]
        %v558 = vld [vmem:[%s538 + $0x4c] sm:$0xf]
        %v559 = vld [vmem:[%s538 + $0x50] sm:$0xf]
        %v560 = vld [vmem:[%s538 + $0x54] sm:$0xf]
        %v561 = vld [vmem:[%s538 + $0x58] sm:$0xf]
        %v562 = vld [vmem:[%s538 + $0x5c] sm:$0xf]
        %v563 = vld [vmem:[%s538 + $0x60] sm:$0xf]
        %v564 = vld [vmem:[%s538 + $0x64] sm:$0xf]
        %v565 = vld [vmem:[%s538 + $0x68] sm:$0xf]
        %v566 = vld [vmem:[%s538 + $0x6c] sm:$0xf]
        %v567 = vld [vmem:[%s538 + $0x70] sm:$0xf]
        %v568 = vld [vmem:[%s538 + $0x74] sm:$0xf]
        %v569 = vld [vmem:[%s538 + $0x78] sm:$0xf]
        %v570 = vld [vmem:[%s538 + $0x7c] sm:$0xf]
        %v571 = vld [vmem:[%s538 + $0x80] sm:$0xf]
        %v572 = vld [vmem:[%s538 + $0x84] sm:$0xf]
        %v573 = vld [vmem:[%s538 + $0x88] sm:$0xf]
        %v574 = vld [vmem:[%s538 + $0x8c] sm:$0xf]
        %v575 = vld [vmem:[%s538 + $0x90] sm:$0xf]
        %v576 = vld [vmem:[%s538 + $0x94] sm:$0xf]
        %v577 = vld [vmem:[%s538 + $0x98] sm:$0xf]
        %v578 = vld [vmem:[%s538 + $0x9c] sm:$0xf]
        %v579 = vld [vmem:[%s538 + $0xa0] sm:$0xf]
        %v580 = vld [vmem:[%s538 + $0xa4] sm:$0xf]
        %v581 = vld [vmem:[%s538 + $0xa8] sm:$0xf]
        %v582 = vld [vmem:[%s538 + $0xac] sm:$0xf]
        %v583 = vld [vmem:[%s538 + $0xb0] sm:$0xf]
        %v584 = vld [vmem:[%s538 + $0xb4] sm:$0xf]
        %v585 = vld [vmem:[%s538 + $0xb8] sm:$0xf]
        %v586 = vld [vmem:[%s538 + $0xbc] sm:$0xf]
        %v587 = vld [vmem:[%s538 + $0xc0] sm:$0xf]
        %v588 = vld [vmem:[%s538 + $0xc4] sm:$0xf]
        %v589 = vld [vmem:[%s538 + $0xc8] sm:$0xf]
        %v590 = vld [vmem:[%s538 + $0xcc] sm:$0xf]
        %v591 = vld [vmem:[%s538 + $0xd0] sm:$0xf]
        %v592 = vld [vmem:[%s538 + $0xd4] sm:$0xf]
        %v593 = vld [vmem:[%s538 + $0xd8] sm:$0xf]
        %v594 = vld [vmem:[%s538 + $0xdc] sm:$0xf]
        %v595 = vld [vmem:[%s538 + $0xe0] sm:$0xf]
        %v596 = vld [vmem:[%s538 + $0xe4] sm:$0xf]
        %v597 = vld [vmem:[%s538 + $0xe8] sm:$0xf]
        %v598 = vld [vmem:[%s538 + $0xec] sm:$0xf]
        %v599 = vld [vmem:[%s538 + $0xf0] sm:$0xf]
        %v600 = vld [vmem:[%s538 + $0xf4] sm:$0xf]
        %v601 = vld [vmem:[%s538 + $0xf8] sm:$0xf]
        %v602 = vld [vmem:[%s538 + $0xfc] sm:$0xf]
        %v603 = vld [vmem:[%s463] sm:$0xff]
        %v604 = vld [vmem:[%s463 + $0x8] sm:$0xff]
        %v605 = vld [vmem:[%s463 + $0x10] sm:$0xff]
        %v606 = vld [vmem:[%s463 + $0x18] sm:$0xff]
        %v607 = vld [vmem:[%s463 + $0x20] sm:$0xff]
        %v608 = vld [vmem:[%s463 + $0x28] sm:$0xff]
        %v609 = vld [vmem:[%s463 + $0x30] sm:$0xff]
        %v610 = vld [vmem:[%s463 + $0x38] sm:$0xff]
        %v611 = vld [vmem:[%s463 + $0x40] sm:$0xff]
        %v612 = vld [vmem:[%s463 + $0x48] sm:$0xff]
        %v613 = vld [vmem:[%s463 + $0x50] sm:$0xff]
        %v614 = vld [vmem:[%s463 + $0x58] sm:$0xff]
        %v615 = vld [vmem:[%s463 + $0x60] sm:$0xff]
        %v616 = vld [vmem:[%s463 + $0x68] sm:$0xff]
        %v617 = vld [vmem:[%s463 + $0x70] sm:$0xff]
        %v618 = vld [vmem:[%s463 + $0x78] sm:$0xff]
        %v619 = vld [vmem:[%s463 + $0x80] sm:$0xff]
        %v620 = vld [vmem:[%s463 + $0x88] sm:$0xff]
        %v621 = vld [vmem:[%s463 + $0x90] sm:$0xff]
        %v622 = vld [vmem:[%s463 + $0x98] sm:$0xff]
        %v623 = vld [vmem:[%s463 + $0xa0] sm:$0xff]
        %v624 = vld [vmem:[%s463 + $0xa8] sm:$0xff]
        %v625 = vld [vmem:[%s463 + $0xb0] sm:$0xff]
        %v626 = vld [vmem:[%s463 + $0xb8] sm:$0xff]
        %v627 = vld [vmem:[%s463 + $0xc0] sm:$0xff]
        %v628 = vld [vmem:[%s463 + $0xc8] sm:$0xff]
        %v629 = vld [vmem:[%s463 + $0xd0] sm:$0xff]
        %v630 = vld [vmem:[%s463 + $0xd8] sm:$0xff]
        %v631 = vld [vmem:[%s463 + $0xe0] sm:$0xff]
        %v632 = vld [vmem:[%s463 + $0xe8] sm:$0xff]
        %v633 = vld [vmem:[%s463 + $0xf0] sm:$0xff]
        %v634 = vld [vmem:[%s463 + $0xf8] sm:$0xff]
        %v635 = vld [vmem:[%s463 + $0x100] sm:$0xff]
        %v636 = vld [vmem:[%s463 + $0x108] sm:$0xff]
        %v637 = vld [vmem:[%s463 + $0x110] sm:$0xff]
        %v638 = vld [vmem:[%s463 + $0x118] sm:$0xff]
        %v639 = vld [vmem:[%s463 + $0x120] sm:$0xff]
        %v640 = vld [vmem:[%s463 + $0x128] sm:$0xff]
        %v641 = vld [vmem:[%s463 + $0x130] sm:$0xff]
        %v642 = vld [vmem:[%s463 + $0x138] sm:$0xff]
        %v643 = vld [vmem:[%s463 + $0x140] sm:$0xff]
        %v644 = vld [vmem:[%s463 + $0x148] sm:$0xff]
        %v645 = vld [vmem:[%s463 + $0x150] sm:$0xff]
        %v646 = vld [vmem:[%s463 + $0x158] sm:$0xff]
        %v647 = vld [vmem:[%s463 + $0x160] sm:$0xff]
        %v648 = vld [vmem:[%s463 + $0x168] sm:$0xff]
        %v649 = vld [vmem:[%s463 + $0x170] sm:$0xff]
        %v650 = vld [vmem:[%s463 + $0x178] sm:$0xff]
        %v651 = vld [vmem:[%s463 + $0x180] sm:$0xff]
        %v652 = vld [vmem:[%s463 + $0x188] sm:$0xff]
        %v653 = vld [vmem:[%s463 + $0x190] sm:$0xff]
        %v654 = vld [vmem:[%s463 + $0x198] sm:$0xff]
        %v655 = vld [vmem:[%s463 + $0x1a0] sm:$0xff]
        %v656 = vld [vmem:[%s463 + $0x1a8] sm:$0xff]
        %v657 = vld [vmem:[%s463 + $0x1b0] sm:$0xff]
        %v658 = vld [vmem:[%s463 + $0x1b8] sm:$0xff]
        %v659 = vld [vmem:[%s463 + $0x1c0] sm:$0xff]
        %v660 = vld [vmem:[%s463 + $0x1c8] sm:$0xff]
        %v661 = vld [vmem:[%s463 + $0x1d0] sm:$0xff]
        %v662 = vld [vmem:[%s463 + $0x1d8] sm:$0xff]
        %v663 = vld [vmem:[%s463 + $0x1e0] sm:$0xff]
        %v664 = vld [vmem:[%s463 + $0x1e8] sm:$0xff]
        %v665 = vld [vmem:[%s463 + $0x1f0] sm:$0xff]
        %v666 = vld [vmem:[%s463 + $0x1f8] sm:$0xff]
        %v667 = vld [vmem:[%s436] sm:$0xff]
        %v668 = vld [vmem:[%s436 + $0x8] sm:$0xff]
        %v669 = vld [vmem:[%s436 + $0x10] sm:$0xff]
        %v670 = vld [vmem:[%s436 + $0x18] sm:$0xff]
        %v671 = vld [vmem:[%s436 + $0x20] sm:$0xff]
        %v672 = vld [vmem:[%s436 + $0x28] sm:$0xff]
        %v673 = vld [vmem:[%s436 + $0x30] sm:$0xff]
        %v674 = vld [vmem:[%s436 + $0x38] sm:$0xff]
        %v675 = vld [vmem:[%s436 + $0x40] sm:$0xff]
        %v676 = vld [vmem:[%s436 + $0x48] sm:$0xff]
        %v677 = vld [vmem:[%s436 + $0x50] sm:$0xff]
        %v678 = vld [vmem:[%s436 + $0x58] sm:$0xff]
        %v679 = vld [vmem:[%s436 + $0x60] sm:$0xff]
        %v680 = vld [vmem:[%s436 + $0x68] sm:$0xff]
        %v681 = vld [vmem:[%s436 + $0x70] sm:$0xff]
        %v682 = vld [vmem:[%s436 + $0x78] sm:$0xff]
        %v683 = vld [vmem:[%s436 + $0x80] sm:$0xff]
        %v684 = vld [vmem:[%s436 + $0x88] sm:$0xff]
        %v685 = vld [vmem:[%s436 + $0x90] sm:$0xff]
        %v686 = vld [vmem:[%s436 + $0x98] sm:$0xff]
        %v687 = vld [vmem:[%s436 + $0xa0] sm:$0xff]
        %v688 = vld [vmem:[%s436 + $0xa8] sm:$0xff]
        %v689 = vld [vmem:[%s436 + $0xb0] sm:$0xff]
        %v690 = vld [vmem:[%s436 + $0xb8] sm:$0xff]
        %v691 = vld [vmem:[%s436 + $0xc0] sm:$0xff]
        %v692 = vld [vmem:[%s436 + $0xc8] sm:$0xff]
        %v693 = vld [vmem:[%s436 + $0xd0] sm:$0xff]
        %v694 = vld [vmem:[%s436 + $0xd8] sm:$0xff]
        %v695 = vld [vmem:[%s436 + $0xe0] sm:$0xff]
        %v696 = vld [vmem:[%s436 + $0xe8] sm:$0xff]
        %v697 = vld [vmem:[%s436 + $0xf0] sm:$0xff]
        %v698 = vld [vmem:[%s436 + $0xf8] sm:$0xff]
        %v699 = vld [vmem:[%s436 + $0x100] sm:$0xff]
        %v700 = vld [vmem:[%s436 + $0x108] sm:$0xff]
        %v701 = vld [vmem:[%s436 + $0x110] sm:$0xff]
        %v702 = vld [vmem:[%s436 + $0x118] sm:$0xff]
        %v703 = vld [vmem:[%s436 + $0x120] sm:$0xff]
        %v704 = vld [vmem:[%s436 + $0x128] sm:$0xff]
        %v705 = vld [vmem:[%s436 + $0x130] sm:$0xff]
        %v706 = vld [vmem:[%s436 + $0x138] sm:$0xff]
        %v707 = vld [vmem:[%s436 + $0x140] sm:$0xff]
        %v708 = vld [vmem:[%s436 + $0x148] sm:$0xff]
        %v709 = vld [vmem:[%s436 + $0x150] sm:$0xff]
        %v710 = vld [vmem:[%s436 + $0x158] sm:$0xff]
        %v711 = vld [vmem:[%s436 + $0x160] sm:$0xff]
        %v712 = vld [vmem:[%s436 + $0x168] sm:$0xff]
        %v713 = vld [vmem:[%s436 + $0x170] sm:$0xff]
        %v714 = vld [vmem:[%s436 + $0x178] sm:$0xff]
        %v715 = vld [vmem:[%s436 + $0x180] sm:$0xff]
        %v716 = vld [vmem:[%s436 + $0x188] sm:$0xff]
        %v717 = vld [vmem:[%s436 + $0x190] sm:$0xff]
        %v718 = vld [vmem:[%s436 + $0x198] sm:$0xff]
        %v719 = vld [vmem:[%s436 + $0x1a0] sm:$0xff]
        %v720 = vld [vmem:[%s436 + $0x1a8] sm:$0xff]
        %v721 = vld [vmem:[%s436 + $0x1b0] sm:$0xff]
        %v722 = vld [vmem:[%s436 + $0x1b8] sm:$0xff]
        %v723 = vld [vmem:[%s436 + $0x1c0] sm:$0xff]
        %v724 = vld [vmem:[%s436 + $0x1c8] sm:$0xff]
        %v725 = vld [vmem:[%s436 + $0x1d0] sm:$0xff]
        %v726 = vld [vmem:[%s436 + $0x1d8] sm:$0xff]
        %v727 = vld [vmem:[%s436 + $0x1e0] sm:$0xff]
        %v728 = vld [vmem:[%s436 + $0x1e8] sm:$0xff]
        %v729 = vld [vmem:[%s436 + $0x1f0] sm:$0xff]
        %v730 = vld [vmem:[%s436 + $0x1f8] sm:$0xff]
        %v731 = vld [vmem:[%s436 + $0x200] sm:$0xff]
        %v732 = vld [vmem:[%s436 + $0x208] sm:$0xff]
        %v733 = vld [vmem:[%s436 + $0x210] sm:$0xff]
        %v734 = vld [vmem:[%s436 + $0x218] sm:$0xff]
        %v735 = vld [vmem:[%s436 + $0x220] sm:$0xff]
        %v736 = vld [vmem:[%s436 + $0x228] sm:$0xff]
        %v737 = vld [vmem:[%s436 + $0x230] sm:$0xff]
        %v738 = vld [vmem:[%s436 + $0x238] sm:$0xff]
        %v739 = vld [vmem:[%s436 + $0x240] sm:$0xff]
        %v740 = vld [vmem:[%s436 + $0x248] sm:$0xff]
        %v741 = vld [vmem:[%s436 + $0x250] sm:$0xff]
        %v742 = vld [vmem:[%s436 + $0x258] sm:$0xff]
        %v743 = vld [vmem:[%s436 + $0x260] sm:$0xff]
        %v744 = vld [vmem:[%s436 + $0x268] sm:$0xff]
        %v745 = vld [vmem:[%s436 + $0x270] sm:$0xff]
        %v746 = vld [vmem:[%s436 + $0x278] sm:$0xff]
        %v747 = vld [vmem:[%s436 + $0x280] sm:$0xff]
        %v748 = vld [vmem:[%s436 + $0x288] sm:$0xff]
        %v749 = vld [vmem:[%s436 + $0x290] sm:$0xff]
        %v750 = vld [vmem:[%s436 + $0x298] sm:$0xff]
        %v751 = vld [vmem:[%s436 + $0x2a0] sm:$0xff]
        %v752 = vld [vmem:[%s436 + $0x2a8] sm:$0xff]
        %v753 = vld [vmem:[%s436 + $0x2b0] sm:$0xff]
        %v754 = vld [vmem:[%s436 + $0x2b8] sm:$0xff]
        %v755 = vld [vmem:[%s436 + $0x2c0] sm:$0xff]
        %v756 = vld [vmem:[%s436 + $0x2c8] sm:$0xff]
        %v757 = vld [vmem:[%s436 + $0x2d0] sm:$0xff]
        %v758 = vld [vmem:[%s436 + $0x2d8] sm:$0xff]
        %v759 = vld [vmem:[%s436 + $0x2e0] sm:$0xff]
        %v760 = vld [vmem:[%s436 + $0x2e8] sm:$0xff]
        %v761 = vld [vmem:[%s436 + $0x2f0] sm:$0xff]
        %v762 = vld [vmem:[%s436 + $0x2f8] sm:$0xff]
        %v763 = vld [vmem:[%s436 + $0x300] sm:$0xff]
        %v764 = vld [vmem:[%s436 + $0x308] sm:$0xff]
        %v765 = vld [vmem:[%s436 + $0x310] sm:$0xff]
        %v766 = vld [vmem:[%s436 + $0x318] sm:$0xff]
        %v767 = vld [vmem:[%s436 + $0x320] sm:$0xff]
        %v768 = vld [vmem:[%s436 + $0x328] sm:$0xff]
        %v769 = vld [vmem:[%s436 + $0x330] sm:$0xff]
        %v770 = vld [vmem:[%s436 + $0x338] sm:$0xff]
        %v771 = vld [vmem:[%s436 + $0x340] sm:$0xff]
        %v772 = vld [vmem:[%s436 + $0x348] sm:$0xff]
        %v773 = vld [vmem:[%s436 + $0x350] sm:$0xff]
        %v774 = vld [vmem:[%s436 + $0x358] sm:$0xff]
        %v775 = vld [vmem:[%s436 + $0x360] sm:$0xff]
        %v776 = vld [vmem:[%s436 + $0x368] sm:$0xff]
        %v777 = vld [vmem:[%s436 + $0x370] sm:$0xff]
        %v778 = vld [vmem:[%s436 + $0x378] sm:$0xff]
        %v779 = vld [vmem:[%s436 + $0x380] sm:$0xff]
        %v780 = vld [vmem:[%s436 + $0x388] sm:$0xff]
        %v781 = vld [vmem:[%s436 + $0x390] sm:$0xff]
        %v782 = vld [vmem:[%s436 + $0x398] sm:$0xff]
        %v783 = vld [vmem:[%s436 + $0x3a0] sm:$0xff]
        %v784 = vld [vmem:[%s436 + $0x3a8] sm:$0xff]
        %v785 = vld [vmem:[%s436 + $0x3b0] sm:$0xff]
        %v786 = vld [vmem:[%s436 + $0x3b8] sm:$0xff]
        %v787 = vld [vmem:[%s436 + $0x3c0] sm:$0xff]
        %v788 = vld [vmem:[%s436 + $0x3c8] sm:$0xff]
        %v789 = vld [vmem:[%s436 + $0x3d0] sm:$0xff]
        %v790 = vld [vmem:[%s436 + $0x3d8] sm:$0xff]
        %v791 = vld [vmem:[%s436 + $0x3e0] sm:$0xff]
        %v792 = vld [vmem:[%s436 + $0x3e8] sm:$0xff]
        %v793 = vld [vmem:[%s436 + $0x3f0] sm:$0xff]
        %v794 = vld [vmem:[%s436 + $0x3f8] sm:$0xff]
        %v923 = vunpack.c.l.b16 %v667
        %v924 = vunpack.c.h.b16 %v667
        %v925 = vunpack.c.l.b16 %v668
        %v926 = vunpack.c.h.b16 %v668
        %v927 = vunpack.c.l.b16 %v669
        %v928 = vunpack.c.h.b16 %v669
        %v929 = vunpack.c.l.b16 %v670
        %v930 = vunpack.c.h.b16 %v670
        %v931 = vunpack.c.l.b16 %v671
        %v932 = vunpack.c.h.b16 %v671
        %v933 = vunpack.c.l.b16 %v672
        %v934 = vunpack.c.h.b16 %v672
        %v935 = vunpack.c.l.b16 %v673
        %v936 = vunpack.c.h.b16 %v673
        %v937 = vunpack.c.l.b16 %v674
        %v938 = vunpack.c.h.b16 %v674
        %v939 = vunpack.c.l.b16 %v675
        %v940 = vunpack.c.h.b16 %v675
        %v941 = vunpack.c.l.b16 %v676
        %v942 = vunpack.c.h.b16 %v676
        %v943 = vunpack.c.l.b16 %v677
        %v944 = vunpack.c.h.b16 %v677
        %v945 = vunpack.c.l.b16 %v678
        %v946 = vunpack.c.h.b16 %v678
        %v947 = vunpack.c.l.b16 %v679
        %v948 = vunpack.c.h.b16 %v679
        %v949 = vunpack.c.l.b16 %v680
        %v950 = vunpack.c.h.b16 %v680
        %v951 = vunpack.c.l.b16 %v681
        %v952 = vunpack.c.h.b16 %v681
        %v953 = vunpack.c.l.b16 %v682
        %v954 = vunpack.c.h.b16 %v682
        %v955 = vunpack.c.l.b16 %v683
        %v956 = vunpack.c.h.b16 %v683
        %v957 = vunpack.c.l.b16 %v684
        %v958 = vunpack.c.h.b16 %v684
        %v959 = vunpack.c.l.b16 %v685
        %v960 = vunpack.c.h.b16 %v685
        %v961 = vunpack.c.l.b16 %v686
        %v962 = vunpack.c.h.b16 %v686
        %v963 = vunpack.c.l.b16 %v687
        %v964 = vunpack.c.h.b16 %v687
        %v965 = vunpack.c.l.b16 %v688
        %v966 = vunpack.c.h.b16 %v688
        %v967 = vunpack.c.l.b16 %v689
        %v968 = vunpack.c.h.b16 %v689
        %v969 = vunpack.c.l.b16 %v690
        %v970 = vunpack.c.h.b16 %v690
        %v971 = vunpack.c.l.b16 %v691
        %v972 = vunpack.c.h.b16 %v691
        %v973 = vunpack.c.l.b16 %v692
        %v974 = vunpack.c.h.b16 %v692
        %v975 = vunpack.c.l.b16 %v693
        %v976 = vunpack.c.h.b16 %v693
        %v977 = vunpack.c.l.b16 %v694
        %v978 = vunpack.c.h.b16 %v694
        %v979 = vunpack.c.l.b16 %v695
        %v980 = vunpack.c.h.b16 %v695
        %v981 = vunpack.c.l.b16 %v696
        %v982 = vunpack.c.h.b16 %v696
        %v983 = vunpack.c.l.b16 %v697
        %v984 = vunpack.c.h.b16 %v697
        %v985 = vunpack.c.l.b16 %v698
        %v986 = vunpack.c.h.b16 %v698
        %v987 = vunpack.c.l.b16 %v699
        %v988 = vunpack.c.h.b16 %v699
        %v989 = vunpack.c.l.b16 %v700
        %v990 = vunpack.c.h.b16 %v700
        %v991 = vunpack.c.l.b16 %v701
        %v992 = vunpack.c.h.b16 %v701
        %v993 = vunpack.c.l.b16 %v702
        %v994 = vunpack.c.h.b16 %v702
        %v995 = vunpack.c.l.b16 %v703
        %v996 = vunpack.c.h.b16 %v703
        %v997 = vunpack.c.l.b16 %v704
        %v998 = vunpack.c.h.b16 %v704
        %v999 = vunpack.c.l.b16 %v705
        %v1000 = vunpack.c.h.b16 %v705
        %v1001 = vunpack.c.l.b16 %v706
        %v1002 = vunpack.c.h.b16 %v706
        %v1003 = vunpack.c.l.b16 %v707
        %v1004 = vunpack.c.h.b16 %v707
        %v1005 = vunpack.c.l.b16 %v708
        %v1006 = vunpack.c.h.b16 %v708
        %v1007 = vunpack.c.l.b16 %v709
        %v1008 = vunpack.c.h.b16 %v709
        %v1009 = vunpack.c.l.b16 %v710
        %v1010 = vunpack.c.h.b16 %v710
        %v1011 = vunpack.c.l.b16 %v711
        %v1012 = vunpack.c.h.b16 %v711
        %v1013 = vunpack.c.l.b16 %v712
        %v1014 = vunpack.c.h.b16 %v712
        %v1015 = vunpack.c.l.b16 %v713
        %v1016 = vunpack.c.h.b16 %v713
        %v1017 = vunpack.c.l.b16 %v714
        %v1018 = vunpack.c.h.b16 %v714
        %v1019 = vunpack.c.l.b16 %v715
        %v1020 = vunpack.c.h.b16 %v715
        %v1021 = vunpack.c.l.b16 %v716
        %v1022 = vunpack.c.h.b16 %v716
        %v1023 = vunpack.c.l.b16 %v717
        %v1024 = vunpack.c.h.b16 %v717
        %v1025 = vunpack.c.l.b16 %v718
        %v1026 = vunpack.c.h.b16 %v718
        %v1027 = vunpack.c.l.b16 %v719
        %v1028 = vunpack.c.h.b16 %v719
        %v1029 = vunpack.c.l.b16 %v720
        %v1030 = vunpack.c.h.b16 %v720
        %v1031 = vunpack.c.l.b16 %v721
        %v1032 = vunpack.c.h.b16 %v721
        %v1033 = vunpack.c.l.b16 %v722
        %v1034 = vunpack.c.h.b16 %v722
        %v1035 = vunpack.c.l.b16 %v723
        %v1036 = vunpack.c.h.b16 %v723
        %v1037 = vunpack.c.l.b16 %v724
        %v1038 = vunpack.c.h.b16 %v724
        %v1039 = vunpack.c.l.b16 %v725
        %v1040 = vunpack.c.h.b16 %v725
        %v1041 = vunpack.c.l.b16 %v726
        %v1042 = vunpack.c.h.b16 %v726
        %v1043 = vunpack.c.l.b16 %v727
        %v1044 = vunpack.c.h.b16 %v727
        %v1045 = vunpack.c.l.b16 %v728
        %v1046 = vunpack.c.h.b16 %v728
        %v1047 = vunpack.c.l.b16 %v729
        %v1048 = vunpack.c.h.b16 %v729
        %v1049 = vunpack.c.l.b16 %v730
        %v1050 = vunpack.c.h.b16 %v730
        %v1051 = vunpack.c.l.b16 %v731
        %v1052 = vunpack.c.h.b16 %v731
        %v1053 = vunpack.c.l.b16 %v732
        %v1054 = vunpack.c.h.b16 %v732
        %v1055 = vunpack.c.l.b16 %v733
        %v1056 = vunpack.c.h.b16 %v733
        %v1057 = vunpack.c.l.b16 %v734
        %v1058 = vunpack.c.h.b16 %v734
        %v1059 = vunpack.c.l.b16 %v735
        %v1060 = vunpack.c.h.b16 %v735
        %v1061 = vunpack.c.l.b16 %v736
        %v1062 = vunpack.c.h.b16 %v736
        %v1063 = vunpack.c.l.b16 %v737
        %v1064 = vunpack.c.h.b16 %v737
        %v1065 = vunpack.c.l.b16 %v738
        %v1066 = vunpack.c.h.b16 %v738
        %v1067 = vunpack.c.l.b16 %v739
        %v1068 = vunpack.c.h.b16 %v739
        %v1069 = vunpack.c.l.b16 %v740
        %v1070 = vunpack.c.h.b16 %v740
        %v1071 = vunpack.c.l.b16 %v741
        %v1072 = vunpack.c.h.b16 %v741
        %v1073 = vunpack.c.l.b16 %v742
        %v1074 = vunpack.c.h.b16 %v742
        %v1075 = vunpack.c.l.b16 %v743
        %v1076 = vunpack.c.h.b16 %v743
        %v1077 = vunpack.c.l.b16 %v744
        %v1078 = vunpack.c.h.b16 %v744
        %v1079 = vunpack.c.l.b16 %v745
        %v1080 = vunpack.c.h.b16 %v745
        %v1081 = vunpack.c.l.b16 %v746
        %v1082 = vunpack.c.h.b16 %v746
        %v1083 = vunpack.c.l.b16 %v747
        %v1084 = vunpack.c.h.b16 %v747
        %v1085 = vunpack.c.l.b16 %v748
        %v1086 = vunpack.c.h.b16 %v748
        %v1087 = vunpack.c.l.b16 %v749
        %v1088 = vunpack.c.h.b16 %v749
        %v1089 = vunpack.c.l.b16 %v750
        %v1090 = vunpack.c.h.b16 %v750
        %v1091 = vunpack.c.l.b16 %v751
        %v1092 = vunpack.c.h.b16 %v751
        %v1093 = vunpack.c.l.b16 %v752
        %v1094 = vunpack.c.h.b16 %v752
        %v1095 = vunpack.c.l.b16 %v753
        %v1096 = vunpack.c.h.b16 %v753
        %v1097 = vunpack.c.l.b16 %v754
        %v1098 = vunpack.c.h.b16 %v754
        %v1099 = vunpack.c.l.b16 %v755
        %v1100 = vunpack.c.h.b16 %v755
        %v1101 = vunpack.c.l.b16 %v756
        %v1102 = vunpack.c.h.b16 %v756
        %v1103 = vunpack.c.l.b16 %v757
        %v1104 = vunpack.c.h.b16 %v757
        %v1105 = vunpack.c.l.b16 %v758
        %v1106 = vunpack.c.h.b16 %v758
        %v1107 = vunpack.c.l.b16 %v759
        %v1108 = vunpack.c.h.b16 %v759
        %v1109 = vunpack.c.l.b16 %v760
        %v1110 = vunpack.c.h.b16 %v760
        %v1111 = vunpack.c.l.b16 %v761
        %v1112 = vunpack.c.h.b16 %v761
        %v1113 = vunpack.c.l.b16 %v762
        %v1114 = vunpack.c.h.b16 %v762
        %v1115 = vunpack.c.l.b16 %v763
        %v1116 = vunpack.c.h.b16 %v763
        %v1117 = vunpack.c.l.b16 %v764
        %v1118 = vunpack.c.h.b16 %v764
        %v1119 = vunpack.c.l.b16 %v765
        %v1120 = vunpack.c.h.b16 %v765
        %v1121 = vunpack.c.l.b16 %v766
        %v1122 = vunpack.c.h.b16 %v766
        %v1123 = vunpack.c.l.b16 %v767
        %v1124 = vunpack.c.h.b16 %v767
        %v1125 = vunpack.c.l.b16 %v768
        %v1126 = vunpack.c.h.b16 %v768
        %v1127 = vunpack.c.l.b16 %v769
        %v1128 = vunpack.c.h.b16 %v769
        %v1129 = vunpack.c.l.b16 %v770
        %v1130 = vunpack.c.h.b16 %v770
        %v1131 = vunpack.c.l.b16 %v771
        %v1132 = vunpack.c.h.b16 %v771
        %v1133 = vunpack.c.l.b16 %v772
        %v1134 = vunpack.c.h.b16 %v772
        %v1135 = vunpack.c.l.b16 %v773
        %v1136 = vunpack.c.h.b16 %v773
        %v1137 = vunpack.c.l.b16 %v774
        %v1138 = vunpack.c.h.b16 %v774
        %v1139 = vunpack.c.l.b16 %v775
        %v1140 = vunpack.c.h.b16 %v775
        %v1141 = vunpack.c.l.b16 %v776
        %v1142 = vunpack.c.h.b16 %v776
        %v1143 = vunpack.c.l.b16 %v777
        %v1144 = vunpack.c.h.b16 %v777
        %v1145 = vunpack.c.l.b16 %v778
        %v1146 = vunpack.c.h.b16 %v778
        %v1147 = vunpack.c.l.b16 %v779
        %v1148 = vunpack.c.h.b16 %v779
        %v1149 = vunpack.c.l.b16 %v780
        %v1150 = vunpack.c.h.b16 %v780
        %v1151 = vunpack.c.l.b16 %v781
        %v1152 = vunpack.c.h.b16 %v781
        %v1153 = vunpack.c.l.b16 %v782
        %v1154 = vunpack.c.h.b16 %v782
        %v1155 = vunpack.c.l.b16 %v783
        %v1156 = vunpack.c.h.b16 %v783
        %v1157 = vunpack.c.l.b16 %v784
        %v1158 = vunpack.c.h.b16 %v784
        %v1159 = vunpack.c.l.b16 %v785
        %v1160 = vunpack.c.h.b16 %v785
        %v1161 = vunpack.c.l.b16 %v786
        %v1162 = vunpack.c.h.b16 %v786
        %v1163 = vunpack.c.l.b16 %v787
        %v1164 = vunpack.c.h.b16 %v787
        %v1165 = vunpack.c.l.b16 %v788
        %v1166 = vunpack.c.h.b16 %v788
        %v1167 = vunpack.c.l.b16 %v789
        %v1168 = vunpack.c.h.b16 %v789
        %v1169 = vunpack.c.l.b16 %v790
        %v1170 = vunpack.c.h.b16 %v790
        %v1171 = vunpack.c.l.b16 %v791
        %v1172 = vunpack.c.h.b16 %v791
        %v1173 = vunpack.c.l.b16 %v792
        %v1174 = vunpack.c.h.b16 %v792
        %v1175 = vunpack.c.l.b16 %v793
        %v1176 = vunpack.c.h.b16 %v793
        %v1177 = vunpack.c.l.b16 %v794
        %v1178 = vunpack.c.h.b16 %v794
        %v1179 = vpack.c.b16 %v927, %v923
        %v1180 = vpack.c.b16 %v928, %v924
        %v1181 = vpack.c.b16 %v929, %v925
        %v1182 = vpack.c.b16 %v930, %v926
        %v1183 = vpack.c.b16 %v935, %v931
        %v1184 = vpack.c.b16 %v936, %v932
        %v1185 = vpack.c.b16 %v937, %v933
        %v1186 = vpack.c.b16 %v938, %v934
        %v1187 = vpack.c.b16 %v943, %v939
        %v1188 = vpack.c.b16 %v944, %v940
        %v1189 = vpack.c.b16 %v945, %v941
        %v1190 = vpack.c.b16 %v946, %v942
        %v1191 = vpack.c.b16 %v951, %v947
        %v1192 = vpack.c.b16 %v952, %v948
        %v1193 = vpack.c.b16 %v953, %v949
        %v1194 = vpack.c.b16 %v954, %v950
        %v1195 = vpack.c.b16 %v959, %v955
        %v1196 = vpack.c.b16 %v960, %v956
        %v1197 = vpack.c.b16 %v961, %v957
        %v1198 = vpack.c.b16 %v962, %v958
        %v1199 = vpack.c.b16 %v967, %v963
        %v1200 = vpack.c.b16 %v968, %v964
        %v1201 = vpack.c.b16 %v969, %v965
        %v1202 = vpack.c.b16 %v970, %v966
        %v1203 = vpack.c.b16 %v975, %v971
        %v1204 = vpack.c.b16 %v976, %v972
        %v1205 = vpack.c.b16 %v977, %v973
        %v1206 = vpack.c.b16 %v978, %v974
        %v1207 = vpack.c.b16 %v983, %v979
        %v1208 = vpack.c.b16 %v984, %v980
        %v1209 = vpack.c.b16 %v985, %v981
        %v1210 = vpack.c.b16 %v986, %v982
        %v1211 = vpack.c.b16 %v991, %v987
        %v1212 = vpack.c.b16 %v992, %v988
        %v1213 = vpack.c.b16 %v993, %v989
        %v1214 = vpack.c.b16 %v994, %v990
        %v1215 = vpack.c.b16 %v999, %v995
        %v1216 = vpack.c.b16 %v1000, %v996
        %v1217 = vpack.c.b16 %v1001, %v997
        %v1218 = vpack.c.b16 %v1002, %v998
        %v1219 = vpack.c.b16 %v1007, %v1003
        %v1220 = vpack.c.b16 %v1008, %v1004
        %v1221 = vpack.c.b16 %v1009, %v1005
        %v1222 = vpack.c.b16 %v1010, %v1006
        %v1223 = vpack.c.b16 %v1015, %v1011
        %v1224 = vpack.c.b16 %v1016, %v1012
        %v1225 = vpack.c.b16 %v1017, %v1013
        %v1226 = vpack.c.b16 %v1018, %v1014
        %v1227 = vpack.c.b16 %v1023, %v1019
        %v1228 = vpack.c.b16 %v1024, %v1020
        %v1229 = vpack.c.b16 %v1025, %v1021
        %v1230 = vpack.c.b16 %v1026, %v1022
        %v1231 = vpack.c.b16 %v1031, %v1027
        %v1232 = vpack.c.b16 %v1032, %v1028
        %v1233 = vpack.c.b16 %v1033, %v1029
        %v1234 = vpack.c.b16 %v1034, %v1030
        %v1235 = vpack.c.b16 %v1039, %v1035
        %v1236 = vpack.c.b16 %v1040, %v1036
        %v1237 = vpack.c.b16 %v1041, %v1037
        %v1238 = vpack.c.b16 %v1042, %v1038
        %v1239 = vpack.c.b16 %v1047, %v1043
        %v1240 = vpack.c.b16 %v1048, %v1044
        %v1241 = vpack.c.b16 %v1049, %v1045
        %v1242 = vpack.c.b16 %v1050, %v1046
        %v1243 = vpack.c.b16 %v1055, %v1051
        %v1244 = vpack.c.b16 %v1056, %v1052
        %v1245 = vpack.c.b16 %v1057, %v1053
        %v1246 = vpack.c.b16 %v1058, %v1054
        %v1247 = vpack.c.b16 %v1063, %v1059
        %v1248 = vpack.c.b16 %v1064, %v1060
        %v1249 = vpack.c.b16 %v1065, %v1061
        %v1250 = vpack.c.b16 %v1066, %v1062
        %v1251 = vpack.c.b16 %v1071, %v1067
        %v1252 = vpack.c.b16 %v1072, %v1068
        %v1253 = vpack.c.b16 %v1073, %v1069
        %v1254 = vpack.c.b16 %v1074, %v1070
        %v1255 = vpack.c.b16 %v1079, %v1075
        %v1256 = vpack.c.b16 %v1080, %v1076
        %v1257 = vpack.c.b16 %v1081, %v1077
        %v1258 = vpack.c.b16 %v1082, %v1078
        %v1259 = vpack.c.b16 %v1087, %v1083
        %v1260 = vpack.c.b16 %v1088, %v1084
        %v1261 = vpack.c.b16 %v1089, %v1085
        %v1262 = vpack.c.b16 %v1090, %v1086
        %v1263 = vpack.c.b16 %v1095, %v1091
        %v1264 = vpack.c.b16 %v1096, %v1092
        %v1265 = vpack.c.b16 %v1097, %v1093
        %v1266 = vpack.c.b16 %v1098, %v1094
        %v1267 = vpack.c.b16 %v1103, %v1099
        %v1268 = vpack.c.b16 %v1104, %v1100
        %v1269 = vpack.c.b16 %v1105, %v1101
        %v1270 = vpack.c.b16 %v1106, %v1102
        %v1271 = vpack.c.b16 %v1111, %v1107
        %v1272 = vpack.c.b16 %v1112, %v1108
        %v1273 = vpack.c.b16 %v1113, %v1109
        %v1274 = vpack.c.b16 %v1114, %v1110
        %v1275 = vpack.c.b16 %v1119, %v1115
        %v1276 = vpack.c.b16 %v1120, %v1116
        %v1277 = vpack.c.b16 %v1121, %v1117
        %v1278 = vpack.c.b16 %v1122, %v1118
        %v1279 = vpack.c.b16 %v1127, %v1123
        %v1280 = vpack.c.b16 %v1128, %v1124
        %v1281 = vpack.c.b16 %v1129, %v1125
        %v1282 = vpack.c.b16 %v1130, %v1126
        %v1283 = vpack.c.b16 %v1135, %v1131
        %v1284 = vpack.c.b16 %v1136, %v1132
        %v1285 = vpack.c.b16 %v1137, %v1133
        %v1286 = vpack.c.b16 %v1138, %v1134
        %v1287 = vpack.c.b16 %v1143, %v1139
        %v1288 = vpack.c.b16 %v1144, %v1140
        %v1289 = vpack.c.b16 %v1145, %v1141
        %v1290 = vpack.c.b16 %v1146, %v1142
        %v1291 = vpack.c.b16 %v1151, %v1147
        %v1292 = vpack.c.b16 %v1152, %v1148
        %v1293 = vpack.c.b16 %v1153, %v1149
        %v1294 = vpack.c.b16 %v1154, %v1150
        %v1295 = vpack.c.b16 %v1159, %v1155
        %v1296 = vpack.c.b16 %v1160, %v1156
        %v1297 = vpack.c.b16 %v1161, %v1157
        %v1298 = vpack.c.b16 %v1162, %v1158
        %v1299 = vpack.c.b16 %v1167, %v1163
        %v1300 = vpack.c.b16 %v1168, %v1164
        %v1301 = vpack.c.b16 %v1169, %v1165
        %v1302 = vpack.c.b16 %v1170, %v1166
        %v1303 = vpack.c.b16 %v1175, %v1171
        %v1304 = vpack.c.b16 %v1176, %v1172
        %v1305 = vpack.c.b16 %v1177, %v1173
        %v1306 = vpack.c.b16 %v1178, %v1174
        %v1499 = vunpack.c.l.b16 %v539
        %v1500 = vunpack.c.l.b16 %v540
        %v1501 = vunpack.c.l.b16 %v541
        %v1502 = vunpack.c.l.b16 %v542
        %v1503 = vunpack.c.l.b16 %v543
        %v1504 = vunpack.c.l.b16 %v544
        %v1505 = vunpack.c.l.b16 %v545
        %v1506 = vunpack.c.l.b16 %v546
        %v1507 = vunpack.c.l.b16 %v547
        %v1508 = vunpack.c.l.b16 %v548
        %v1509 = vunpack.c.l.b16 %v549
        %v1510 = vunpack.c.l.b16 %v550
        %v1511 = vunpack.c.l.b16 %v551
        %v1512 = vunpack.c.l.b16 %v552
        %v1513 = vunpack.c.l.b16 %v553
        %v1514 = vunpack.c.l.b16 %v554
        %v1515 = vunpack.c.l.b16 %v555
        %v1516 = vunpack.c.l.b16 %v556
        %v1517 = vunpack.c.l.b16 %v557
        %v1518 = vunpack.c.l.b16 %v558
        %v1519 = vunpack.c.l.b16 %v559
        %v1520 = vunpack.c.l.b16 %v560
        %v1521 = vunpack.c.l.b16 %v561
        %v1522 = vunpack.c.l.b16 %v562
        %v1523 = vunpack.c.l.b16 %v563
        %v1524 = vunpack.c.l.b16 %v564
        %v1525 = vunpack.c.l.b16 %v565
        %v1526 = vunpack.c.l.b16 %v566
        %v1527 = vunpack.c.l.b16 %v567
        %v1528 = vunpack.c.l.b16 %v568
        %v1529 = vunpack.c.l.b16 %v569
        %v1530 = vunpack.c.l.b16 %v570
        %v1531 = vunpack.c.l.b16 %v571
        %v1532 = vunpack.c.l.b16 %v572
        %v1533 = vunpack.c.l.b16 %v573
        %v1534 = vunpack.c.l.b16 %v574
        %v1535 = vunpack.c.l.b16 %v575
        %v1536 = vunpack.c.l.b16 %v576
        %v1537 = vunpack.c.l.b16 %v577
        %v1538 = vunpack.c.l.b16 %v578
        %v1539 = vunpack.c.l.b16 %v579
        %v1540 = vunpack.c.l.b16 %v580
        %v1541 = vunpack.c.l.b16 %v581
        %v1542 = vunpack.c.l.b16 %v582
        %v1543 = vunpack.c.l.b16 %v583
        %v1544 = vunpack.c.l.b16 %v584
        %v1545 = vunpack.c.l.b16 %v585
        %v1546 = vunpack.c.l.b16 %v586
        %v1547 = vunpack.c.l.b16 %v587
        %v1548 = vunpack.c.l.b16 %v588
        %v1549 = vunpack.c.l.b16 %v589
        %v1550 = vunpack.c.l.b16 %v590
        %v1551 = vunpack.c.l.b16 %v591
        %v1552 = vunpack.c.l.b16 %v592
        %v1553 = vunpack.c.l.b16 %v593
        %v1554 = vunpack.c.l.b16 %v594
        %v1555 = vunpack.c.l.b16 %v595
        %v1556 = vunpack.c.l.b16 %v596
        %v1557 = vunpack.c.l.b16 %v597
        %v1558 = vunpack.c.l.b16 %v598
        %v1559 = vunpack.c.l.b16 %v599
        %v1560 = vunpack.c.l.b16 %v600
        %v1561 = vunpack.c.l.b16 %v601
        %v1562 = vunpack.c.l.b16 %v602
        %v1563 = vpack.c.b16 %v1500, %v1499
        %v1564 = vpack.c.b16 %v1502, %v1501
        %v1565 = vpack.c.b16 %v1504, %v1503
        %v1566 = vpack.c.b16 %v1506, %v1505
        %v1567 = vpack.c.b16 %v1508, %v1507
        %v1568 = vpack.c.b16 %v1510, %v1509
        %v1569 = vpack.c.b16 %v1512, %v1511
        %v1570 = vpack.c.b16 %v1514, %v1513
        %v1571 = vpack.c.b16 %v1516, %v1515
        %v1572 = vpack.c.b16 %v1518, %v1517
        %v1573 = vpack.c.b16 %v1520, %v1519
        %v1574 = vpack.c.b16 %v1522, %v1521
        %v1575 = vpack.c.b16 %v1524, %v1523
        %v1576 = vpack.c.b16 %v1526, %v1525
        %v1577 = vpack.c.b16 %v1528, %v1527
        %v1578 = vpack.c.b16 %v1530, %v1529
        %v1579 = vpack.c.b16 %v1532, %v1531
        %v1580 = vpack.c.b16 %v1534, %v1533
        %v1581 = vpack.c.b16 %v1536, %v1535
        %v1582 = vpack.c.b16 %v1538, %v1537
        %v1583 = vpack.c.b16 %v1540, %v1539
        %v1584 = vpack.c.b16 %v1542, %v1541
        %v1585 = vpack.c.b16 %v1544, %v1543
        %v1586 = vpack.c.b16 %v1546, %v1545
        %v1587 = vpack.c.b16 %v1548, %v1547
        %v1588 = vpack.c.b16 %v1550, %v1549
        %v1589 = vpack.c.b16 %v1552, %v1551
        %v1590 = vpack.c.b16 %v1554, %v1553
        %v1591 = vpack.c.b16 %v1556, %v1555
        %v1592 = vpack.c.b16 %v1558, %v1557
        %v1593 = vpack.c.b16 %v1560, %v1559
        %v1594 = vpack.c.b16 %v1562, %v1561
        %1627 = vmatprep.subr.bf16.mxu0 0
        %1628 = vmatpush1.bf16.msra.mxu0 %v1563
        %1629 = vmatprep.subr.bf16.mxu0 0
        %1630 = vmatpush1.bf16.msra.mxu0 %v1564
        %1631 = vmatprep.subr.bf16.mxu0 0
        %1632 = vmatpush1.bf16.msra.mxu0 %v1565
        %1633 = vmatprep.subr.bf16.mxu0 0
        %1634 = vmatpush1.bf16.msra.mxu0 %v1566
        %1635 = vmatprep.subr.bf16.mxu0 0
        %1636 = vmatpush1.bf16.msra.mxu0 %v1567
        %1637 = vmatprep.subr.bf16.mxu0 0
        %1638 = vmatpush1.bf16.msra.mxu0 %v1568
        %1639 = vmatprep.subr.bf16.mxu0 0
        %1640 = vmatpush1.bf16.msra.mxu0 %v1569
        %1641 = vmatprep.subr.bf16.mxu0 0
        %1642 = vmatpush1.bf16.msra.mxu0 %v1570
        %1643 = vmatprep.subr.bf16.mxu0 0
        %1644 = vmatpush1.bf16.msra.mxu0 %v1571
        %1645 = vmatprep.subr.bf16.mxu0 0
        %1646 = vmatpush1.bf16.msra.mxu0 %v1572
        %1647 = vmatprep.subr.bf16.mxu0 0
        %1648 = vmatpush1.bf16.msra.mxu0 %v1573
        %1649 = vmatprep.subr.bf16.mxu0 0
        %1650 = vmatpush1.bf16.msra.mxu0 %v1574
        %1651 = vmatprep.subr.bf16.mxu0 0
        %1652 = vmatpush1.bf16.msra.mxu0 %v1575
        %1653 = vmatprep.subr.bf16.mxu0 0
        %1654 = vmatpush1.bf16.msra.mxu0 %v1576
        %1655 = vmatprep.subr.bf16.mxu0 0
        %1656 = vmatpush1.bf16.msra.mxu0 %v1577
        %1657 = vmatprep.subr.bf16.mxu0 0
        %1658 = vmatpush1.bf16.msra.mxu0 %v1578
        %1659 = vmatprep.mubr.bf16.mxu0 %v1180
        %1660 = vmatmul.mubr.bf16.gmra.mrb[0].mxu0 %v1179
        %v1661 = vpop.f32.mrb[0].mxu0
        %v1662 = vadd.f32 0.0, %v1661
        %v1663 = vpop.f32.mrb[0].mxu0
        %v1664 = vpop.f32.mrb[0].mxu0
        %v1665 = vadd.f32 0.0, %v1664
        %v1666 = vpop.f32.mrb[0].mxu0
        %1667 = vmatprep.mubr.bf16.mxu0 %v1184
        %1668 = vmatmul.mubr.bf16.gmra.mrb[0].mxu0 %v1183
        %v1669 = vpop.f32.mrb[0].mxu0
        %v1670 = vadd.f32 0.0, %v1669
        %v1671 = vpop.f32.mrb[0].mxu0
        %v1672 = vpop.f32.mrb[0].mxu0
        %v1673 = vadd.f32 0.0, %v1672
        %v1674 = vpop.f32.mrb[0].mxu0
        %1675 = vmatprep.mubr.bf16.mxu0 %v1188
        %1676 = vmatmul.mubr.bf16.gmra.mrb[0].mxu0 %v1187
        %v1677 = vpop.f32.mrb[0].mxu0
        %v1678 = vadd.f32 0.0, %v1677
        %v1679 = vpop.f32.mrb[0].mxu0
        %v1680 = vpop.f32.mrb[0].mxu0
        %v1681 = vadd.f32 0.0, %v1680
        %v1682 = vpop.f32.mrb[0].mxu0
        %1683 = vmatprep.mubr.bf16.mxu0 %v1192
        %1684 = vmatmul.mubr.bf16.gmra.mrb[0].mxu0 %v1191
        %v1685 = vpop.f32.mrb[0].mxu0
        %v1686 = vadd.f32 0.0, %v1685
        %v1687 = vpop.f32.mrb[0].mxu0
        %v1688 = vpop.f32.mrb[0].mxu0
        %v1689 = vadd.f32 0.0, %v1688
        %v1690 = vpop.f32.mrb[0].mxu0
        %1691 = vmatprep.mubr.bf16.mxu0 %v1196
        %1692 = vmatmul.mubr.bf16.gmra.mrb[0].mxu0 %v1195
        %v1693 = vpop.f32.mrb[0].mxu0
        %v1694 = vadd.f32 0.0, %v1693
        %v1695 = vpop.f32.mrb[0].mxu0
        %v1696 = vpop.f32.mrb[0].mxu0
        %v1697 = vadd.f32 0.0, %v1696
        %v1698 = vpop.f32.mrb[0].mxu0
        %1699 = vmatprep.mubr.bf16.mxu0 %v1200
        %1700 = vmatmul.mubr.bf16.gmra.mrb[0].mxu0 %v1199
        %v1701 = vpop.f32.mrb[0].mxu0
        %v1702 = vadd.f32 0.0, %v1701
        %v1703 = vpop.f32.mrb[0].mxu0
        %v1704 = vpop.f32.mrb[0].mxu0
        %v1705 = vadd.f32 0.0, %v1704
        %v1706 = vpop.f32.mrb[0].mxu0
        %1707 = vmatprep.mubr.bf16.mxu0 %v1204
        %1708 = vmatmul.mubr.bf16.gmra.mrb[0].mxu0 %v1203
        %v1709 = vpop.f32.mrb[0].mxu0
        %v1710 = vadd.f32 0.0, %v1709
        %v1711 = vpop.f32.mrb[0].mxu0
        %v1712 = vpop.f32.mrb[0].mxu0
        %v1713 = vadd.f32 0.0, %v1712
        %v1714 = vpop.f32.mrb[0].mxu0
        %1715 = vmatprep.mubr.bf16.mxu0 %v1208
        %1716 = vmatmul.mubr.bf16.gmra.mrb[0].mxu0 %v1207
        %v1717 = vpop.f32.mrb[0].mxu0
        %v1718 = vadd.f32 0.0, %v1717
        %v1719 = vpop.f32.mrb[0].mxu0
        %v1720 = vpop.f32.mrb[0].mxu0
        %v1721 = vadd.f32 0.0, %v1720
        %v1722 = vpop.f32.mrb[0].mxu0
        %1723 = vmatprep.mubr.bf16.mxu0 %v1212
        %1724 = vmatmul.mubr.bf16.gmra.mrb[0].mxu0 %v1211
        %v1725 = vpop.f32.mrb[0].mxu0
        %v1726 = vadd.f32 0.0, %v1725
        %v1727 = vpop.f32.mrb[0].mxu0
        %v1728 = vpop.f32.mrb[0].mxu0
        %v1729 = vadd.f32 0.0, %v1728
        %v1730 = vpop.f32.mrb[0].mxu0
        %1731 = vmatprep.mubr.bf16.mxu0 %v1216
        %1732 = vmatmul.mubr.bf16.gmra.mrb[0].mxu0 %v1215
        %v1733 = vpop.f32.mrb[0].mxu0
        %v1734 = vadd.f32 0.0, %v1733
        %v1735 = vpop.f32.mrb[0].mxu0
        %v1736 = vpop.f32.mrb[0].mxu0
        %v1737 = vadd.f32 0.0, %v1736
        %v1738 = vpop.f32.mrb[0].mxu0
        %1739 = vmatprep.mubr.bf16.mxu0 %v1220
        %1740 = vmatmul.mubr.bf16.gmra.mrb[0].mxu0 %v1219
        %v1741 = vpop.f32.mrb[0].mxu0
        %v1742 = vadd.f32 0.0, %v1741
        %v1743 = vpop.f32.mrb[0].mxu0
        %v1744 = vpop.f32.mrb[0].mxu0
        %v1745 = vadd.f32 0.0, %v1744
        %v1746 = vpop.f32.mrb[0].mxu0
        %1747 = vmatprep.mubr.bf16.mxu0 %v1224
        %1748 = vmatmul.mubr.bf16.gmra.mrb[0].mxu0 %v1223
        %v1749 = vpop.f32.mrb[0].mxu0
        %v1750 = vadd.f32 0.0, %v1749
        %v1751 = vpop.f32.mrb[0].mxu0
        %v1752 = vpop.f32.mrb[0].mxu0
        %v1753 = vadd.f32 0.0, %v1752
        %v1754 = vpop.f32.mrb[0].mxu0
        %1755 = vmatprep.mubr.bf16.mxu0 %v1228
        %1756 = vmatmul.mubr.bf16.gmra.mrb[0].mxu0 %v1227
        %v1757 = vpop.f32.mrb[0].mxu0
        %v1758 = vadd.f32 0.0, %v1757
        %v1759 = vpop.f32.mrb[0].mxu0
        %v1760 = vpop.f32.mrb[0].mxu0
        %v1761 = vadd.f32 0.0, %v1760
        %v1762 = vpop.f32.mrb[0].mxu0
        %1763 = vmatprep.mubr.bf16.mxu0 %v1232
        %1764 = vmatmul.mubr.bf16.gmra.mrb[0].mxu0 %v1231
        %v1765 = vpop.f32.mrb[0].mxu0
        %v1766 = vadd.f32 0.0, %v1765
        %v1767 = vpop.f32.mrb[0].mxu0
        %v1768 = vpop.f32.mrb[0].mxu0
        %v1769 = vadd.f32 0.0, %v1768
        %v1770 = vpop.f32.mrb[0].mxu0
        %1771 = vmatprep.mubr.bf16.mxu0 %v1236
        %1772 = vmatmul.mubr.bf16.gmra.mrb[0].mxu0 %v1235
        %v1773 = vpop.f32.mrb[0].mxu0
        %v1774 = vadd.f32 0.0, %v1773
        %v1775 = vpop.f32.mrb[0].mxu0
        %v1776 = vpop.f32.mrb[0].mxu0
        %v1777 = vadd.f32 0.0, %v1776
        %v1778 = vpop.f32.mrb[0].mxu0
        %1779 = vmatprep.mubr.bf16.mxu0 %v1240
        %1780 = vmatmul.mubr.bf16.gmra.mrb[0].mxu0 %v1239
        %v1781 = vpop.f32.mrb[0].mxu0
        %v1782 = vadd.f32 0.0, %v1781
        %v1783 = vpop.f32.mrb[0].mxu0
        %v1784 = vpop.f32.mrb[0].mxu0
        %v1785 = vadd.f32 0.0, %v1784
        %v1786 = vpop.f32.mrb[0].mxu0
        %1787 = vmatprep.mubr.bf16.mxu0 %v1244
        %1788 = vmatmul.mubr.bf16.gmra.mrb[0].mxu0 %v1243
        %v1789 = vpop.f32.mrb[0].mxu0
        %v1790 = vadd.f32 0.0, %v1789
        %v1791 = vpop.f32.mrb[0].mxu0
        %v1792 = vpop.f32.mrb[0].mxu0
        %v1793 = vadd.f32 0.0, %v1792
        %v1794 = vpop.f32.mrb[0].mxu0
        %1795 = vmatprep.mubr.bf16.mxu0 %v1248
        %1796 = vmatmul.mubr.bf16.gmra.mrb[0].mxu0 %v1247
        %v1797 = vpop.f32.mrb[0].mxu0
        %v1798 = vadd.f32 0.0, %v1797
        %v1799 = vpop.f32.mrb[0].mxu0
        %v1800 = vpop.f32.mrb[0].mxu0
        %v1801 = vadd.f32 0.0, %v1800
        %v1802 = vpop.f32.mrb[0].mxu0
        %1803 = vmatprep.mubr.bf16.mxu0 %v1252
        %1804 = vmatmul.mubr.bf16.gmra.mrb[0].mxu0 %v1251
        %v1805 = vpop.f32.mrb[0].mxu0
        %v1806 = vadd.f32 0.0, %v1805
        %v1807 = vpop.f32.mrb[0].mxu0
        %v1808 = vpop.f32.mrb[0].mxu0
        %v1809 = vadd.f32 0.0, %v1808
        %v1810 = vpop.f32.mrb[0].mxu0
        %1811 = vmatprep.mubr.bf16.mxu0 %v1256
        %1812 = vmatmul.mubr.bf16.gmra.mrb[0].mxu0 %v1255
        %v1813 = vpop.f32.mrb[0].mxu0
        %v1814 = vadd.f32 0.0, %v1813
        %v1815 = vpop.f32.mrb[0].mxu0
        %v1816 = vpop.f32.mrb[0].mxu0
        %v1817 = vadd.f32 0.0, %v1816
        %v1818 = vpop.f32.mrb[0].mxu0
        %1819 = vmatprep.mubr.bf16.mxu0 %v1260
        %1820 = vmatmul.mubr.bf16.gmra.mrb[0].mxu0 %v1259
        %v1821 = vpop.f32.mrb[0].mxu0
        %v1822 = vadd.f32 0.0, %v1821
        %v1823 = vpop.f32.mrb[0].mxu0
        %v1824 = vpop.f32.mrb[0].mxu0
        %v1825 = vadd.f32 0.0, %v1824
        %v1826 = vpop.f32.mrb[0].mxu0
        %1827 = vmatprep.mubr.bf16.mxu0 %v1264
        %1828 = vmatmul.mubr.bf16.gmra.mrb[0].mxu0 %v1263
        %v1829 = vpop.f32.mrb[0].mxu0
        %v1830 = vadd.f32 0.0, %v1829
        %v1831 = vpop.f32.mrb[0].mxu0
        %v1832 = vpop.f32.mrb[0].mxu0
        %v1833 = vadd.f32 0.0, %v1832
        %v1834 = vpop.f32.mrb[0].mxu0
        %1835 = vmatprep.mubr.bf16.mxu0 %v1268
        %1836 = vmatmul.mubr.bf16.gmra.mrb[0].mxu0 %v1267
        %v1837 = vpop.f32.mrb[0].mxu0
        %v1838 = vadd.f32 0.0, %v1837
        %v1839 = vpop.f32.mrb[0].mxu0
        %v1840 = vpop.f32.mrb[0].mxu0
        %v1841 = vadd.f32 0.0, %v1840
        %v1842 = vpop.f32.mrb[0].mxu0
        %1843 = vmatprep.mubr.bf16.mxu0 %v1272
        %1844 = vmatmul.mubr.bf16.gmra.mrb[0].mxu0 %v1271
        %v1845 = vpop.f32.mrb[0].mxu0
        %v1846 = vadd.f32 0.0, %v1845
        %v1847 = vpop.f32.mrb[0].mxu0
        %v1848 = vpop.f32.mrb[0].mxu0
        %v1849 = vadd.f32 0.0, %v1848
        %v1850 = vpop.f32.mrb[0].mxu0
        %1851 = vmatprep.mubr.bf16.mxu0 %v1276
        %1852 = vmatmul.mubr.bf16.gmra.mrb[0].mxu0 %v1275
        %v1853 = vpop.f32.mrb[0].mxu0
        %v1854 = vadd.f32 0.0, %v1853
        %v1855 = vpop.f32.mrb[0].mxu0
        %v1856 = vpop.f32.mrb[0].mxu0
        %v1857 = vadd.f32 0.0, %v1856
        %v1858 = vpop.f32.mrb[0].mxu0
        %1859 = vmatprep.mubr.bf16.mxu0 %v1280
        %1860 = vmatmul.mubr.bf16.gmra.mrb[0].mxu0 %v1279
        %v1861 = vpop.f32.mrb[0].mxu0
        %v1862 = vadd.f32 0.0, %v1861
        %v1863 = vpop.f32.mrb[0].mxu0
        %v1864 = vpop.f32.mrb[0].mxu0
        %v1865 = vadd.f32 0.0, %v1864
        %v1866 = vpop.f32.mrb[0].mxu0
        %1867 = vmatprep.mubr.bf16.mxu0 %v1284
        %1868 = vmatmul.mubr.bf16.gmra.mrb[0].mxu0 %v1283
        %v1869 = vpop.f32.mrb[0].mxu0
        %v1870 = vadd.f32 0.0, %v1869
        %v1871 = vpop.f32.mrb[0].mxu0
        %v1872 = vpop.f32.mrb[0].mxu0
        %v1873 = vadd.f32 0.0, %v1872
        %v1874 = vpop.f32.mrb[0].mxu0
        %1875 = vmatprep.mubr.bf16.mxu0 %v1288
        %1876 = vmatmul.mubr.bf16.gmra.mrb[0].mxu0 %v1287
        %v1877 = vpop.f32.mrb[0].mxu0
        %v1878 = vadd.f32 0.0, %v1877
        %v1879 = vpop.f32.mrb[0].mxu0
        %v1880 = vpop.f32.mrb[0].mxu0
        %v1881 = vadd.f32 0.0, %v1880
        %v1882 = vpop.f32.mrb[0].mxu0
        %1883 = vmatprep.mubr.bf16.mxu0 %v1292
        %1884 = vmatmul.mubr.bf16.gmra.mrb[0].mxu0 %v1291
        %v1885 = vpop.f32.mrb[0].mxu0
        %v1886 = vadd.f32 0.0, %v1885
        %v1887 = vpop.f32.mrb[0].mxu0
        %v1888 = vpop.f32.mrb[0].mxu0
        %v1889 = vadd.f32 0.0, %v1888
        %v1890 = vpop.f32.mrb[0].mxu0
        %1891 = vmatprep.mubr.bf16.mxu0 %v1296
        %1892 = vmatmul.mubr.bf16.gmra.mrb[0].mxu0 %v1295
        %v1893 = vpop.f32.mrb[0].mxu0
        %v1894 = vadd.f32 0.0, %v1893
        %v1895 = vpop.f32.mrb[0].mxu0
        %v1896 = vpop.f32.mrb[0].mxu0
        %v1897 = vadd.f32 0.0, %v1896
        %v1898 = vpop.f32.mrb[0].mxu0
        %1899 = vmatprep.mubr.bf16.mxu0 %v1300
        %1900 = vmatmul.mubr.bf16.gmra.mrb[0].mxu0 %v1299
        %v1901 = vpop.f32.mrb[0].mxu0
        %v1902 = vadd.f32 0.0, %v1901
        %v1903 = vpop.f32.mrb[0].mxu0
        %v1904 = vpop.f32.mrb[0].mxu0
        %v1905 = vadd.f32 0.0, %v1904
        %v1906 = vpop.f32.mrb[0].mxu0
        %1907 = vmatprep.mubr.bf16.mxu0 %v1304
        %1908 = vmatmul.mubr.bf16.gmra.mrb[0].mxu0 %v1303
        %v1909 = vpop.f32.mrb[0].mxu0
        %v1910 = vadd.f32 0.0, %v1909
        %v1911 = vpop.f32.mrb[0].mxu0
        %v1912 = vpop.f32.mrb[0].mxu0
        %v1913 = vadd.f32 0.0, %v1912
        %v1914 = vpop.f32.mrb[0].mxu0
        %1915 = vdwg.mxu0
        %1916 = vmatprep.subr.bf16.mxu0 0
        %1917 = vmatpush1.bf16.msra.mxu0 %v1579
        %1918 = vmatprep.subr.bf16.mxu0 0
        %1919 = vmatpush1.bf16.msra.mxu0 %v1580
        %1920 = vmatprep.subr.bf16.mxu0 0
        %1921 = vmatpush1.bf16.msra.mxu0 %v1581
        %1922 = vmatprep.subr.bf16.mxu0 0
        %1923 = vmatpush1.bf16.msra.mxu0 %v1582
        %1924 = vmatprep.subr.bf16.mxu0 0
        %1925 = vmatpush1.bf16.msra.mxu0 %v1583
        %1926 = vmatprep.subr.bf16.mxu0 0
        %1927 = vmatpush1.bf16.msra.mxu0 %v1584
        %1928 = vmatprep.subr.bf16.mxu0 0
        %1929 = vmatpush1.bf16.msra.mxu0 %v1585
        %1930 = vmatprep.subr.bf16.mxu0 0
        %1931 = vmatpush1.bf16.msra.mxu0 %v1586
        %1932 = vmatprep.subr.bf16.mxu0 0
        %1933 = vmatpush1.bf16.msra.mxu0 %v1587
        %1934 = vmatprep.subr.bf16.mxu0 0
        %1935 = vmatpush1.bf16.msra.mxu0 %v1588
        %1936 = vmatprep.subr.bf16.mxu0 0
        %1937 = vmatpush1.bf16.msra.mxu0 %v1589
        %1938 = vmatprep.subr.bf16.mxu0 0
        %1939 = vmatpush1.bf16.msra.mxu0 %v1590
        %1940 = vmatprep.subr.bf16.mxu0 0
        %1941 = vmatpush1.bf16.msra.mxu0 %v1591
        %1942 = vmatprep.subr.bf16.mxu0 0
        %1943 = vmatpush1.bf16.msra.mxu0 %v1592
        %1944 = vmatprep.subr.bf16.mxu0 0
        %1945 = vmatpush1.bf16.msra.mxu0 %v1593
        %1946 = vmatprep.subr.bf16.mxu0 0
        %1947 = vmatpush1.bf16.msra.mxu0 %v1594
        %1948 = vmatprep.mubr.bf16.mxu0 %v1182
        %1949 = vmatmul.mubr.bf16.gmra.mrb[0].mxu0 %v1181
        %v1950 = vpop.f32.mrb[0].mxu0
        %v1951 = vadd.f32 %v1662, %v1950
        %v1952 = vpop.f32.mrb[0].mxu0
        %v1953 = vpop.f32.mrb[0].mxu0
        %v1954 = vadd.f32 %v1665, %v1953
        %v1955 = vpop.f32.mrb[0].mxu0
        %1956 = vmatprep.mubr.bf16.mxu0 %v1186
        %1957 = vmatmul.mubr.bf16.gmra.mrb[0].mxu0 %v1185
        %v1958 = vpop.f32.mrb[0].mxu0
        %v1959 = vadd.f32 %v1670, %v1958
        %v1960 = vpop.f32.mrb[0].mxu0
        %v1961 = vpop.f32.mrb[0].mxu0
        %v1962 = vadd.f32 %v1673, %v1961
        %v1963 = vpop.f32.mrb[0].mxu0
        %1964 = vmatprep.mubr.bf16.mxu0 %v1190
        %1965 = vmatmul.mubr.bf16.gmra.mrb[0].mxu0 %v1189
        %v1966 = vpop.f32.mrb[0].mxu0
        %v1967 = vadd.f32 %v1678, %v1966
        %v1968 = vpop.f32.mrb[0].mxu0
        %v1969 = vpop.f32.mrb[0].mxu0
        %v1970 = vadd.f32 %v1681, %v1969
        %v1971 = vpop.f32.mrb[0].mxu0
        %1972 = vmatprep.mubr.bf16.mxu0 %v1194
        %1973 = vmatmul.mubr.bf16.gmra.mrb[0].mxu0 %v1193
        %v1974 = vpop.f32.mrb[0].mxu0
        %v1975 = vadd.f32 %v1686, %v1974
        %v1976 = vpop.f32.mrb[0].mxu0
        %v1977 = vpop.f32.mrb[0].mxu0
        %v1978 = vadd.f32 %v1689, %v1977
        %v1979 = vpop.f32.mrb[0].mxu0
        %1980 = vmatprep.mubr.bf16.mxu0 %v1198
        %1981 = vmatmul.mubr.bf16.gmra.mrb[0].mxu0 %v1197
        %v1982 = vpop.f32.mrb[0].mxu0
        %v1983 = vadd.f32 %v1694, %v1982
        %v1984 = vpop.f32.mrb[0].mxu0
        %v1985 = vpop.f32.mrb[0].mxu0
        %v1986 = vadd.f32 %v1697, %v1985
        %v1987 = vpop.f32.mrb[0].mxu0
        %1988 = vmatprep.mubr.bf16.mxu0 %v1202
        %1989 = vmatmul.mubr.bf16.gmra.mrb[0].mxu0 %v1201
        %v1990 = vpop.f32.mrb[0].mxu0
        %v1991 = vadd.f32 %v1702, %v1990
        %v1992 = vpop.f32.mrb[0].mxu0
        %v1993 = vpop.f32.mrb[0].mxu0
        %v1994 = vadd.f32 %v1705, %v1993
        %v1995 = vpop.f32.mrb[0].mxu0
        %1996 = vmatprep.mubr.bf16.mxu0 %v1206
        %1997 = vmatmul.mubr.bf16.gmra.mrb[0].mxu0 %v1205
        %v1998 = vpop.f32.mrb[0].mxu0
        %v1999 = vadd.f32 %v1710, %v1998
        %v2000 = vpop.f32.mrb[0].mxu0
        %v2001 = vpop.f32.mrb[0].mxu0
        %v2002 = vadd.f32 %v1713, %v2001
        %v2003 = vpop.f32.mrb[0].mxu0
        %2004 = vmatprep.mubr.bf16.mxu0 %v1210
        %2005 = vmatmul.mubr.bf16.gmra.mrb[0].mxu0 %v1209
        %v2006 = vpop.f32.mrb[0].mxu0
        %v2007 = vadd.f32 %v1718, %v2006
        %v2008 = vpop.f32.mrb[0].mxu0
        %v2009 = vpop.f32.mrb[0].mxu0
        %v2010 = vadd.f32 %v1721, %v2009
        %v2011 = vpop.f32.mrb[0].mxu0
        %2012 = vmatprep.mubr.bf16.mxu0 %v1214
        %2013 = vmatmul.mubr.bf16.gmra.mrb[0].mxu0 %v1213
        %v2014 = vpop.f32.mrb[0].mxu0
        %v2015 = vadd.f32 %v1726, %v2014
        %v2016 = vpop.f32.mrb[0].mxu0
        %v2017 = vpop.f32.mrb[0].mxu0
        %v2018 = vadd.f32 %v1729, %v2017
        %v2019 = vpop.f32.mrb[0].mxu0
        %2020 = vmatprep.mubr.bf16.mxu0 %v1218
        %2021 = vmatmul.mubr.bf16.gmra.mrb[0].mxu0 %v1217
        %v2022 = vpop.f32.mrb[0].mxu0
        %v2023 = vadd.f32 %v1734, %v2022
        %v2024 = vpop.f32.mrb[0].mxu0
        %v2025 = vpop.f32.mrb[0].mxu0
        %v2026 = vadd.f32 %v1737, %v2025
        %v2027 = vpop.f32.mrb[0].mxu0
        %2028 = vmatprep.mubr.bf16.mxu0 %v1222
        %2029 = vmatmul.mubr.bf16.gmra.mrb[0].mxu0 %v1221
        %v2030 = vpop.f32.mrb[0].mxu0
        %v2031 = vadd.f32 %v1742, %v2030
        %v2032 = vpop.f32.mrb[0].mxu0
        %v2033 = vpop.f32.mrb[0].mxu0
        %v2034 = vadd.f32 %v1745, %v2033
        %v2035 = vpop.f32.mrb[0].mxu0
        %2036 = vmatprep.mubr.bf16.mxu0 %v1226
        %2037 = vmatmul.mubr.bf16.gmra.mrb[0].mxu0 %v1225
        %v2038 = vpop.f32.mrb[0].mxu0
        %v2039 = vadd.f32 %v1750, %v2038
        %v2040 = vpop.f32.mrb[0].mxu0
        %v2041 = vpop.f32.mrb[0].mxu0
        %v2042 = vadd.f32 %v1753, %v2041
        %v2043 = vpop.f32.mrb[0].mxu0
        %2044 = vmatprep.mubr.bf16.mxu0 %v1230
        %2045 = vmatmul.mubr.bf16.gmra.mrb[0].mxu0 %v1229
        %v2046 = vpop.f32.mrb[0].mxu0
        %v2047 = vadd.f32 %v1758, %v2046
        %v2048 = vpop.f32.mrb[0].mxu0
        %v2049 = vpop.f32.mrb[0].mxu0
        %v2050 = vadd.f32 %v1761, %v2049
        %v2051 = vpop.f32.mrb[0].mxu0
        %2052 = vmatprep.mubr.bf16.mxu0 %v1234
        %2053 = vmatmul.mubr.bf16.gmra.mrb[0].mxu0 %v1233
        %v2054 = vpop.f32.mrb[0].mxu0
        %v2055 = vadd.f32 %v1766, %v2054
        %v2056 = vpop.f32.mrb[0].mxu0
        %v2057 = vpop.f32.mrb[0].mxu0
        %v2058 = vadd.f32 %v1769, %v2057
        %v2059 = vpop.f32.mrb[0].mxu0
        %2060 = vmatprep.mubr.bf16.mxu0 %v1238
        %2061 = vmatmul.mubr.bf16.gmra.mrb[0].mxu0 %v1237
        %v2062 = vpop.f32.mrb[0].mxu0
        %v2063 = vadd.f32 %v1774, %v2062
        %v2064 = vpop.f32.mrb[0].mxu0
        %v2065 = vpop.f32.mrb[0].mxu0
        %v2066 = vadd.f32 %v1777, %v2065
        %v2067 = vpop.f32.mrb[0].mxu0
        %2068 = vmatprep.mubr.bf16.mxu0 %v1242
        %2069 = vmatmul.mubr.bf16.gmra.mrb[0].mxu0 %v1241
        %v2070 = vpop.f32.mrb[0].mxu0
        %v2071 = vadd.f32 %v1782, %v2070
        %v2072 = vpop.f32.mrb[0].mxu0
        %v2073 = vpop.f32.mrb[0].mxu0
        %v2074 = vadd.f32 %v1785, %v2073
        %v2075 = vpop.f32.mrb[0].mxu0
        %2076 = vmatprep.mubr.bf16.mxu0 %v1246
        %2077 = vmatmul.mubr.bf16.gmra.mrb[0].mxu0 %v1245
        %v2078 = vpop.f32.mrb[0].mxu0
        %v2079 = vadd.f32 %v1790, %v2078
        %v2080 = vpop.f32.mrb[0].mxu0
        %v2081 = vpop.f32.mrb[0].mxu0
        %v2082 = vadd.f32 %v1793, %v2081
        %v2083 = vpop.f32.mrb[0].mxu0
        %2084 = vmatprep.mubr.bf16.mxu0 %v1250
        %2085 = vmatmul.mubr.bf16.gmra.mrb[0].mxu0 %v1249
        %v2086 = vpop.f32.mrb[0].mxu0
        %v2087 = vadd.f32 %v1798, %v2086
        %v2088 = vpop.f32.mrb[0].mxu0
        %v2089 = vpop.f32.mrb[0].mxu0
        %v2090 = vadd.f32 %v1801, %v2089
        %v2091 = vpop.f32.mrb[0].mxu0
        %2092 = vmatprep.mubr.bf16.mxu0 %v1254
        %2093 = vmatmul.mubr.bf16.gmra.mrb[0].mxu0 %v1253
        %v2094 = vpop.f32.mrb[0].mxu0
        %v2095 = vadd.f32 %v1806, %v2094
        %v2096 = vpop.f32.mrb[0].mxu0
        %v2097 = vpop.f32.mrb[0].mxu0
        %v2098 = vadd.f32 %v1809, %v2097
        %v2099 = vpop.f32.mrb[0].mxu0
        %2100 = vmatprep.mubr.bf16.mxu0 %v1258
        %2101 = vmatmul.mubr.bf16.gmra.mrb[0].mxu0 %v1257
        %v2102 = vpop.f32.mrb[0].mxu0
        %v2103 = vadd.f32 %v1814, %v2102
        %v2104 = vpop.f32.mrb[0].mxu0
        %v2105 = vpop.f32.mrb[0].mxu0
        %v2106 = vadd.f32 %v1817, %v2105
        %v2107 = vpop.f32.mrb[0].mxu0
        %2108 = vmatprep.mubr.bf16.mxu0 %v1262
        %2109 = vmatmul.mubr.bf16.gmra.mrb[0].mxu0 %v1261
        %v2110 = vpop.f32.mrb[0].mxu0
        %v2111 = vadd.f32 %v1822, %v2110
        %v2112 = vpop.f32.mrb[0].mxu0
        %v2113 = vpop.f32.mrb[0].mxu0
        %v2114 = vadd.f32 %v1825, %v2113
        %v2115 = vpop.f32.mrb[0].mxu0
        %2116 = vmatprep.mubr.bf16.mxu0 %v1266
        %2117 = vmatmul.mubr.bf16.gmra.mrb[0].mxu0 %v1265
        %v2118 = vpop.f32.mrb[0].mxu0
        %v2119 = vadd.f32 %v1830, %v2118
        %v2120 = vpop.f32.mrb[0].mxu0
        %v2121 = vpop.f32.mrb[0].mxu0
        %v2122 = vadd.f32 %v1833, %v2121
        %v2123 = vpop.f32.mrb[0].mxu0
        %2124 = vmatprep.mubr.bf16.mxu0 %v1270
        %2125 = vmatmul.mubr.bf16.gmra.mrb[0].mxu0 %v1269
        %v2126 = vpop.f32.mrb[0].mxu0
        %v2127 = vadd.f32 %v1838, %v2126
        %v2128 = vpop.f32.mrb[0].mxu0
        %v2129 = vpop.f32.mrb[0].mxu0
        %v2130 = vadd.f32 %v1841, %v2129
        %v2131 = vpop.f32.mrb[0].mxu0
        %2132 = vmatprep.mubr.bf16.mxu0 %v1274
        %2133 = vmatmul.mubr.bf16.gmra.mrb[0].mxu0 %v1273
        %v2134 = vpop.f32.mrb[0].mxu0
        %v2135 = vadd.f32 %v1846, %v2134
        %v2136 = vpop.f32.mrb[0].mxu0
        %v2137 = vpop.f32.mrb[0].mxu0
        %v2138 = vadd.f32 %v1849, %v2137
        %v2139 = vpop.f32.mrb[0].mxu0
        %2140 = vmatprep.mubr.bf16.mxu0 %v1278
        %2141 = vmatmul.mubr.bf16.gmra.mrb[0].mxu0 %v1277
        %v2142 = vpop.f32.mrb[0].mxu0
        %v2143 = vadd.f32 %v1854, %v2142
        %v2144 = vpop.f32.mrb[0].mxu0
        %v2145 = vpop.f32.mrb[0].mxu0
        %v2146 = vadd.f32 %v1857, %v2145
        %v2147 = vpop.f32.mrb[0].mxu0
        %2148 = vmatprep.mubr.bf16.mxu0 %v1282
        %2149 = vmatmul.mubr.bf16.gmra.mrb[0].mxu0 %v1281
        %v2150 = vpop.f32.mrb[0].mxu0
        %v2151 = vadd.f32 %v1862, %v2150
        %v2152 = vpop.f32.mrb[0].mxu0
        %v2153 = vpop.f32.mrb[0].mxu0
        %v2154 = vadd.f32 %v1865, %v2153
        %v2155 = vpop.f32.mrb[0].mxu0
        %2156 = vmatprep.mubr.bf16.mxu0 %v1286
        %2157 = vmatmul.mubr.bf16.gmra.mrb[0].mxu0 %v1285
        %v2158 = vpop.f32.mrb[0].mxu0
        %v2159 = vadd.f32 %v1870, %v2158
        %v2160 = vpop.f32.mrb[0].mxu0
        %v2161 = vpop.f32.mrb[0].mxu0
        %v2162 = vadd.f32 %v1873, %v2161
        %v2163 = vpop.f32.mrb[0].mxu0
        %2164 = vmatprep.mubr.bf16.mxu0 %v1290
        %2165 = vmatmul.mubr.bf16.gmra.mrb[0].mxu0 %v1289
        %v2166 = vpop.f32.mrb[0].mxu0
        %v2167 = vadd.f32 %v1878, %v2166
        %v2168 = vpop.f32.mrb[0].mxu0
        %v2169 = vpop.f32.mrb[0].mxu0
        %v2170 = vadd.f32 %v1881, %v2169
        %v2171 = vpop.f32.mrb[0].mxu0
        %2172 = vmatprep.mubr.bf16.mxu0 %v1294
        %2173 = vmatmul.mubr.bf16.gmra.mrb[0].mxu0 %v1293
        %v2174 = vpop.f32.mrb[0].mxu0
        %v2175 = vadd.f32 %v1886, %v2174
        %v2176 = vpop.f32.mrb[0].mxu0
        %v2177 = vpop.f32.mrb[0].mxu0
        %v2178 = vadd.f32 %v1889, %v2177
        %v2179 = vpop.f32.mrb[0].mxu0
        %2180 = vmatprep.mubr.bf16.mxu0 %v1298
        %2181 = vmatmul.mubr.bf16.gmra.mrb[0].mxu0 %v1297
        %v2182 = vpop.f32.mrb[0].mxu0
        %v2183 = vadd.f32 %v1894, %v2182
        %v2184 = vpop.f32.mrb[0].mxu0
        %v2185 = vpop.f32.mrb[0].mxu0
        %v2186 = vadd.f32 %v1897, %v2185
        %v2187 = vpop.f32.mrb[0].mxu0
        %2188 = vmatprep.mubr.bf16.mxu0 %v1302
        %2189 = vmatmul.mubr.bf16.gmra.mrb[0].mxu0 %v1301
        %v2190 = vpop.f32.mrb[0].mxu0
        %v2191 = vadd.f32 %v1902, %v2190
        %v2192 = vpop.f32.mrb[0].mxu0
        %v2193 = vpop.f32.mrb[0].mxu0
        %v2194 = vadd.f32 %v1905, %v2193
        %v2195 = vpop.f32.mrb[0].mxu0
        %2196 = vmatprep.mubr.bf16.mxu0 %v1306
        %2197 = vmatmul.mubr.bf16.gmra.mrb[0].mxu0 %v1305
        %v2198 = vpop.f32.mrb[0].mxu0
        %v2199 = vadd.f32 %v1910, %v2198
        %v2200 = vpop.f32.mrb[0].mxu0
        %v2201 = vpop.f32.mrb[0].mxu0
        %v2202 = vadd.f32 %v1913, %v2201
        %v2203 = vpop.f32.mrb[0].mxu0
        %2204 = vdwg.mxu0
        %v2205 = vadd.f32 %v603, %v1951
        %v2206 = vadd.f32 %v604, %v1954
        %v2207 = vadd.f32 %v605, %v1959
        %v2208 = vadd.f32 %v606, %v1962
        %v2209 = vadd.f32 %v607, %v1967
        %v2210 = vadd.f32 %v608, %v1970
        %v2211 = vadd.f32 %v609, %v1975
        %v2212 = vadd.f32 %v610, %v1978
        %v2213 = vadd.f32 %v611, %v1983
        %v2214 = vadd.f32 %v612, %v1986
        %v2215 = vadd.f32 %v613, %v1991
        %v2216 = vadd.f32 %v614, %v1994
        %v2217 = vadd.f32 %v615, %v1999
        %v2218 = vadd.f32 %v616, %v2002
        %v2219 = vadd.f32 %v617, %v2007
        %v2220 = vadd.f32 %v618, %v2010
        %v2221 = vadd.f32 %v619, %v2015
        %v2222 = vadd.f32 %v620, %v2018
        %v2223 = vadd.f32 %v621, %v2023
        %v2224 = vadd.f32 %v622, %v2026
        %v2225 = vadd.f32 %v623, %v2031
        %v2226 = vadd.f32 %v624, %v2034
        %v2227 = vadd.f32 %v625, %v2039
        %v2228 = vadd.f32 %v626, %v2042
        %v2229 = vadd.f32 %v627, %v2047
        %v2230 = vadd.f32 %v628, %v2050
        %v2231 = vadd.f32 %v629, %v2055
        %v2232 = vadd.f32 %v630, %v2058
        %v2233 = vadd.f32 %v631, %v2063
        %v2234 = vadd.f32 %v632, %v2066
        %v2235 = vadd.f32 %v633, %v2071
        %v2236 = vadd.f32 %v634, %v2074
        %v2237 = vadd.f32 %v635, %v2079
        %v2238 = vadd.f32 %v636, %v2082
        %v2239 = vadd.f32 %v637, %v2087
        %v2240 = vadd.f32 %v638, %v2090
        %v2241 = vadd.f32 %v639, %v2095
        %v2242 = vadd.f32 %v640, %v2098
        %v2243 = vadd.f32 %v641, %v2103
        %v2244 = vadd.f32 %v642, %v2106
        %v2245 = vadd.f32 %v643, %v2111
        %v2246 = vadd.f32 %v644, %v2114
        %v2247 = vadd.f32 %v645, %v2119
        %v2248 = vadd.f32 %v646, %v2122
        %v2249 = vadd.f32 %v647, %v2127
        %v2250 = vadd.f32 %v648, %v2130
        %v2251 = vadd.f32 %v649, %v2135
        %v2252 = vadd.f32 %v650, %v2138
        %v2253 = vadd.f32 %v651, %v2143
        %v2254 = vadd.f32 %v652, %v2146
        %v2255 = vadd.f32 %v653, %v2151
        %v2256 = vadd.f32 %v654, %v2154
        %v2257 = vadd.f32 %v655, %v2159
        %v2258 = vadd.f32 %v656, %v2162
        %v2259 = vadd.f32 %v657, %v2167
        %v2260 = vadd.f32 %v658, %v2170
        %v2261 = vadd.f32 %v659, %v2175
        %v2262 = vadd.f32 %v660, %v2178
        %v2263 = vadd.f32 %v661, %v2183
        %v2264 = vadd.f32 %v662, %v2186
        %v2265 = vadd.f32 %v663, %v2191
        %v2266 = vadd.f32 %v664, %v2194
        %v2267 = vadd.f32 %v665, %v2199
        %v2268 = vadd.f32 %v666, %v2202
        %2269 = vst [vmem:[%s463] sm:$0xff] %v2205
        %2270 = vst [vmem:[%s463 + $0x8] sm:$0xff] %v2206
        %2271 = vst [vmem:[%s463 + $0x10] sm:$0xff] %v2207
        %2272 = vst [vmem:[%s463 + $0x18] sm:$0xff] %v2208
        %2273 = vst [vmem:[%s463 + $0x20] sm:$0xff] %v2209
        %2274 = vst [vmem:[%s463 + $0x28] sm:$0xff] %v2210
        %2275 = vst [vmem:[%s463 + $0x30] sm:$0xff] %v2211
        %2276 = vst [vmem:[%s463 + $0x38] sm:$0xff] %v2212
        %2277 = vst [vmem:[%s463 + $0x40] sm:$0xff] %v2213
        %2278 = vst [vmem:[%s463 + $0x48] sm:$0xff] %v2214
        %2279 = vst [vmem:[%s463 + $0x50] sm:$0xff] %v2215
        %2280 = vst [vmem:[%s463 + $0x58] sm:$0xff] %v2216
        %2281 = vst [vmem:[%s463 + $0x60] sm:$0xff] %v2217
        %2282 = vst [vmem:[%s463 + $0x68] sm:$0xff] %v2218
        %2283 = vst [vmem:[%s463 + $0x70] sm:$0xff] %v2219
        %2284 = vst [vmem:[%s463 + $0x78] sm:$0xff] %v2220
        %2285 = vst [vmem:[%s463 + $0x80] sm:$0xff] %v2221
        %2286 = vst [vmem:[%s463 + $0x88] sm:$0xff] %v2222
        %2287 = vst [vmem:[%s463 + $0x90] sm:$0xff] %v2223
        %2288 = vst [vmem:[%s463 + $0x98] sm:$0xff] %v2224
        %2289 = vst [vmem:[%s463 + $0xa0] sm:$0xff] %v2225
        %2290 = vst [vmem:[%s463 + $0xa8] sm:$0xff] %v2226
        %2291 = vst [vmem:[%s463 + $0xb0] sm:$0xff] %v2227
        %2292 = vst [vmem:[%s463 + $0xb8] sm:$0xff] %v2228
        %2293 = vst [vmem:[%s463 + $0xc0] sm:$0xff] %v2229
        %2294 = vst [vmem:[%s463 + $0xc8] sm:$0xff] %v2230
        %2295 = vst [vmem:[%s463 + $0xd0] sm:$0xff] %v2231
        %2296 = vst [vmem:[%s463 + $0xd8] sm:$0xff] %v2232
        %2297 = vst [vmem:[%s463 + $0xe0] sm:$0xff] %v2233
        %2298 = vst [vmem:[%s463 + $0xe8] sm:$0xff] %v2234
        %2299 = vst [vmem:[%s463 + $0xf0] sm:$0xff] %v2235
        %2300 = vst [vmem:[%s463 + $0xf8] sm:$0xff] %v2236
        %2301 = vst [vmem:[%s463 + $0x100] sm:$0xff] %v2237
        %2302 = vst [vmem:[%s463 + $0x108] sm:$0xff] %v2238
        %2303 = vst [vmem:[%s463 + $0x110] sm:$0xff] %v2239
        %2304 = vst [vmem:[%s463 + $0x118] sm:$0xff] %v2240
        %2305 = vst [vmem:[%s463 + $0x120] sm:$0xff] %v2241
        %2306 = vst [vmem:[%s463 + $0x128] sm:$0xff] %v2242
        %2307 = vst [vmem:[%s463 + $0x130] sm:$0xff] %v2243
        %2308 = vst [vmem:[%s463 + $0x138] sm:$0xff] %v2244
        %2309 = vst [vmem:[%s463 + $0x140] sm:$0xff] %v2245
        %2310 = vst [vmem:[%s463 + $0x148] sm:$0xff] %v2246
        %2311 = vst [vmem:[%s463 + $0x150] sm:$0xff] %v2247
        %2312 = vst [vmem:[%s463 + $0x158] sm:$0xff] %v2248
        %2313 = vst [vmem:[%s463 + $0x160] sm:$0xff] %v2249
        %2314 = vst [vmem:[%s463 + $0x168] sm:$0xff] %v2250
        %2315 = vst [vmem:[%s463 + $0x170] sm:$0xff] %v2251
        %2316 = vst [vmem:[%s463 + $0x178] sm:$0xff] %v2252
        %2317 = vst [vmem:[%s463 + $0x180] sm:$0xff] %v2253
        %2318 = vst [vmem:[%s463 + $0x188] sm:$0xff] %v2254
        %2319 = vst [vmem:[%s463 + $0x190] sm:$0xff] %v2255
        %2320 = vst [vmem:[%s463 + $0x198] sm:$0xff] %v2256
        %2321 = vst [vmem:[%s463 + $0x1a0] sm:$0xff] %v2257
        %2322 = vst [vmem:[%s463 + $0x1a8] sm:$0xff] %v2258
        %2323 = vst [vmem:[%s463 + $0x1b0] sm:$0xff] %v2259
        %2324 = vst [vmem:[%s463 + $0x1b8] sm:$0xff] %v2260
        %2325 = vst [vmem:[%s463 + $0x1c0] sm:$0xff] %v2261
        %2326 = vst [vmem:[%s463 + $0x1c8] sm:$0xff] %v2262
        %2327 = vst [vmem:[%s463 + $0x1d0] sm:$0xff] %v2263
        %2328 = vst [vmem:[%s463 + $0x1d8] sm:$0xff] %v2264
        %2329 = vst [vmem:[%s463 + $0x1e0] sm:$0xff] %v2265
        %2330 = vst [vmem:[%s463 + $0x1e8] sm:$0xff] %v2266
        %2331 = vst [vmem:[%s463 + $0x1f0] sm:$0xff] %v2267
        %2332 = vst [vmem:[%s463 + $0x1f8] sm:$0xff] %v2268
        %p2333 = scmp.eq.s32.totalorder %s19, 1
        // Predicated region
        $region60: #{gcn_encoder.2} parent=50 // pred_check
          %p2334 = pneg %p2333
        $region61: #{gcn_encoder.2} parent=50 // pred_check_branch
          %2336 = sbr.rel (%p2334) target = $region63
        $region62: #{gcn_encoder.2} parent=50 // pred_region
          %v2337 = vld [vmem:[%s463] sm:$0xff]
          %v2338 = vld [vmem:[%s463 + $0x8] sm:$0xff]
          %v2339 = vld [vmem:[%s463 + $0x10] sm:$0xff]
          %v2340 = vld [vmem:[%s463 + $0x18] sm:$0xff]
          %v2341 = vld [vmem:[%s463 + $0x20] sm:$0xff]
          %v2342 = vld [vmem:[%s463 + $0x28] sm:$0xff]
          %v2343 = vld [vmem:[%s463 + $0x30] sm:$0xff]
          %v2344 = vld [vmem:[%s463 + $0x38] sm:$0xff]
          %v2345 = vld [vmem:[%s463 + $0x40] sm:$0xff]
          %v2346 = vld [vmem:[%s463 + $0x48] sm:$0xff]
          %v2347 = vld [vmem:[%s463 + $0x50] sm:$0xff]
          %v2348 = vld [vmem:[%s463 + $0x58] sm:$0xff]
          %v2349 = vld [vmem:[%s463 + $0x60] sm:$0xff]
          %v2350 = vld [vmem:[%s463 + $0x68] sm:$0xff]
          %v2351 = vld [vmem:[%s463 + $0x70] sm:$0xff]
          %v2352 = vld [vmem:[%s463 + $0x78] sm:$0xff]
          %v2353 = vld [vmem:[%s463 + $0x80] sm:$0xff]
          %v2354 = vld [vmem:[%s463 + $0x88] sm:$0xff]
          %v2355 = vld [vmem:[%s463 + $0x90] sm:$0xff]
          %v2356 = vld [vmem:[%s463 + $0x98] sm:$0xff]
          %v2357 = vld [vmem:[%s463 + $0xa0] sm:$0xff]
          %v2358 = vld [vmem:[%s463 + $0xa8] sm:$0xff]
          %v2359 = vld [vmem:[%s463 + $0xb0] sm:$0xff]
          %v2360 = vld [vmem:[%s463 + $0xb8] sm:$0xff]
          %v2361 = vld [vmem:[%s463 + $0xc0] sm:$0xff]
          %v2362 = vld [vmem:[%s463 + $0xc8] sm:$0xff]
          %v2363 = vld [vmem:[%s463 + $0xd0] sm:$0xff]
          %v2364 = vld [vmem:[%s463 + $0xd8] sm:$0xff]
          %v2365 = vld [vmem:[%s463 + $0xe0] sm:$0xff]
          %v2366 = vld [vmem:[%s463 + $0xe8] sm:$0xff]
          %v2367 = vld [vmem:[%s463 + $0xf0] sm:$0xff]
          %v2368 = vld [vmem:[%s463 + $0xf8] sm:$0xff]
          %v2369 = vld [vmem:[%s463 + $0x100] sm:$0xff]
          %v2370 = vld [vmem:[%s463 + $0x108] sm:$0xff]
          %v2371 = vld [vmem:[%s463 + $0x110] sm:$0xff]
          %v2372 = vld [vmem:[%s463 + $0x118] sm:$0xff]
          %v2373 = vld [vmem:[%s463 + $0x120] sm:$0xff]
          %v2374 = vld [vmem:[%s463 + $0x128] sm:$0xff]
          %v2375 = vld [vmem:[%s463 + $0x130] sm:$0xff]
          %v2376 = vld [vmem:[%s463 + $0x138] sm:$0xff]
          %v2377 = vld [vmem:[%s463 + $0x140] sm:$0xff]
          %v2378 = vld [vmem:[%s463 + $0x148] sm:$0xff]
          %v2379 = vld [vmem:[%s463 + $0x150] sm:$0xff]
          %v2380 = vld [vmem:[%s463 + $0x158] sm:$0xff]
          %v2381 = vld [vmem:[%s463 + $0x160] sm:$0xff]
          %v2382 = vld [vmem:[%s463 + $0x168] sm:$0xff]
          %v2383 = vld [vmem:[%s463 + $0x170] sm:$0xff]
          %v2384 = vld [vmem:[%s463 + $0x178] sm:$0xff]
          %v2385 = vld [vmem:[%s463 + $0x180] sm:$0xff]
          %v2386 = vld [vmem:[%s463 + $0x188] sm:$0xff]
          %v2387 = vld [vmem:[%s463 + $0x190] sm:$0xff]
          %v2388 = vld [vmem:[%s463 + $0x198] sm:$0xff]
          %v2389 = vld [vmem:[%s463 + $0x1a0] sm:$0xff]
          %v2390 = vld [vmem:[%s463 + $0x1a8] sm:$0xff]
          %v2391 = vld [vmem:[%s463 + $0x1b0] sm:$0xff]
          %v2392 = vld [vmem:[%s463 + $0x1b8] sm:$0xff]
          %v2393 = vld [vmem:[%s463 + $0x1c0] sm:$0xff]
          %v2394 = vld [vmem:[%s463 + $0x1c8] sm:$0xff]
          %v2395 = vld [vmem:[%s463 + $0x1d0] sm:$0xff]
          %v2396 = vld [vmem:[%s463 + $0x1d8] sm:$0xff]
          %v2397 = vld [vmem:[%s463 + $0x1e0] sm:$0xff]
          %v2398 = vld [vmem:[%s463 + $0x1e8] sm:$0xff]
          %v2399 = vld [vmem:[%s463 + $0x1f0] sm:$0xff]
          %v2400 = vld [vmem:[%s463 + $0x1f8] sm:$0xff]
          %v2401 = vld [vmem:[%s2] sm:$0x1]
          %v2403 = vlaneseq
          %v2404 = vshrl.u32 %v2403, 7
          %v2405 = vsub.s32 0, %v2404
          %v2406 = vrot.slane %v2401, %v2405
          %v2408 = vadd.f32 %v2337, %v2406
          %v2409 = vadd.f32 %v2338, %v2406
          %v2410 = vadd.f32 %v2339, %v2406
          %v2411 = vadd.f32 %v2340, %v2406
          %v2412 = vadd.f32 %v2341, %v2406
          %v2413 = vadd.f32 %v2342, %v2406
          %v2414 = vadd.f32 %v2343, %v2406
          %v2415 = vadd.f32 %v2344, %v2406
          %v2416 = vadd.f32 %v2345, %v2406
          %v2417 = vadd.f32 %v2346, %v2406
          %v2418 = vadd.f32 %v2347, %v2406
          %v2419 = vadd.f32 %v2348, %v2406
          %v2420 = vadd.f32 %v2349, %v2406
          %v2421 = vadd.f32 %v2350, %v2406
          %v2422 = vadd.f32 %v2351, %v2406
          %v2423 = vadd.f32 %v2352, %v2406
          %v2424 = vadd.f32 %v2353, %v2406
          %v2425 = vadd.f32 %v2354, %v2406
          %v2426 = vadd.f32 %v2355, %v2406
          %v2427 = vadd.f32 %v2356, %v2406
          %v2428 = vadd.f32 %v2357, %v2406
          %v2429 = vadd.f32 %v2358, %v2406
          %v2430 = vadd.f32 %v2359, %v2406
          %v2431 = vadd.f32 %v2360, %v2406
          %v2432 = vadd.f32 %v2361, %v2406
          %v2433 = vadd.f32 %v2362, %v2406
          %v2434 = vadd.f32 %v2363, %v2406
          %v2435 = vadd.f32 %v2364, %v2406
          %v2436 = vadd.f32 %v2365, %v2406
          %v2437 = vadd.f32 %v2366, %v2406
          %v2438 = vadd.f32 %v2367, %v2406
          %v2439 = vadd.f32 %v2368, %v2406
          %v2440 = vadd.f32 %v2369, %v2406
          %v2441 = vadd.f32 %v2370, %v2406
          %v2442 = vadd.f32 %v2371, %v2406
          %v2443 = vadd.f32 %v2372, %v2406
          %v2444 = vadd.f32 %v2373, %v2406
          %v2445 = vadd.f32 %v2374, %v2406
          %v2446 = vadd.f32 %v2375, %v2406
          %v2447 = vadd.f32 %v2376, %v2406
          %v2448 = vadd.f32 %v2377, %v2406
          %v2449 = vadd.f32 %v2378, %v2406
          %v2450 = vadd.f32 %v2379, %v2406
          %v2451 = vadd.f32 %v2380, %v2406
          %v2452 = vadd.f32 %v2381, %v2406
          %v2453 = vadd.f32 %v2382, %v2406
          %v2454 = vadd.f32 %v2383, %v2406
          %v2455 = vadd.f32 %v2384, %v2406
          %v2456 = vadd.f32 %v2385, %v2406
          %v2457 = vadd.f32 %v2386, %v2406
          %v2458 = vadd.f32 %v2387, %v2406
          %v2459 = vadd.f32 %v2388, %v2406
          %v2460 = vadd.f32 %v2389, %v2406
          %v2461 = vadd.f32 %v2390, %v2406
          %v2462 = vadd.f32 %v2391, %v2406
          %v2463 = vadd.f32 %v2392, %v2406
          %v2464 = vadd.f32 %v2393, %v2406
          %v2465 = vadd.f32 %v2394, %v2406
          %v2466 = vadd.f32 %v2395, %v2406
          %v2467 = vadd.f32 %v2396, %v2406
          %v2468 = vadd.f32 %v2397, %v2406
          %v2469 = vadd.f32 %v2398, %v2406
          %v2470 = vadd.f32 %v2399, %v2406
          %v2471 = vadd.f32 %v2400, %v2406
          %v2472 = vmax.f32 %v2408, 0.0
          %v2473 = vmax.f32 %v2409, 0.0
          %v2474 = vmax.f32 %v2410, 0.0
          %v2475 = vmax.f32 %v2411, 0.0
          %v2476 = vmax.f32 %v2412, 0.0
          %v2477 = vmax.f32 %v2413, 0.0
          %v2478 = vmax.f32 %v2414, 0.0
          %v2479 = vmax.f32 %v2415, 0.0
          %v2480 = vmax.f32 %v2416, 0.0
          %v2481 = vmax.f32 %v2417, 0.0
          %v2482 = vmax.f32 %v2418, 0.0
          %v2483 = vmax.f32 %v2419, 0.0
          %v2484 = vmax.f32 %v2420, 0.0
          %v2485 = vmax.f32 %v2421, 0.0
          %v2486 = vmax.f32 %v2422, 0.0
          %v2487 = vmax.f32 %v2423, 0.0
          %v2488 = vmax.f32 %v2424, 0.0
          %v2489 = vmax.f32 %v2425, 0.0
          %v2490 = vmax.f32 %v2426, 0.0
          %v2491 = vmax.f32 %v2427, 0.0
          %v2492 = vmax.f32 %v2428, 0.0
          %v2493 = vmax.f32 %v2429, 0.0
          %v2494 = vmax.f32 %v2430, 0.0
          %v2495 = vmax.f32 %v2431, 0.0
          %v2496 = vmax.f32 %v2432, 0.0
          %v2497 = vmax.f32 %v2433, 0.0
          %v2498 = vmax.f32 %v2434, 0.0
          %v2499 = vmax.f32 %v2435, 0.0
          %v2500 = vmax.f32 %v2436, 0.0
          %v2501 = vmax.f32 %v2437, 0.0
          %v2502 = vmax.f32 %v2438, 0.0
          %v2503 = vmax.f32 %v2439, 0.0
          %v2504 = vmax.f32 %v2440, 0.0
          %v2505 = vmax.f32 %v2441, 0.0
          %v2506 = vmax.f32 %v2442, 0.0
          %v2507 = vmax.f32 %v2443, 0.0
          %v2508 = vmax.f32 %v2444, 0.0
          %v2509 = vmax.f32 %v2445, 0.0
          %v2510 = vmax.f32 %v2446, 0.0
          %v2511 = vmax.f32 %v2447, 0.0
          %v2512 = vmax.f32 %v2448, 0.0
          %v2513 = vmax.f32 %v2449, 0.0
          %v2514 = vmax.f32 %v2450, 0.0
          %v2515 = vmax.f32 %v2451, 0.0
          %v2516 = vmax.f32 %v2452, 0.0
          %v2517 = vmax.f32 %v2453, 0.0
          %v2518 = vmax.f32 %v2454, 0.0
          %v2519 = vmax.f32 %v2455, 0.0
          %v2520 = vmax.f32 %v2456, 0.0
          %v2521 = vmax.f32 %v2457, 0.0
          %v2522 = vmax.f32 %v2458, 0.0
          %v2523 = vmax.f32 %v2459, 0.0
          %v2524 = vmax.f32 %v2460, 0.0
          %v2525 = vmax.f32 %v2461, 0.0
          %v2526 = vmax.f32 %v2462, 0.0
          %v2527 = vmax.f32 %v2463, 0.0
          %v2528 = vmax.f32 %v2464, 0.0
          %v2529 = vmax.f32 %v2465, 0.0
          %v2530 = vmax.f32 %v2466, 0.0
          %v2531 = vmax.f32 %v2467, 0.0
          %v2532 = vmax.f32 %v2468, 0.0
          %v2533 = vmax.f32 %v2469, 0.0
          %v2534 = vmax.f32 %v2470, 0.0
          %v2535 = vmax.f32 %v2471, 0.0
          %2536 = vst [vmem:[%s463] sm:$0xff] %v2472
          %2537 = vst [vmem:[%s463 + $0x8] sm:$0xff] %v2473
          %2538 = vst [vmem:[%s463 + $0x10] sm:$0xff] %v2474
          %2539 = vst [vmem:[%s463 + $0x18] sm:$0xff] %v2475
          %2540 = vst [vmem:[%s463 + $0x20] sm:$0xff] %v2476
          %2541 = vst [vmem:[%s463 + $0x28] sm:$0xff] %v2477
          %2542 = vst [vmem:[%s463 + $0x30] sm:$0xff] %v2478
          %2543 = vst [vmem:[%s463 + $0x38] sm:$0xff] %v2479
          %2544 = vst [vmem:[%s463 + $0x40] sm:$0xff] %v2480
          %2545 = vst [vmem:[%s463 + $0x48] sm:$0xff] %v2481
          %2546 = vst [vmem:[%s463 + $0x50] sm:$0xff] %v2482
          %2547 = vst [vmem:[%s463 + $0x58] sm:$0xff] %v2483
          %2548 = vst [vmem:[%s463 + $0x60] sm:$0xff] %v2484
          %2549 = vst [vmem:[%s463 + $0x68] sm:$0xff] %v2485
          %2550 = vst [vmem:[%s463 + $0x70] sm:$0xff] %v2486
          %2551 = vst [vmem:[%s463 + $0x78] sm:$0xff] %v2487
          %2552 = vst [vmem:[%s463 + $0x80] sm:$0xff] %v2488
          %2553 = vst [vmem:[%s463 + $0x88] sm:$0xff] %v2489
          %2554 = vst [vmem:[%s463 + $0x90] sm:$0xff] %v2490
          %2555 = vst [vmem:[%s463 + $0x98] sm:$0xff] %v2491
          %2556 = vst [vmem:[%s463 + $0xa0] sm:$0xff] %v2492
          %2557 = vst [vmem:[%s463 + $0xa8] sm:$0xff] %v2493
          %2558 = vst [vmem:[%s463 + $0xb0] sm:$0xff] %v2494
          %2559 = vst [vmem:[%s463 + $0xb8] sm:$0xff] %v2495
          %2560 = vst [vmem:[%s463 + $0xc0] sm:$0xff] %v2496
          %2561 = vst [vmem:[%s463 + $0xc8] sm:$0xff] %v2497
          %2562 = vst [vmem:[%s463 + $0xd0] sm:$0xff] %v2498
          %2563 = vst [vmem:[%s463 + $0xd8] sm:$0xff] %v2499
          %2564 = vst [vmem:[%s463 + $0xe0] sm:$0xff] %v2500
          %2565 = vst [vmem:[%s463 + $0xe8] sm:$0xff] %v2501
          %2566 = vst [vmem:[%s463 + $0xf0] sm:$0xff] %v2502
          %2567 = vst [vmem:[%s463 + $0xf8] sm:$0xff] %v2503
          %2568 = vst [vmem:[%s463 + $0x100] sm:$0xff] %v2504
          %2569 = vst [vmem:[%s463 + $0x108] sm:$0xff] %v2505
          %2570 = vst [vmem:[%s463 + $0x110] sm:$0xff] %v2506
          %2571 = vst [vmem:[%s463 + $0x118] sm:$0xff] %v2507
          %2572 = vst [vmem:[%s463 + $0x120] sm:$0xff] %v2508
          %2573 = vst [vmem:[%s463 + $0x128] sm:$0xff] %v2509
          %2574 = vst [vmem:[%s463 + $0x130] sm:$0xff] %v2510
          %2575 = vst [vmem:[%s463 + $0x138] sm:$0xff] %v2511
          %2576 = vst [vmem:[%s463 + $0x140] sm:$0xff] %v2512
          %2577 = vst [vmem:[%s463 + $0x148] sm:$0xff] %v2513
          %2578 = vst [vmem:[%s463 + $0x150] sm:$0xff] %v2514
          %2579 = vst [vmem:[%s463 + $0x158] sm:$0xff] %v2515
          %2580 = vst [vmem:[%s463 + $0x160] sm:$0xff] %v2516
          %2581 = vst [vmem:[%s463 + $0x168] sm:$0xff] %v2517
          %2582 = vst [vmem:[%s463 + $0x170] sm:$0xff] %v2518
          %2583 = vst [vmem:[%s463 + $0x178] sm:$0xff] %v2519
          %2584 = vst [vmem:[%s463 + $0x180] sm:$0xff] %v2520
          %2585 = vst [vmem:[%s463 + $0x188] sm:$0xff] %v2521
          %2586 = vst [vmem:[%s463 + $0x190] sm:$0xff] %v2522
          %2587 = vst [vmem:[%s463 + $0x198] sm:$0xff] %v2523
          %2588 = vst [vmem:[%s463 + $0x1a0] sm:$0xff] %v2524
          %2589 = vst [vmem:[%s463 + $0x1a8] sm:$0xff] %v2525
          %2590 = vst [vmem:[%s463 + $0x1b0] sm:$0xff] %v2526
          %2591 = vst [vmem:[%s463 + $0x1b8] sm:$0xff] %v2527
          %2592 = vst [vmem:[%s463 + $0x1c0] sm:$0xff] %v2528
          %2593 = vst [vmem:[%s463 + $0x1c8] sm:$0xff] %v2529
          %2594 = vst [vmem:[%s463 + $0x1d0] sm:$0xff] %v2530
          %2595 = vst [vmem:[%s463 + $0x1d8] sm:$0xff] %v2531
          %2596 = vst [vmem:[%s463 + $0x1e0] sm:$0xff] %v2532
          %2597 = vst [vmem:[%s463 + $0x1e8] sm:$0xff] %v2533
          %2598 = vst [vmem:[%s463 + $0x1f0] sm:$0xff] %v2534
          %2599 = vst [vmem:[%s463 + $0x1f8] sm:$0xff] %v2535
        $region63: #{gcn_encoder.2} parent=50 // pred_fallthru
          _
        %s2600 = smul.u32 64, %s18
        %p2601 = scmp.lt.s32.totalorder %s2600, 127
        %s2602 = scalar_select %p2601, %s2600, 127
        %s2603 = smul.addr %s2602, 8
        %s2604 = scalar_lea.vmem %s3, %s2603
        // Predicated region
        $region64: #{gcn_encoder.2} parent=50 // pred_check
          %p2605 = pneg %p114
        $region65: #{gcn_encoder.2} parent=50 // pred_check_branch
          %2607 = sbr.rel (%p2605) target = $region67
        $region66: #{gcn_encoder.2} parent=50 // pred_region
          %s2608 = smul.u32 64, %s18
        $region67: #{gcn_encoder.2} parent=50 // pred_fallthru
          _
      $region51: #{gcn_encoder.2} parent=5 // pred_fallthru
        _
      %p2609 = scmp.le.s32.totalorder 2, %s9
      // Predicated region
      $region68: #{gcn_encoder.2} parent=5 // pred_check
        %p2610 = pneg %p2609
      $region69: #{gcn_encoder.2} parent=5 // pred_check_branch
        %2612 = sbr.rel (%p2610) target = $region71
      $region70: #{gcn_encoder.2} parent=5 // pred_region
        %s2613 = ssub.s32 %s9, 2
        // Predicated region
        $region72: #{gcn_encoder.2} parent=70 // pred_check
          %p2614 = pneg %p120
        $region73: #{gcn_encoder.2} parent=70 // pred_check_branch
          %2616 = sbr.rel (%p2614) target = $region75
        $region74: #{gcn_encoder.2} parent=70 // pred_region
          %s2617 = smul.u32 64, %s20
          %p2618 = scmp.lt.s32.totalorder %s2617, 127
          %s2619 = scalar_select %p2618, %s2617, 127
          %s2620 = smul.addr %s2619, 8
          %s2621 = scalar_lea.vmem %s3, %s2620
        $region75: #{gcn_encoder.2} parent=70 // pred_fallthru
          _
      $region71: #{gcn_encoder.2} parent=5 // pred_fallthru
        _
    $region6: #{gcn_encoder.2} parent=1 // loop_footer
      %s13 = sadd.s32 1, %s9
    $region7: #{gcn_encoder.2} parent=1 // loop_footer_branch
      %8 = sbr.rel target = $region3
    $region8: #{gcn_encoder.2} parent=1 // loop_exit
      _

// kernel: gcn_encoder.3
$region0: #{gcn_encoder.3}
  #allocation0 [shape = 'u32[]', space=smem, size = 0x4, offset = 0x4, fixed_abs, tag = 'smem constant byte address 0x4 - core index']
  #allocation1 [shape = 'u32[144,128]{1,0:T(1,128)}', space=vmem, size = 0x12000, scoped, tag = 'internal scratch']
  %s0 = inlined_call_operand.vmem [shape: bf16[1024,1024], index: 0, kind: input, shape index: {}]
  %s1 = inlined_call_operand.vmem [shape: bf16[1024,128], index: 1, kind: input, shape index: {}]
  %s2 = inlined_call_operand.vmem [shape: f32[1,128], index: 2, kind: input, shape index: {}]
  %s3 = inlined_call_operand.vmem [shape: f32[1024,128], index: 3, kind: output, shape index: {}]
  %s4 = sld [smem:[#allocation0]]
  $region76: #{gcn_encoder.3} parent=0
    _
  %s6 = ssub.s32 1, %s4
  %s7 = scalar_select 0, %s6, %s4
  $region1: #{gcn_encoder.3} parent=0
    #allocation2 [shape = 'u8[1048576]{0}', space=vmem, size = 0x100000, scoped, tag = 'input window, operand 0']
    loop: start=0, step=1, limit=6
    $region2: #{gcn_encoder.3} parent=1 // loop_pre_header
      _
    $region3: #{gcn_encoder.3} parent=1 // loop_header
      %s9 = sphi 0, %s13
      %p10 = scmp.ge.s32.totalorder %s9, 6
      %s16 = sphi 0, %s28
      %s17 = sphi 0, %s24
      %s18 = sphi 0, %s16
      %s19 = sphi 0, %s17
      %s20 = sphi 0, %s18
      %s21 = sphi 0, %s19
      %s33 = sphi 0, %s35
      %s36 = sphi 0, %s33
      %s37 = sphi 0, %s36
      %s53 = sphi 0, %s37
      %s57 = sphi 0, %s57
      %s59 = sphi 0, %s57
      %s60 = sphi 0, %s59
      %s74 = sphi 0, %s60
      %s78 = sphi 0, %s78
      %s80 = sphi 0, %s78
      %s81 = sphi 0, %s80
      %s95 = sphi 0, %s81
      %s101 = sphi 0, %s103
      %s104 = sphi 0, %s101
      %s105 = sphi 0, %s104
      %s121 = sphi 0, %s105
    $region4: #{gcn_encoder.3} parent=1 // loop_header_branch
      %12 = sbr.rel (%p10) target = $region8
    $region5: #{gcn_encoder.3} parent=1 // loop_body
      %s14 = ssub.s32 %s9, 1
      %s15 = ssub.s32 %s9, 2
      %s22 = sadd.s32 1, %s17
      %p23 = scmp.ge.s32.totalorder %s22, 2
      %s24 = scalar_select %p23, 0, %s22
      %s25 = sadd.s32 1, %s16
      %s26 = scalar_select %p23, %s25, %s16
      %p27 = scmp.ge.s32.totalorder %s26, 2
      %s28 = scalar_select %p27, 0, %s26
      %s29 = ssub.s32 %s16, %s28
      %s30 = ssub.s32 %s17, %s24
      %s31 = sor.u32 %s29, %s30
      %p32 = scmp.eq.s32.totalorder %s31, 0
      %s34 = sadd.s32 %s33, 1
      %s35 = scalar_select %p32, %s33, %s34
      %p38 = pneg %p32
      %p39 = scmp.eq.s32.totalorder %s9, 3
      %p40 = por %p38, %p39
      %p41 = scmp.ne.s32.totalorder %s33, %s36
      %p42 = scmp.eq.s32.totalorder %s9, 0
      %p43 = por %p41, %p42
      %p44 = scmp.ne.s32.totalorder %s33, %s36
      %p45 = scmp.eq.s32.totalorder %s14, 3
      %p46 = por %p44, %p45
      %p47 = scmp.ne.s32.totalorder %s36, %s37
      %p48 = scmp.eq.s32.totalorder %s14, 0
      %p49 = por %p47, %p48
      %p50 = scmp.ne.s32.totalorder %s36, %s37
      %p51 = scmp.eq.s32.totalorder %s15, 3
      %p52 = por %p50, %p51
      %p54 = scmp.ne.s32.totalorder %s37, %s53
      %p55 = scmp.eq.s32.totalorder %s15, 0
      %p56 = por %p54, %p55
      %s58 = sadd.s32 %s57, 1
      %p61 = scmp.eq.s32.totalorder %s9, 3
      %p62 = scmp.ne.s32.totalorder %s57, %s59
      %p63 = scmp.eq.s32.totalorder %s9, 0
      %p64 = por %p62, %p63
      %p65 = scmp.ne.s32.totalorder %s57, %s59
      %p66 = scmp.eq.s32.totalorder %s14, 3
      %p67 = por %p65, %p66
      %p68 = scmp.ne.s32.totalorder %s59, %s60
      %p69 = scmp.eq.s32.totalorder %s14, 0
      %p70 = por %p68, %p69
      %p71 = scmp.ne.s32.totalorder %s59, %s60
      %p72 = scmp.eq.s32.totalorder %s15, 3
      %p73 = por %p71, %p72
      %p75 = scmp.ne.s32.totalorder %s60, %s74
      %p76 = scmp.eq.s32.totalorder %s15, 0
      %p77 = por %p75, %p76
      %s79 = sadd.s32 %s78, 1
      %p82 = scmp.eq.s32.totalorder %s9, 3
      %p83 = scmp.ne.s32.totalorder %s78, %s80
      %p84 = scmp.eq.s32.totalorder %s9, 0
      %p85 = por %p83, %p84
      %p86 = scmp.ne.s32.totalorder %s78, %s80
      %p87 = scmp.eq.s32.totalorder %s14, 3
      %p88 = por %p86, %p87
      %p89 = scmp.ne.s32.totalorder %s80, %s81
      %p90 = scmp.eq.s32.totalorder %s14, 0
      %p91 = por %p89, %p90
      %p92 = scmp.ne.s32.totalorder %s80, %s81
      %p93 = scmp.eq.s32.totalorder %s15, 3
      %p94 = por %p92, %p93
      %p96 = scmp.ne.s32.totalorder %s81, %s95
      %p97 = scmp.eq.s32.totalorder %s15, 0
      %p98 = por %p96, %p97
      %s99 = ssub.s32 %s16, %s28
      %p100 = scmp.eq.s32.totalorder %s99, 0
      %s102 = sadd.s32 %s101, 1
      %s103 = scalar_select %p100, %s101, %s102
      %p106 = pneg %p100
      %p107 = scmp.eq.s32.totalorder %s9, 3
      %p108 = por %p106, %p107
      %p109 = scmp.ne.s32.totalorder %s101, %s104
      %p110 = scmp.eq.s32.totalorder %s9, 0
      %p111 = por %p109, %p110
      %p112 = scmp.ne.s32.totalorder %s101, %s104
      %p113 = scmp.eq.s32.totalorder %s14, 3
      %p114 = por %p112, %p113
      %p115 = scmp.ne.s32.totalorder %s104, %s105
      %p116 = scmp.eq.s32.totalorder %s14, 0
      %p117 = por %p115, %p116
      %p118 = scmp.ne.s32.totalorder %s104, %s105
      %p119 = scmp.eq.s32.totalorder %s15, 3
      %p120 = por %p118, %p119
      %p122 = scmp.ne.s32.totalorder %s105, %s121
      %p123 = scmp.eq.s32.totalorder %s15, 0
      %p124 = por %p122, %p123
      %p125 = scmp.le.s32.totalorder 1, %s9
      %p126 = scmp.lt.s32.totalorder %s9, 5
      %p127 = pnand %p125, %p126
      %p128 = pneg %p127
      // Predicated region
      $region9: #{gcn_encoder.3} parent=5 // pred_check
        _
      $region10: #{gcn_encoder.3} parent=5 // pred_check_branch
        %130 = sbr.rel (%p127) target = $region12
      $region11: #{gcn_encoder.3} parent=5 // pred_region
        %s131 = ssub.s32 %s9, 1
        // Predicated region
        $region13: #{gcn_encoder.3} parent=11 // pred_check
          %p132 = pneg %p70
        $region14: #{gcn_encoder.3} parent=11 // pred_check_branch
          %134 = sbr.rel (%p132) target = $region16
        $region15: #{gcn_encoder.3} parent=11 // pred_region
          _
        $region16: #{gcn_encoder.3} parent=11 // pred_fallthru
          _
        // Predicated region
        $region17: #{gcn_encoder.3} parent=11 // pred_check
          %p135 = pneg %p91
        $region18: #{gcn_encoder.3} parent=11 // pred_check_branch
          %137 = sbr.rel (%p135) target = $region20
        $region19: #{gcn_encoder.3} parent=11 // pred_region
          _
        $region20: #{gcn_encoder.3} parent=11 // pred_fallthru
          _
      $region12: #{gcn_encoder.3} parent=5 // pred_fallthru
        _
      %p138 = scmp.lt.s32.totalorder %s9, 4
      // Predicated region
      $region21: #{gcn_encoder.3} parent=5 // pred_check
        %p139 = pneg %p138
      $region22: #{gcn_encoder.3} parent=5 // pred_check_branch
        %141 = sbr.rel (%p139) target = $region24
      $region23: #{gcn_encoder.3} parent=5 // pred_region
        // Predicated region
        $region25: #{gcn_encoder.3} parent=23 // pred_check
          %p142 = pneg %p43
        $region26: #{gcn_encoder.3} parent=23 // pred_check_branch
          %144 = sbr.rel (%p142) target = $region28
        $region27: #{gcn_encoder.3} parent=23 // pred_region
          %s145 = sand.u32 %s33, 1
          %s146 = sand.u32 %s33, 1
          %s147 = smul.addr %s146, 1024
          %s148 = scalar_lea.vmem [#allocation2], %s147
          %s149 = smul.u32 64, %s16
          %s150 = smul.u32 4, %s17
          %s151 = smul.addr %s149, 8
          %s152 = sadd.s32 %s150, %s151
          %s153 = smul.addr %s152, 4
          %s154 = scalar_lea.vmem %s0, %s153
          // Predicated region
          $region29: #{gcn_encoder.3} parent=27 // pred_check
            _
          $region30: #{gcn_encoder.3} parent=27 // pred_check_branch
            %156 = sbr.rel (0) target = $region32
          $region31: #{gcn_encoder.3} parent=27 // pred_region
            // Predicated region
            $region33: #{gcn_encoder.3} parent=31 // pred_check
              _
            $region34: #{gcn_encoder.3} parent=31 // pred_check_branch
              %158 = sbr.rel (0) target = $region36
            $region35: #{gcn_encoder.3} parent=31 // pred_region
              loop: start=0, step=1, limit=1
              $region37: #{gcn_encoder.3} parent=35 // loop_pre_header
                _
              $region38: #{gcn_encoder.3} parent=35 // loop_header
                %s160 = sphi 0, %s164
                %p161 = scmp.ge.s32.totalorder %s160, 1
                %s165 = sphi %s154, %s154
                %s166 = sphi %s148, %s148
              $region39: #{gcn_encoder.3} parent=35 // loop_header_branch
                %163 = sbr.rel (%p161) target = $region43
              $region40: #{gcn_encoder.3} parent=35 // loop_body
                %v167 = vld [vmem:[%s165] sm:$0xff]
                %168 = vst [vmem:[%s166] sm:$0xff] %v167
                %v169 = vld [vmem:[%s165 + $0x8] sm:$0xff]
                %170 = vst [vmem:[%s166 + $0x8] sm:$0xff] %v169
                %v171 = vld [vmem:[%s165 + $0x20] sm:$0xff]
                %172 = vst [vmem:[%s166 + $0x10] sm:$0xff] %v171
                %v173 = vld [vmem:[%s165 + $0x28] sm:$0xff]
                %174 = vst [vmem:[%s166 + $0x18] sm:$0xff] %v173
                %v175 = vld [vmem:[%s165 + $0x40] sm:$0xff]
                %176 = vst [vmem:[%s166 + $0x20] sm:$0xff] %v175
                %v177 = vld [vmem:[%s165 + $0x48] sm:$0xff]
                %178 = vst [vmem:[%s166 + $0x28] sm:$0xff] %v177
                %v179 = vld [vmem:[%s165 + $0x60] sm:$0xff]
                %180 = vst [vmem:[%s166 + $0x30] sm:$0xff] %v179
                %v181 = vld [vmem:[%s165 + $0x68] sm:$0xff]
                %182 = vst [vmem:[%s166 + $0x38] sm:$0xff] %v181
                %v183 = vld [vmem:[%s165 + $0x80] sm:$0xff]
                %184 = vst [vmem:[%s166 + $0x40] sm:$0xff] %v183
                %v185 = vld [vmem:[%s165 + $0x88] sm:$0xff]
                %186 = vst [vmem:[%s166 + $0x48] sm:$0xff] %v185
                %v187 = vld [vmem:[%s165 + $0xa0] sm:$0xff]
                %188 = vst [vmem:[%s166 + $0x50] sm:$0xff] %v187
                %v189 = vld [vmem:[%s165 + $0xa8] sm:$0xff]
                %190 = vst [vmem:[%s166 + $0x58] sm:$0xff] %v189
                %v191 = vld [vmem:[%s165 + $0xc0] sm:$0xff]
                %192 = vst [vmem:[%s166 + $0x60] sm:$0xff] %v191
                %v193 = vld [vmem:[%s165 + $0xc8] sm:$0xff]
                %194 = vst [vmem:[%s166 + $0x68] sm:$0xff] %v193
                %v195 = vld [vmem:[%s165 + $0xe0] sm:$0xff]
                %196 = vst [vmem:[%s166 + $0x70] sm:$0xff] %v195
                %v197 = vld [vmem:[%s165 + $0xe8] sm:$0xff]
                %198 = vst [vmem:[%s166 + $0x78] sm:$0xff] %v197
                %v199 = vld [vmem:[%s165 + $0x100] sm:$0xff]
                %200 = vst [vmem:[%s166 + $0x80] sm:$0xff] %v199
                %v201 = vld [vmem:[%s165 + $0x108] sm:$0xff]
                %202 = vst [vmem:[%s166 + $0x88] sm:$0xff] %v201
                %v203 = vld [vmem:[%s165 + $0x120] sm:$0xff]
                %204 = vst [vmem:[%s166 + $0x90] sm:$0xff] %v203
                %v205 = vld [vmem:[%s165 + $0x128] sm:$0xff]
                %206 = vst [vmem:[%s166 + $0x98] sm:$0xff] %v205
                %v207 = vld [vmem:[%s165 + $0x140] sm:$0xff]
                %208 = vst [vmem:[%s166 + $0xa0] sm:$0xff] %v207
                %v209 = vld [vmem:[%s165 + $0x148] sm:$0xff]
                %210 = vst [vmem:[%s166 + $0xa8] sm:$0xff] %v209
                %v211 = vld [vmem:[%s165 + $0x160] sm:$0xff]
                %212 = vst [vmem:[%s166 + $0xb0] sm:$0xff] %v211
                %v213 = vld [vmem:[%s165 + $0x168] sm:$0xff]
                %214 = vst [vmem:[%s166 + $0xb8] sm:$0xff] %v213
                %v215 = vld [vmem:[%s165 + $0x180] sm:$0xff]
                %216 = vst [vmem:[%s166 + $0xc0] sm:$0xff] %v215
                %v217 = vld [vmem:[%s165 + $0x188] sm:$0xff]
                %218 = vst [vmem:[%s166 + $0xc8] sm:$0xff] %v217
                %v219 = vld [vmem:[%s165 + $0x1a0] sm:$0xff]
                %220 = vst [vmem:[%s166 + $0xd0] sm:$0xff] %v219
                %v221 = vld [vmem:[%s165 + $0x1a8] sm:$0xff]
                %222 = vst [vmem:[%s166 + $0xd8] sm:$0xff] %v221
                %v223 = vld [vmem:[%s165 + $0x1c0] sm:$0xff]
                %224 = vst [vmem:[%s166 + $0xe0] sm:$0xff] %v223
                %v225 = vld [vmem:[%s165 + $0x1c8] sm:$0xff]
                %226 = vst [vmem:[%s166 + $0xe8] sm:$0xff] %v225
                %v227 = vld [vmem:[%s165 + $0x1e0] sm:$0xff]
                %228 = vst [vmem:[%s166 + $0xf0] sm:$0xff] %v227
                %v229 = vld [vmem:[%s165 + $0x1e8] sm:$0xff]
                %230 = vst [vmem:[%s166 + $0xf8] sm:$0xff] %v229
                %v231 = vld [vmem:[%s165 + $0x200] sm:$0xff]
                %232 = vst [vmem:[%s166 + $0x100] sm:$0xff] %v231
                %v233 = vld [vmem:[%s165 + $0x208] sm:$0xff]
                %234 = vst [vmem:[%s166 + $0x108] sm:$0xff] %v233
                %v235 = vld [vmem:[%s165 + $0x220] sm:$0xff]
                %236 = vst [vmem:[%s166 + $0x110] sm:$0xff] %v235
                %v237 = vld [vmem:[%s165 + $0x228] sm:$0xff]
                %238 = vst [vmem:[%s166 + $0x118] sm:$0xff] %v237
                %v239 = vld [vmem:[%s165 + $0x240] sm:$0xff]
                %240 = vst [vmem:[%s166 + $0x120] sm:$0xff] %v239
                %v241 = vld [vmem:[%s165 + $0x248] sm:$0xff]
                %242 = vst [vmem:[%s166 + $0x128] sm:$0xff] %v241
                %v243 = vld [vmem:[%s165 + $0x260] sm:$0xff]
                %244 = vst [vmem:[%s166 + $0x130] sm:$0xff] %v243
                %v245 = vld [vmem:[%s165 + $0x268] sm:$0xff]
                %246 = vst [vmem:[%s166 + $0x138] sm:$0xff] %v245
                %v247 = vld [vmem:[%s165 + $0x280] sm:$0xff]
                %248 = vst [vmem:[%s166 + $0x140] sm:$0xff] %v247
                %v249 = vld [vmem:[%s165 + $0x288] sm:$0xff]
                %250 = vst [vmem:[%s166 + $0x148] sm:$0xff] %v249
                %v251 = vld [vmem:[%s165 + $0x2a0] sm:$0xff]
                %252 = vst [vmem:[%s166 + $0x150] sm:$0xff] %v251
                %v253 = vld [vmem:[%s165 + $0x2a8] sm:$0xff]
                %254 = vst [vmem:[%s166 + $0x158] sm:$0xff] %v253
                %v255 = vld [vmem:[%s165 + $0x2c0] sm:$0xff]
                %256 = vst [vmem:[%s166 + $0x160] sm:$0xff] %v255
                %v257 = vld [vmem:[%s165 + $0x2c8] sm:$0xff]
                %258 = vst [vmem:[%s166 + $0x168] sm:$0xff] %v257
                %v259 = vld [vmem:[%s165 + $0x2e0] sm:$0xff]
                %260 = vst [vmem:[%s166 + $0x170] sm:$0xff] %v259
                %v261 = vld [vmem:[%s165 + $0x2e8] sm:$0xff]
                %262 = vst [vmem:[%s166 + $0x178] sm:$0xff] %v261
                %v263 = vld [vmem:[%s165 + $0x300] sm:$0xff]
                %264 = vst [vmem:[%s166 + $0x180] sm:$0xff] %v263
                %v265 = vld [vmem:[%s165 + $0x308] sm:$0xff]
                %266 = vst [vmem:[%s166 + $0x188] sm:$0xff] %v265
                %v267 = vld [vmem:[%s165 + $0x320] sm:$0xff]
                %268 = vst [vmem:[%s166 + $0x190] sm:$0xff] %v267
                %v269 = vld [vmem:[%s165 + $0x328] sm:$0xff]
                %270 = vst [vmem:[%s166 + $0x198] sm:$0xff] %v269
                %v271 = vld [vmem:[%s165 + $0x340] sm:$0xff]
                %272 = vst [vmem:[%s166 + $0x1a0] sm:$0xff] %v271
                %v273 = vld [vmem:[%s165 + $0x348] sm:$0xff]
                %274 = vst [vmem:[%s166 + $0x1a8] sm:$0xff] %v273
                %v275 = vld [vmem:[%s165 + $0x360] sm:$0xff]
                %276 = vst [vmem:[%s166 + $0x1b0] sm:$0xff] %v275
                %v277 = vld [vmem:[%s165 + $0x368] sm:$0xff]
                %278 = vst [vmem:[%s166 + $0x1b8] sm:$0xff] %v277
                %v279 = vld [vmem:[%s165 + $0x380] sm:$0xff]
                %280 = vst [vmem:[%s166 + $0x1c0] sm:$0xff] %v279
                %v281 = vld [vmem:[%s165 + $0x388] sm:$0xff]
                %282 = vst [vmem:[%s166 + $0x1c8] sm:$0xff] %v281
                %v283 = vld [vmem:[%s165 + $0x3a0] sm:$0xff]
                %284 = vst [vmem:[%s166 + $0x1d0] sm:$0xff] %v283
                %v285 = vld [vmem:[%s165 + $0x3a8] sm:$0xff]
                %286 = vst [vmem:[%s166 + $0x1d8] sm:$0xff] %v285
                %v287 = vld [vmem:[%s165 + $0x3c0] sm:$0xff]
                %288 = vst [vmem:[%s166 + $0x1e0] sm:$0xff] %v287
                %v289 = vld [vmem:[%s165 + $0x3c8] sm:$0xff]
                %290 = vst [vmem:[%s166 + $0x1e8] sm:$0xff] %v289
                %v291 = vld [vmem:[%s165 + $0x3e0] sm:$0xff]
                %292 = vst [vmem:[%s166 + $0x1f0] sm:$0xff] %v291
                %v293 = vld [vmem:[%s165 + $0x3e8] sm:$0xff]
                %294 = vst [vmem:[%s166 + $0x1f8] sm:$0xff] %v293
                %v295 = vld [vmem:[%s165 + $0x400] sm:$0xff]
                %296 = vst [vmem:[%s166 + $0x200] sm:$0xff] %v295
                %v297 = vld [vmem:[%s165 + $0x408] sm:$0xff]
                %298 = vst [vmem:[%s166 + $0x208] sm:$0xff] %v297
                %v299 = vld [vmem:[%s165 + $0x420] sm:$0xff]
                %300 = vst [vmem:[%s166 + $0x210] sm:$0xff] %v299
                %v301 = vld [vmem:[%s165 + $0x428] sm:$0xff]
                %302 = vst [vmem:[%s166 + $0x218] sm:$0xff] %v301
                %v303 = vld [vmem:[%s165 + $0x440] sm:$0xff]
                %304 = vst [vmem:[%s166 + $0x220] sm:$0xff] %v303
                %v305 = vld [vmem:[%s165 + $0x448] sm:$0xff]
                %306 = vst [vmem:[%s166 + $0x228] sm:$0xff] %v305
                %v307 = vld [vmem:[%s165 + $0x460] sm:$0xff]
                %308 = vst [vmem:[%s166 + $0x230] sm:$0xff] %v307
                %v309 = vld [vmem:[%s165 + $0x468] sm:$0xff]
                %310 = vst [vmem:[%s166 + $0x238] sm:$0xff] %v309
                %v311 = vld [vmem:[%s165 + $0x480] sm:$0xff]
                %312 = vst [vmem:[%s166 + $0x240] sm:$0xff] %v311
                %v313 = vld [vmem:[%s165 + $0x488] sm:$0xff]
                %314 = vst [vmem:[%s166 + $0x248] sm:$0xff] %v313
                %v315 = vld [vmem:[%s165 + $0x4a0] sm:$0xff]
                %316 = vst [vmem:[%s166 + $0x250] sm:$0xff] %v315
                %v317 = vld [vmem:[%s165 + $0x4a8] sm:$0xff]
                %318 = vst [vmem:[%s166 + $0x258] sm:$0xff] %v317
                %v319 = vld [vmem:[%s165 + $0x4c0] sm:$0xff]
                %320 = vst [vmem:[%s166 + $0x260] sm:$0xff] %v319
                %v321 = vld [vmem:[%s165 + $0x4c8] sm:$0xff]
                %322 = vst [vmem:[%s166 + $0x268] sm:$0xff] %v321
                %v323 = vld [vmem:[%s165 + $0x4e0] sm:$0xff]
                %324 = vst [vmem:[%s166 + $0x270] sm:$0xff] %v323
                %v325 = vld [vmem:[%s165 + $0x4e8] sm:$0xff]
                %326 = vst [vmem:[%s166 + $0x278] sm:$0xff] %v325
                %v327 = vld [vmem:[%s165 + $0x500] sm:$0xff]
                %328 = vst [vmem:[%s166 + $0x280] sm:$0xff] %v327
                %v329 = vld [vmem:[%s165 + $0x508] sm:$0xff]
                %330 = vst [vmem:[%s166 + $0x288] sm:$0xff] %v329
                %v331 = vld [vmem:[%s165 + $0x520] sm:$0xff]
                %332 = vst [vmem:[%s166 + $0x290] sm:$0xff] %v331
                %v333 = vld [vmem:[%s165 + $0x528] sm:$0xff]
                %334 = vst [vmem:[%s166 + $0x298] sm:$0xff] %v333
                %v335 = vld [vmem:[%s165 + $0x540] sm:$0xff]
                %336 = vst [vmem:[%s166 + $0x2a0] sm:$0xff] %v335
                %v337 = vld [vmem:[%s165 + $0x548] sm:$0xff]
                %338 = vst [vmem:[%s166 + $0x2a8] sm:$0xff] %v337
                %v339 = vld [vmem:[%s165 + $0x560] sm:$0xff]
                %340 = vst [vmem:[%s166 + $0x2b0] sm:$0xff] %v339
                %v341 = vld [vmem:[%s165 + $0x568] sm:$0xff]
                %342 = vst [vmem:[%s166 + $0x2b8] sm:$0xff] %v341
                %v343 = vld [vmem:[%s165 + $0x580] sm:$0xff]
                %344 = vst [vmem:[%s166 + $0x2c0] sm:$0xff] %v343
                %v345 = vld [vmem:[%s165 + $0x588] sm:$0xff]
                %346 = vst [vmem:[%s166 + $0x2c8] sm:$0xff] %v345
                %v347 = vld [vmem:[%s165 + $0x5a0] sm:$0xff]
                %348 = vst [vmem:[%s166 + $0x2d0] sm:$0xff] %v347
                %v349 = vld [vmem:[%s165 + $0x5a8] sm:$0xff]
                %350 = vst [vmem:[%s166 + $0x2d8] sm:$0xff] %v349
                %v351 = vld [vmem:[%s165 + $0x5c0] sm:$0xff]
                %352 = vst [vmem:[%s166 + $0x2e0] sm:$0xff] %v351
                %v353 = vld [vmem:[%s165 + $0x5c8] sm:$0xff]
                %354 = vst [vmem:[%s166 + $0x2e8] sm:$0xff] %v353
                %v355 = vld [vmem:[%s165 + $0x5e0] sm:$0xff]
                %356 = vst [vmem:[%s166 + $0x2f0] sm:$0xff] %v355
                %v357 = vld [vmem:[%s165 + $0x5e8] sm:$0xff]
                %358 = vst [vmem:[%s166 + $0x2f8] sm:$0xff] %v357
                %v359 = vld [vmem:[%s165 + $0x600] sm:$0xff]
                %360 = vst [vmem:[%s166 + $0x300] sm:$0xff] %v359
                %v361 = vld [vmem:[%s165 + $0x608] sm:$0xff]
                %362 = vst [vmem:[%s166 + $0x308] sm:$0xff] %v361
                %v363 = vld [vmem:[%s165 + $0x620] sm:$0xff]
                %364 = vst [vmem:[%s166 + $0x310] sm:$0xff] %v363
                %v365 = vld [vmem:[%s165 + $0x628] sm:$0xff]
                %366 = vst [vmem:[%s166 + $0x318] sm:$0xff] %v365
                %v367 = vld [vmem:[%s165 + $0x640] sm:$0xff]
                %368 = vst [vmem:[%s166 + $0x320] sm:$0xff] %v367
                %v369 = vld [vmem:[%s165 + $0x648] sm:$0xff]
                %370 = vst [vmem:[%s166 + $0x328] sm:$0xff] %v369
                %v371 = vld [vmem:[%s165 + $0x660] sm:$0xff]
                %372 = vst [vmem:[%s166 + $0x330] sm:$0xff] %v371
                %v373 = vld [vmem:[%s165 + $0x668] sm:$0xff]
                %374 = vst [vmem:[%s166 + $0x338] sm:$0xff] %v373
                %v375 = vld [vmem:[%s165 + $0x680] sm:$0xff]
                %376 = vst [vmem:[%s166 + $0x340] sm:$0xff] %v375
                %v377 = vld [vmem:[%s165 + $0x688] sm:$0xff]
                %378 = vst [vmem:[%s166 + $0x348] sm:$0xff] %v377
                %v379 = vld [vmem:[%s165 + $0x6a0] sm:$0xff]
                %380 = vst [vmem:[%s166 + $0x350] sm:$0xff] %v379
                %v381 = vld [vmem:[%s165 + $0x6a8] sm:$0xff]
                %382 = vst [vmem:[%s166 + $0x358] sm:$0xff] %v381
                %v383 = vld [vmem:[%s165 + $0x6c0] sm:$0xff]
                %384 = vst [vmem:[%s166 + $0x360] sm:$0xff] %v383
                %v385 = vld [vmem:[%s165 + $0x6c8] sm:$0xff]
                %386 = vst [vmem:[%s166 + $0x368] sm:$0xff] %v385
                %v387 = vld [vmem:[%s165 + $0x6e0] sm:$0xff]
                %388 = vst [vmem:[%s166 + $0x370] sm:$0xff] %v387
                %v389 = vld [vmem:[%s165 + $0x6e8] sm:$0xff]
                %390 = vst [vmem:[%s166 + $0x378] sm:$0xff] %v389
                %v391 = vld [vmem:[%s165 + $0x700] sm:$0xff]
                %392 = vst [vmem:[%s166 + $0x380] sm:$0xff] %v391
                %v393 = vld [vmem:[%s165 + $0x708] sm:$0xff]
                %394 = vst [vmem:[%s166 + $0x388] sm:$0xff] %v393
                %v395 = vld [vmem:[%s165 + $0x720] sm:$0xff]
                %396 = vst [vmem:[%s166 + $0x390] sm:$0xff] %v395
                %v397 = vld [vmem:[%s165 + $0x728] sm:$0xff]
                %398 = vst [vmem:[%s166 + $0x398] sm:$0xff] %v397
                %v399 = vld [vmem:[%s165 + $0x740] sm:$0xff]
                %400 = vst [vmem:[%s166 + $0x3a0] sm:$0xff] %v399
                %v401 = vld [vmem:[%s165 + $0x748] sm:$0xff]
                %402 = vst [vmem:[%s166 + $0x3a8] sm:$0xff] %v401
                %v403 = vld [vmem:[%s165 + $0x760] sm:$0xff]
                %404 = vst [vmem:[%s166 + $0x3b0] sm:$0xff] %v403
                %v405 = vld [vmem:[%s165 + $0x768] sm:$0xff]
                %406 = vst [vmem:[%s166 + $0x3b8] sm:$0xff] %v405
                %v407 = vld [vmem:[%s165 + $0x780] sm:$0xff]
                %408 = vst [vmem:[%s166 + $0x3c0] sm:$0xff] %v407
                %v409 = vld [vmem:[%s165 + $0x788] sm:$0xff]
                %410 = vst [vmem:[%s166 + $0x3c8] sm:$0xff] %v409
                %v411 = vld [vmem:[%s165 + $0x7a0] sm:$0xff]
                %412 = vst [vmem:[%s166 + $0x3d0] sm:$0xff] %v411
                %v413 = vld [vmem:[%s165 + $0x7a8] sm:$0xff]
                %414 = vst [vmem:[%s166 + $0x3d8] sm:$0xff] %v413
                %v415 = vld [vmem:[%s165 + $0x7c0] sm:$0xff]
                %416 = vst [vmem:[%s166 + $0x3e0] sm:$0xff] %v415
                %v417 = vld [vmem:[%s165 + $0x7c8] sm:$0xff]
                %418 = vst [vmem:[%s166 + $0x3e8] sm:$0xff] %v417
                %v419 = vld [vmem:[%s165 + $0x7e0] sm:$0xff]
                %420 = vst [vmem:[%s166 + $0x3f0] sm:$0xff] %v419
                %v421 = vld [vmem:[%s165 + $0x7e8] sm:$0xff]
                %422 = vst [vmem:[%s166 + $0x3f8] sm:$0xff] %v421
              $region41: #{gcn_encoder.3} parent=35 // loop_footer
                %s164 = sadd.s32 1, %s160
              $region42: #{gcn_encoder.3} parent=35 // loop_footer_branch
                %159 = sbr.rel target = $region38
              $region43: #{gcn_encoder.3} parent=35 // loop_exit
                _
            $region36: #{gcn_encoder.3} parent=31 // pred_fallthru
              _
            // Predicated region
            $region44: #{gcn_encoder.3} parent=31 // pred_check
              _
            $region45: #{gcn_encoder.3} parent=31 // pred_check_branch
              %424 = sbr.rel target = $region47
            $region46: #{gcn_encoder.3} parent=31 // pred_region
              _
            $region47: #{gcn_encoder.3} parent=31 // pred_fallthru
              _
          $region32: #{gcn_encoder.3} parent=27 // pred_fallthru
            _
          %425 = vnop
        $region28: #{gcn_encoder.3} parent=23 // pred_fallthru
          _
      $region24: #{gcn_encoder.3} parent=5 // pred_fallthru
        _
      %p426 = scmp.le.s32.totalorder 1, %s9
      %p427 = scmp.lt.s32.totalorder %s9, 5
      %p428 = pnand %p426, %p427
      %p429 = pneg %p428
      // Predicated region
      $region48: #{gcn_encoder.3} parent=5 // pred_check
        _
      $region49: #{gcn_encoder.3} parent=5 // pred_check_branch
        %431 = sbr.rel (%p428) target = $region51
      $region50: #{gcn_encoder.3} parent=5 // pred_region
        %s432 = ssub.s32 %s9, 1
        %s433 = sand.u32 %s36, 1
        %s434 = sand.u32 %s36, 1
        %s435 = smul.addr %s434, 1024
        %s436 = scalar_lea.vmem [#allocation2], %s435
        // Predicated region
        $region52: #{gcn_encoder.3} parent=50 // pred_check
          %p437 = pneg %p49
        $region53: #{gcn_encoder.3} parent=50 // pred_check_branch
          %439 = sbr.rel (%p437) target = $region55
        $region54: #{gcn_encoder.3} parent=50 // pred_region
          _
        $region55: #{gcn_encoder.3} parent=50 // pred_fallthru
          _
        %s440 = sand.u32 %s36, 1
        %s441 = sand.u32 %s36, 1
        %s442 = smul.addr %s441, 1024
        %s443 = scalar_lea.vmem [#allocation2], %s442
        %p444 = pneg %p49
        %p445 = pneg %p46
        %p446 = pneg %p70
        %p447 = pneg %p67
        %p448 = pneg %p91
        %p449 = pneg %p88
        %p450 = pneg %p117
        %p451 = pneg %p114
        %s452 = smul.u32 64, %s18
        %p453 = scmp.lt.s32.totalorder %s452, 127
        %s454 = scalar_select %p453, %s452, 127
        %s455 = smul.addr %s454, 8
        %s456 = scalar_lea.vmem %s3, %s455
        %s457 = smul.u32 64, %s18
        %s458 = smul.u32 4, %s19
        %s459 = smul.u32 64, %s18
        %p460 = scmp.lt.s32.totalorder %s459, 127
        %s461 = scalar_select %p460, %s459, 127
        %s462 = smul.addr %s461, 8
        %s463 = scalar_lea.vmem %s3, %s462
        %s464 = smul.u32 64, %s18
        %p466 = scmp.eq.s32.totalorder %s19, 0
        // Predicated region
        $region56: #{gcn_encoder.3} parent=50 // pred_check
          %p467 = pneg %p466
        $region57: #{gcn_encoder.3} parent=50 // pred_check_branch
          %469 = sbr.rel (%p467) target = $region59
        $region58: #{gcn_encoder.3} parent=50 // pred_region
          %470 = vst [vmem:[%s463] sm:$0xff] 0.0
          %471 = vst [vmem:[%s463 + $0x8] sm:$0xff] 0.0
          %472 = vst [vmem:[%s463 + $0x10] sm:$0xff] 0.0
          %473 = vst [vmem:[%s463 + $0x18] sm:$0xff] 0.0
          %474 = vst [vmem:[%s463 + $0x20] sm:$0xff] 0.0
          %475 = vst [vmem:[%s463 + $0x28] sm:$0xff] 0.0
          %476 = vst [vmem:[%s463 + $0x30] sm:$0xff] 0.0
          %477 = vst [vmem:[%s463 + $0x38] sm:$0xff] 0.0
          %478 = vst [vmem:[%s463 + $0x40] sm:$0xff] 0.0
          %479 = vst [vmem:[%s463 + $0x48] sm:$0xff] 0.0
          %480 = vst [vmem:[%s463 + $0x50] sm:$0xff] 0.0
          %481 = vst [vmem:[%s463 + $0x58] sm:$0xff] 0.0
          %482 = vst [vmem:[%s463 + $0x60] sm:$0xff] 0.0
          %483 = vst [vmem:[%s463 + $0x68] sm:$0xff] 0.0
          %484 = vst [vmem:[%s463 + $0x70] sm:$0xff] 0.0
          %485 = vst [vmem:[%s463 + $0x78] sm:$0xff] 0.0
          %486 = vst [vmem:[%s463 + $0x80] sm:$0xff] 0.0
          %487 = vst [vmem:[%s463 + $0x88] sm:$0xff] 0.0
          %488 = vst [vmem:[%s463 + $0x90] sm:$0xff] 0.0
          %489 = vst [vmem:[%s463 + $0x98] sm:$0xff] 0.0
          %490 = vst [vmem:[%s463 + $0xa0] sm:$0xff] 0.0
          %491 = vst [vmem:[%s463 + $0xa8] sm:$0xff] 0.0
          %492 = vst [vmem:[%s463 + $0xb0] sm:$0xff] 0.0
          %493 = vst [vmem:[%s463 + $0xb8] sm:$0xff] 0.0
          %494 = vst [vmem:[%s463 + $0xc0] sm:$0xff] 0.0
          %495 = vst [vmem:[%s463 + $0xc8] sm:$0xff] 0.0
          %496 = vst [vmem:[%s463 + $0xd0] sm:$0xff] 0.0
          %497 = vst [vmem:[%s463 + $0xd8] sm:$0xff] 0.0
          %498 = vst [vmem:[%s463 + $0xe0] sm:$0xff] 0.0
          %499 = vst [vmem:[%s463 + $0xe8] sm:$0xff] 0.0
          %500 = vst [vmem:[%s463 + $0xf0] sm:$0xff] 0.0
          %501 = vst [vmem:[%s463 + $0xf8] sm:$0xff] 0.0
          %502 = vst [vmem:[%s463 + $0x100] sm:$0xff] 0.0
          %503 = vst [vmem:[%s463 + $0x108] sm:$0xff] 0.0
          %504 = vst [vmem:[%s463 + $0x110] sm:$0xff] 0.0
          %505 = vst [vmem:[%s463 + $0x118] sm:$0xff] 0.0
          %506 = vst [vmem:[%s463 + $0x120] sm:$0xff] 0.0
          %507 = vst [vmem:[%s463 + $0x128] sm:$0xff] 0.0
          %508 = vst [vmem:[%s463 + $0x130] sm:$0xff] 0.0
          %509 = vst [vmem:[%s463 + $0x138] sm:$0xff] 0.0
          %510 = vst [vmem:[%s463 + $0x140] sm:$0xff] 0.0
          %511 = vst [vmem:[%s463 + $0x148] sm:$0xff] 0.0
          %512 = vst [vmem:[%s463 + $0x150] sm:$0xff] 0.0
          %513 = vst [vmem:[%s463 + $0x158] sm:$0xff] 0.0
          %514 = vst [vmem:[%s463 + $0x160] sm:$0xff] 0.0
          %515 = vst [vmem:[%s463 + $0x168] sm:$0xff] 0.0
          %516 = vst [vmem:[%s463 + $0x170] sm:$0xff] 0.0
          %517 = vst [vmem:[%s463 + $0x178] sm:$0xff] 0.0
          %518 = vst [vmem:[%s463 + $0x180] sm:$0xff] 0.0
          %519 = vst [vmem:[%s463 + $0x188] sm:$0xff] 0.0
          %520 = vst [vmem:[%s463 + $0x190] sm:$0xff] 0.0
          %521 = vst [vmem:[%s463 + $0x198] sm:$0xff] 0.0
          %522 = vst [vmem:[%s463 + $0x1a0] sm:$0xff] 0.0
          %523 = vst [vmem:[%s463 + $0x1a8] sm:$0xff] 0.0
          %524 = vst [vmem:[%s463 + $0x1b0] sm:$0xff] 0.0
          %525 = vst [vmem:[%s463 + $0x1b8] sm:$0xff] 0.0
          %526 = vst [vmem:[%s463 + $0x1c0] sm:$0xff] 0.0
          %527 = vst [vmem:[%s463 + $0x1c8] sm:$0xff] 0.0
          %528 = vst [vmem:[%s463 + $0x1d0] sm:$0xff] 0.0
          %529 = vst [vmem:[%s463 + $0x1d8] sm:$0xff] 0.0
          %530 = vst [vmem:[%s463 + $0x1e0] sm:$0xff] 0.0
          %531 = vst [vmem:[%s463 + $0x1e8] sm:$0xff] 0.0
          %532 = vst [vmem:[%s463 + $0x1f0] sm:$0xff] 0.0
          %533 = vst [vmem:[%s463 + $0x1f8] sm:$0xff] 0.0
        $region59: #{gcn_encoder.3} parent=50 // pred_fallthru
          _
        %s534 = smul.u32 %s19, 512
        %s535 = sshra.s32 %s534, 3
        %s536 = sand.u32 %s534, 7
        %s537 = smul.addr %s535, 4
        %s538 = scalar_lea.vmem %s1, %s537
        %v539 = vld [vmem:[%s538] sm:$0xf]
        %v540 = vld [vmem:[%s538 + $0x4] sm:$0xf]
        %v541 = vld [vmem:[%s538 + $0x8] sm:$0xf]
        %v542 = vld [vmem:[%s538 + $0xc] sm:$0xf]
        %v543 = vld [vmem:[%s538 + $0x10] sm:$0xf]
        %v544 = vld [vmem:[%s538 + $0x14] sm:$0xf]
        %v545 = vld [vmem:[%s538 + $0x18] sm:$0xf]
        %v546 = vld [vmem:[%s538 + $0x1c] sm:$0xf]
        %v547 = vld [vmem:[%s538 + $0x20] sm:$0xf]
        %v548 = vld [vmem:[%s538 + $0x24] sm:$0xf]
        %v549 = vld [vmem:[%s538 + $0x28] sm:$0xf]
        %v550 = vld [vmem:[%s538 + $0x2c] sm:$0xf]
        %v551 = vld [vmem:[%s538 + $0x30] sm:$0xf]
        %v552 = vld [vmem:[%s538 + $0x34] sm:$0xf]
        %v553 = vld [vmem:[%s538 + $0x38] sm:$0xf]
        %v554 = vld [vmem:[%s538 + $0x3c] sm:$0xf]
        %v555 = vld [vmem:[%s538 + $0x40] sm:$0xf]
        %v556 = vld [vmem:[%s538 + $0x44] sm:$0xf]
        %v557 = vld [vmem:[%s538 + $0x48] sm:$0xf]
        %v558 = vld [vmem:[%s538 + $0x4c] sm:$0xf]
        %v559 = vld [vmem:[%s538 + $0x50] sm:$0xf]
        %v560 = vld [vmem:[%s538 + $0x54] sm:$0xf]
        %v561 = vld [vmem:[%s538 + $0x58] sm:$0xf]
        %v562 = vld [vmem:[%s538 + $0x5c] sm:$0xf]
        %v563 = vld [vmem:[%s538 + $0x60] sm:$0xf]
        %v564 = vld [vmem:[%s538 + $0x64] sm:$0xf]
        %v565 = vld [vmem:[%s538 + $0x68] sm:$0xf]
        %v566 = vld [vmem:[%s538 + $0x6c] sm:$0xf]
        %v567 = vld [vmem:[%s538 + $0x70] sm:$0xf]
        %v568 = vld [vmem:[%s538 + $0x74] sm:$0xf]
        %v569 = vld [vmem:[%s538 + $0x78] sm:$0xf]
        %v570 = vld [vmem:[%s538 + $0x7c] sm:$0xf]
        %v571 = vld [vmem:[%s538 + $0x80] sm:$0xf]
        %v572 = vld [vmem:[%s538 + $0x84] sm:$0xf]
        %v573 = vld [vmem:[%s538 + $0x88] sm:$0xf]
        %v574 = vld [vmem:[%s538 + $0x8c] sm:$0xf]
        %v575 = vld [vmem:[%s538 + $0x90] sm:$0xf]
        %v576 = vld [vmem:[%s538 + $0x94] sm:$0xf]
        %v577 = vld [vmem:[%s538 + $0x98] sm:$0xf]
        %v578 = vld [vmem:[%s538 + $0x9c] sm:$0xf]
        %v579 = vld [vmem:[%s538 + $0xa0] sm:$0xf]
        %v580 = vld [vmem:[%s538 + $0xa4] sm:$0xf]
        %v581 = vld [vmem:[%s538 + $0xa8] sm:$0xf]
        %v582 = vld [vmem:[%s538 + $0xac] sm:$0xf]
        %v583 = vld [vmem:[%s538 + $0xb0] sm:$0xf]
        %v584 = vld [vmem:[%s538 + $0xb4] sm:$0xf]
        %v585 = vld [vmem:[%s538 + $0xb8] sm:$0xf]
        %v586 = vld [vmem:[%s538 + $0xbc] sm:$0xf]
        %v587 = vld [vmem:[%s538 + $0xc0] sm:$0xf]
        %v588 = vld [vmem:[%s538 + $0xc4] sm:$0xf]
        %v589 = vld [vmem:[%s538 + $0xc8] sm:$0xf]
        %v590 = vld [vmem:[%s538 + $0xcc] sm:$0xf]
        %v591 = vld [vmem:[%s538 + $0xd0] sm:$0xf]
        %v592 = vld [vmem:[%s538 + $0xd4] sm:$0xf]
        %v593 = vld [vmem:[%s538 + $0xd8] sm:$0xf]
        %v594 = vld [vmem:[%s538 + $0xdc] sm:$0xf]
        %v595 = vld [vmem:[%s538 + $0xe0] sm:$0xf]
        %v596 = vld [vmem:[%s538 + $0xe4] sm:$0xf]
        %v597 = vld [vmem:[%s538 + $0xe8] sm:$0xf]
        %v598 = vld [vmem:[%s538 + $0xec] sm:$0xf]
        %v599 = vld [vmem:[%s538 + $0xf0] sm:$0xf]
        %v600 = vld [vmem:[%s538 + $0xf4] sm:$0xf]
        %v601 = vld [vmem:[%s538 + $0xf8] sm:$0xf]
        %v602 = vld [vmem:[%s538 + $0xfc] sm:$0xf]
        %v603 = vld [vmem:[%s463] sm:$0xff]
        %v604 = vld [vmem:[%s463 + $0x8] sm:$0xff]
        %v605 = vld [vmem:[%s463 + $0x10] sm:$0xff]
        %v606 = vld [vmem:[%s463 + $0x18] sm:$0xff]
        %v607 = vld [vmem:[%s463 + $0x20] sm:$0xff]
        %v608 = vld [vmem:[%s463 + $0x28] sm:$0xff]
        %v609 = vld [vmem:[%s463 + $0x30] sm:$0xff]
        %v610 = vld [vmem:[%s463 + $0x38] sm:$0xff]
        %v611 = vld [vmem:[%s463 + $0x40] sm:$0xff]
        %v612 = vld [vmem:[%s463 + $0x48] sm:$0xff]
        %v613 = vld [vmem:[%s463 + $0x50] sm:$0xff]
        %v614 = vld [vmem:[%s463 + $0x58] sm:$0xff]
        %v615 = vld [vmem:[%s463 + $0x60] sm:$0xff]
        %v616 = vld [vmem:[%s463 + $0x68] sm:$0xff]
        %v617 = vld [vmem:[%s463 + $0x70] sm:$0xff]
        %v618 = vld [vmem:[%s463 + $0x78] sm:$0xff]
        %v619 = vld [vmem:[%s463 + $0x80] sm:$0xff]
        %v620 = vld [vmem:[%s463 + $0x88] sm:$0xff]
        %v621 = vld [vmem:[%s463 + $0x90] sm:$0xff]
        %v622 = vld [vmem:[%s463 + $0x98] sm:$0xff]
        %v623 = vld [vmem:[%s463 + $0xa0] sm:$0xff]
        %v624 = vld [vmem:[%s463 + $0xa8] sm:$0xff]
        %v625 = vld [vmem:[%s463 + $0xb0] sm:$0xff]
        %v626 = vld [vmem:[%s463 + $0xb8] sm:$0xff]
        %v627 = vld [vmem:[%s463 + $0xc0] sm:$0xff]
        %v628 = vld [vmem:[%s463 + $0xc8] sm:$0xff]
        %v629 = vld [vmem:[%s463 + $0xd0] sm:$0xff]
        %v630 = vld [vmem:[%s463 + $0xd8] sm:$0xff]
        %v631 = vld [vmem:[%s463 + $0xe0] sm:$0xff]
        %v632 = vld [vmem:[%s463 + $0xe8] sm:$0xff]
        %v633 = vld [vmem:[%s463 + $0xf0] sm:$0xff]
        %v634 = vld [vmem:[%s463 + $0xf8] sm:$0xff]
        %v635 = vld [vmem:[%s463 + $0x100] sm:$0xff]
        %v636 = vld [vmem:[%s463 + $0x108] sm:$0xff]
        %v637 = vld [vmem:[%s463 + $0x110] sm:$0xff]
        %v638 = vld [vmem:[%s463 + $0x118] sm:$0xff]
        %v639 = vld [vmem:[%s463 + $0x120] sm:$0xff]
        %v640 = vld [vmem:[%s463 + $0x128] sm:$0xff]
        %v641 = vld [vmem:[%s463 + $0x130] sm:$0xff]
        %v642 = vld [vmem:[%s463 + $0x138] sm:$0xff]
        %v643 = vld [vmem:[%s463 + $0x140] sm:$0xff]
        %v644 = vld [vmem:[%s463 + $0x148] sm:$0xff]
        %v645 = vld [vmem:[%s463 + $0x150] sm:$0xff]
        %v646 = vld [vmem:[%s463 + $0x158] sm:$0xff]
        %v647 = vld [vmem:[%s463 + $0x160] sm:$0xff]
        %v648 = vld [vmem:[%s463 + $0x168] sm:$0xff]
        %v649 = vld [vmem:[%s463 + $0x170] sm:$0xff]
        %v650 = vld [vmem:[%s463 + $0x178] sm:$0xff]
        %v651 = vld [vmem:[%s463 + $0x180] sm:$0xff]
        %v652 = vld [vmem:[%s463 + $0x188] sm:$0xff]
        %v653 = vld [vmem:[%s463 + $0x190] sm:$0xff]
        %v654 = vld [vmem:[%s463 + $0x198] sm:$0xff]
        %v655 = vld [vmem:[%s463 + $0x1a0] sm:$0xff]
        %v656 = vld [vmem:[%s463 + $0x1a8] sm:$0xff]
        %v657 = vld [vmem:[%s463 + $0x1b0] sm:$0xff]
        %v658 = vld [vmem:[%s463 + $0x1b8] sm:$0xff]
        %v659 = vld [vmem:[%s463 + $0x1c0] sm:$0xff]
        %v660 = vld [vmem:[%s463 + $0x1c8] sm:$0xff]
        %v661 = vld [vmem:[%s463 + $0x1d0] sm:$0xff]
        %v662 = vld [vmem:[%s463 + $0x1d8] sm:$0xff]
        %v663 = vld [vmem:[%s463 + $0x1e0] sm:$0xff]
        %v664 = vld [vmem:[%s463 + $0x1e8] sm:$0xff]
        %v665 = vld [vmem:[%s463 + $0x1f0] sm:$0xff]
        %v666 = vld [vmem:[%s463 + $0x1f8] sm:$0xff]
        %v667 = vld [vmem:[%s436] sm:$0xff]
        %v668 = vld [vmem:[%s436 + $0x8] sm:$0xff]
        %v669 = vld [vmem:[%s436 + $0x10] sm:$0xff]
        %v670 = vld [vmem:[%s436 + $0x18] sm:$0xff]
        %v671 = vld [vmem:[%s436 + $0x20] sm:$0xff]
        %v672 = vld [vmem:[%s436 + $0x28] sm:$0xff]
        %v673 = vld [vmem:[%s436 + $0x30] sm:$0xff]
        %v674 = vld [vmem:[%s436 + $0x38] sm:$0xff]
        %v675 = vld [vmem:[%s436 + $0x40] sm:$0xff]
        %v676 = vld [vmem:[%s436 + $0x48] sm:$0xff]
        %v677 = vld [vmem:[%s436 + $0x50] sm:$0xff]
        %v678 = vld [vmem:[%s436 + $0x58] sm:$0xff]
        %v679 = vld [vmem:[%s436 + $0x60] sm:$0xff]
        %v680 = vld [vmem:[%s436 + $0x68] sm:$0xff]
        %v681 = vld [vmem:[%s436 + $0x70] sm:$0xff]
        %v682 = vld [vmem:[%s436 + $0x78] sm:$0xff]
        %v683 = vld [vmem:[%s436 + $0x80] sm:$0xff]
        %v684 = vld [vmem:[%s436 + $0x88] sm:$0xff]
        %v685 = vld [vmem:[%s436 + $0x90] sm:$0xff]
        %v686 = vld [vmem:[%s436 + $0x98] sm:$0xff]
        %v687 = vld [vmem:[%s436 + $0xa0] sm:$0xff]
        %v688 = vld [vmem:[%s436 + $0xa8] sm:$0xff]
        %v689 = vld [vmem:[%s436 + $0xb0] sm:$0xff]
        %v690 = vld [vmem:[%s436 + $0xb8] sm:$0xff]
        %v691 = vld [vmem:[%s436 + $0xc0] sm:$0xff]
        %v692 = vld [vmem:[%s436 + $0xc8] sm:$0xff]
        %v693 = vld [vmem:[%s436 + $0xd0] sm:$0xff]
        %v694 = vld [vmem:[%s436 + $0xd8] sm:$0xff]
        %v695 = vld [vmem:[%s436 + $0xe0] sm:$0xff]
        %v696 = vld [vmem:[%s436 + $0xe8] sm:$0xff]
        %v697 = vld [vmem:[%s436 + $0xf0] sm:$0xff]
        %v698 = vld [vmem:[%s436 + $0xf8] sm:$0xff]
        %v699 = vld [vmem:[%s436 + $0x100] sm:$0xff]
        %v700 = vld [vmem:[%s436 + $0x108] sm:$0xff]
        %v701 = vld [vmem:[%s436 + $0x110] sm:$0xff]
        %v702 = vld [vmem:[%s436 + $0x118] sm:$0xff]
        %v703 = vld [vmem:[%s436 + $0x120] sm:$0xff]
        %v704 = vld [vmem:[%s436 + $0x128] sm:$0xff]
        %v705 = vld [vmem:[%s436 + $0x130] sm:$0xff]
        %v706 = vld [vmem:[%s436 + $0x138] sm:$0xff]
        %v707 = vld [vmem:[%s436 + $0x140] sm:$0xff]
        %v708 = vld [vmem:[%s436 + $0x148] sm:$0xff]
        %v709 = vld [vmem:[%s436 + $0x150] sm:$0xff]
        %v710 = vld [vmem:[%s436 + $0x158] sm:$0xff]
        %v711 = vld [vmem:[%s436 + $0x160] sm:$0xff]
        %v712 = vld [vmem:[%s436 + $0x168] sm:$0xff]
        %v713 = vld [vmem:[%s436 + $0x170] sm:$0xff]
        %v714 = vld [vmem:[%s436 + $0x178] sm:$0xff]
        %v715 = vld [vmem:[%s436 + $0x180] sm:$0xff]
        %v716 = vld [vmem:[%s436 + $0x188] sm:$0xff]
        %v717 = vld [vmem:[%s436 + $0x190] sm:$0xff]
        %v718 = vld [vmem:[%s436 + $0x198] sm:$0xff]
        %v719 = vld [vmem:[%s436 + $0x1a0] sm:$0xff]
        %v720 = vld [vmem:[%s436 + $0x1a8] sm:$0xff]
        %v721 = vld [vmem:[%s436 + $0x1b0] sm:$0xff]
        %v722 = vld [vmem:[%s436 + $0x1b8] sm:$0xff]
        %v723 = vld [vmem:[%s436 + $0x1c0] sm:$0xff]
        %v724 = vld [vmem:[%s436 + $0x1c8] sm:$0xff]
        %v725 = vld [vmem:[%s436 + $0x1d0] sm:$0xff]
        %v726 = vld [vmem:[%s436 + $0x1d8] sm:$0xff]
        %v727 = vld [vmem:[%s436 + $0x1e0] sm:$0xff]
        %v728 = vld [vmem:[%s436 + $0x1e8] sm:$0xff]
        %v729 = vld [vmem:[%s436 + $0x1f0] sm:$0xff]
        %v730 = vld [vmem:[%s436 + $0x1f8] sm:$0xff]
        %v731 = vld [vmem:[%s436 + $0x200] sm:$0xff]
        %v732 = vld [vmem:[%s436 + $0x208] sm:$0xff]
        %v733 = vld [vmem:[%s436 + $0x210] sm:$0xff]
        %v734 = vld [vmem:[%s436 + $0x218] sm:$0xff]
        %v735 = vld [vmem:[%s436 + $0x220] sm:$0xff]
        %v736 = vld [vmem:[%s436 + $0x228] sm:$0xff]
        %v737 = vld [vmem:[%s436 + $0x230] sm:$0xff]
        %v738 = vld [vmem:[%s436 + $0x238] sm:$0xff]
        %v739 = vld [vmem:[%s436 + $0x240] sm:$0xff]
        %v740 = vld [vmem:[%s436 + $0x248] sm:$0xff]
        %v741 = vld [vmem:[%s436 + $0x250] sm:$0xff]
        %v742 = vld [vmem:[%s436 + $0x258] sm:$0xff]
        %v743 = vld [vmem:[%s436 + $0x260] sm:$0xff]
        %v744 = vld [vmem:[%s436 + $0x268] sm:$0xff]
        %v745 = vld [vmem:[%s436 + $0x270] sm:$0xff]
        %v746 = vld [vmem:[%s436 + $0x278] sm:$0xff]
        %v747 = vld [vmem:[%s436 + $0x280] sm:$0xff]
        %v748 = vld [vmem:[%s436 + $0x288] sm:$0xff]
        %v749 = vld [vmem:[%s436 + $0x290] sm:$0xff]
        %v750 = vld [vmem:[%s436 + $0x298] sm:$0xff]
        %v751 = vld [vmem:[%s436 + $0x2a0] sm:$0xff]
        %v752 = vld [vmem:[%s436 + $0x2a8] sm:$0xff]
        %v753 = vld [vmem:[%s436 + $0x2b0] sm:$0xff]
        %v754 = vld [vmem:[%s436 + $0x2b8] sm:$0xff]
        %v755 = vld [vmem:[%s436 + $0x2c0] sm:$0xff]
        %v756 = vld [vmem:[%s436 + $0x2c8] sm:$0xff]
        %v757 = vld [vmem:[%s436 + $0x2d0] sm:$0xff]
        %v758 = vld [vmem:[%s436 + $0x2d8] sm:$0xff]
        %v759 = vld [vmem:[%s436 + $0x2e0] sm:$0xff]
        %v760 = vld [vmem:[%s436 + $0x2e8] sm:$0xff]
        %v761 = vld [vmem:[%s436 + $0x2f0] sm:$0xff]
        %v762 = vld [vmem:[%s436 + $0x2f8] sm:$0xff]
        %v763 = vld [vmem:[%s436 + $0x300] sm:$0xff]
        %v764 = vld [vmem:[%s436 + $0x308] sm:$0xff]
        %v765 = vld [vmem:[%s436 + $0x310] sm:$0xff]
        %v766 = vld [vmem:[%s436 + $0x318] sm:$0xff]
        %v767 = vld [vmem:[%s436 + $0x320] sm:$0xff]
        %v768 = vld [vmem:[%s436 + $0x328] sm:$0xff]
        %v769 = vld [vmem:[%s436 + $0x330] sm:$0xff]
        %v770 = vld [vmem:[%s436 + $0x338] sm:$0xff]
        %v771 = vld [vmem:[%s436 + $0x340] sm:$0xff]
        %v772 = vld [vmem:[%s436 + $0x348] sm:$0xff]
        %v773 = vld [vmem:[%s436 + $0x350] sm:$0xff]
        %v774 = vld [vmem:[%s436 + $0x358] sm:$0xff]
        %v775 = vld [vmem:[%s436 + $0x360] sm:$0xff]
        %v776 = vld [vmem:[%s436 + $0x368] sm:$0xff]
        %v777 = vld [vmem:[%s436 + $0x370] sm:$0xff]
        %v778 = vld [vmem:[%s436 + $0x378] sm:$0xff]
        %v779 = vld [vmem:[%s436 + $0x380] sm:$0xff]
        %v780 = vld [vmem:[%s436 + $0x388] sm:$0xff]
        %v781 = vld [vmem:[%s436 + $0x390] sm:$0xff]
        %v782 = vld [vmem:[%s436 + $0x398] sm:$0xff]
        %v783 = vld [vmem:[%s436 + $0x3a0] sm:$0xff]
        %v784 = vld [vmem:[%s436 + $0x3a8] sm:$0xff]
        %v785 = vld [vmem:[%s436 + $0x3b0] sm:$0xff]
        %v786 = vld [vmem:[%s436 + $0x3b8] sm:$0xff]
        %v787 = vld [vmem:[%s436 + $0x3c0] sm:$0xff]
        %v788 = vld [vmem:[%s436 + $0x3c8] sm:$0xff]
        %v789 = vld [vmem:[%s436 + $0x3d0] sm:$0xff]
        %v790 = vld [vmem:[%s436 + $0x3d8] sm:$0xff]
        %v791 = vld [vmem:[%s436 + $0x3e0] sm:$0xff]
        %v792 = vld [vmem:[%s436 + $0x3e8] sm:$0xff]
        %v793 = vld [vmem:[%s436 + $0x3f0] sm:$0xff]
        %v794 = vld [vmem:[%s436 + $0x3f8] sm:$0xff]
        %v923 = vunpack.c.l.b16 %v667
        %v924 = vunpack.c.h.b16 %v667
        %v925 = vunpack.c.l.b16 %v668
        %v926 = vunpack.c.h.b16 %v668
        %v927 = vunpack.c.l.b16 %v669
        %v928 = vunpack.c.h.b16 %v669
        %v929 = vunpack.c.l.b16 %v670
        %v930 = vunpack.c.h.b16 %v670
        %v931 = vunpack.c.l.b16 %v671
        %v932 = vunpack.c.h.b16 %v671
        %v933 = vunpack.c.l.b16 %v672
        %v934 = vunpack.c.h.b16 %v672
        %v935 = vunpack.c.l.b16 %v673
        %v936 = vunpack.c.h.b16 %v673
        %v937 = vunpack.c.l.b16 %v674
        %v938 = vunpack.c.h.b16 %v674
        %v939 = vunpack.c.l.b16 %v675
        %v940 = vunpack.c.h.b16 %v675
        %v941 = vunpack.c.l.b16 %v676
        %v942 = vunpack.c.h.b16 %v676
        %v943 = vunpack.c.l.b16 %v677
        %v944 = vunpack.c.h.b16 %v677
        %v945 = vunpack.c.l.b16 %v678
        %v946 = vunpack.c.h.b16 %v678
        %v947 = vunpack.c.l.b16 %v679
        %v948 = vunpack.c.h.b16 %v679
        %v949 = vunpack.c.l.b16 %v680
        %v950 = vunpack.c.h.b16 %v680
        %v951 = vunpack.c.l.b16 %v681
        %v952 = vunpack.c.h.b16 %v681
        %v953 = vunpack.c.l.b16 %v682
        %v954 = vunpack.c.h.b16 %v682
        %v955 = vunpack.c.l.b16 %v683
        %v956 = vunpack.c.h.b16 %v683
        %v957 = vunpack.c.l.b16 %v684
        %v958 = vunpack.c.h.b16 %v684
        %v959 = vunpack.c.l.b16 %v685
        %v960 = vunpack.c.h.b16 %v685
        %v961 = vunpack.c.l.b16 %v686
        %v962 = vunpack.c.h.b16 %v686
        %v963 = vunpack.c.l.b16 %v687
        %v964 = vunpack.c.h.b16 %v687
        %v965 = vunpack.c.l.b16 %v688
        %v966 = vunpack.c.h.b16 %v688
        %v967 = vunpack.c.l.b16 %v689
        %v968 = vunpack.c.h.b16 %v689
        %v969 = vunpack.c.l.b16 %v690
        %v970 = vunpack.c.h.b16 %v690
        %v971 = vunpack.c.l.b16 %v691
        %v972 = vunpack.c.h.b16 %v691
        %v973 = vunpack.c.l.b16 %v692
        %v974 = vunpack.c.h.b16 %v692
        %v975 = vunpack.c.l.b16 %v693
        %v976 = vunpack.c.h.b16 %v693
        %v977 = vunpack.c.l.b16 %v694
        %v978 = vunpack.c.h.b16 %v694
        %v979 = vunpack.c.l.b16 %v695
        %v980 = vunpack.c.h.b16 %v695
        %v981 = vunpack.c.l.b16 %v696
        %v982 = vunpack.c.h.b16 %v696
        %v983 = vunpack.c.l.b16 %v697
        %v984 = vunpack.c.h.b16 %v697
        %v985 = vunpack.c.l.b16 %v698
        %v986 = vunpack.c.h.b16 %v698
        %v987 = vunpack.c.l.b16 %v699
        %v988 = vunpack.c.h.b16 %v699
        %v989 = vunpack.c.l.b16 %v700
        %v990 = vunpack.c.h.b16 %v700
        %v991 = vunpack.c.l.b16 %v701
        %v992 = vunpack.c.h.b16 %v701
        %v993 = vunpack.c.l.b16 %v702
        %v994 = vunpack.c.h.b16 %v702
        %v995 = vunpack.c.l.b16 %v703
        %v996 = vunpack.c.h.b16 %v703
        %v997 = vunpack.c.l.b16 %v704
        %v998 = vunpack.c.h.b16 %v704
        %v999 = vunpack.c.l.b16 %v705
        %v1000 = vunpack.c.h.b16 %v705
        %v1001 = vunpack.c.l.b16 %v706
        %v1002 = vunpack.c.h.b16 %v706
        %v1003 = vunpack.c.l.b16 %v707
        %v1004 = vunpack.c.h.b16 %v707
        %v1005 = vunpack.c.l.b16 %v708
        %v1006 = vunpack.c.h.b16 %v708
        %v1007 = vunpack.c.l.b16 %v709
        %v1008 = vunpack.c.h.b16 %v709
        %v1009 = vunpack.c.l.b16 %v710
        %v1010 = vunpack.c.h.b16 %v710
        %v1011 = vunpack.c.l.b16 %v711
        %v1012 = vunpack.c.h.b16 %v711
        %v1013 = vunpack.c.l.b16 %v712
        %v1014 = vunpack.c.h.b16 %v712
        %v1015 = vunpack.c.l.b16 %v713
        %v1016 = vunpack.c.h.b16 %v713
        %v1017 = vunpack.c.l.b16 %v714
        %v1018 = vunpack.c.h.b16 %v714
        %v1019 = vunpack.c.l.b16 %v715
        %v1020 = vunpack.c.h.b16 %v715
        %v1021 = vunpack.c.l.b16 %v716
        %v1022 = vunpack.c.h.b16 %v716
        %v1023 = vunpack.c.l.b16 %v717
        %v1024 = vunpack.c.h.b16 %v717
        %v1025 = vunpack.c.l.b16 %v718
        %v1026 = vunpack.c.h.b16 %v718
        %v1027 = vunpack.c.l.b16 %v719
        %v1028 = vunpack.c.h.b16 %v719
        %v1029 = vunpack.c.l.b16 %v720
        %v1030 = vunpack.c.h.b16 %v720
        %v1031 = vunpack.c.l.b16 %v721
        %v1032 = vunpack.c.h.b16 %v721
        %v1033 = vunpack.c.l.b16 %v722
        %v1034 = vunpack.c.h.b16 %v722
        %v1035 = vunpack.c.l.b16 %v723
        %v1036 = vunpack.c.h.b16 %v723
        %v1037 = vunpack.c.l.b16 %v724
        %v1038 = vunpack.c.h.b16 %v724
        %v1039 = vunpack.c.l.b16 %v725
        %v1040 = vunpack.c.h.b16 %v725
        %v1041 = vunpack.c.l.b16 %v726
        %v1042 = vunpack.c.h.b16 %v726
        %v1043 = vunpack.c.l.b16 %v727
        %v1044 = vunpack.c.h.b16 %v727
        %v1045 = vunpack.c.l.b16 %v728
        %v1046 = vunpack.c.h.b16 %v728
        %v1047 = vunpack.c.l.b16 %v729
        %v1048 = vunpack.c.h.b16 %v729
        %v1049 = vunpack.c.l.b16 %v730
        %v1050 = vunpack.c.h.b16 %v730
        %v1051 = vunpack.c.l.b16 %v731
        %v1052 = vunpack.c.h.b16 %v731
        %v1053 = vunpack.c.l.b16 %v732
        %v1054 = vunpack.c.h.b16 %v732
        %v1055 = vunpack.c.l.b16 %v733
        %v1056 = vunpack.c.h.b16 %v733
        %v1057 = vunpack.c.l.b16 %v734
        %v1058 = vunpack.c.h.b16 %v734
        %v1059 = vunpack.c.l.b16 %v735
        %v1060 = vunpack.c.h.b16 %v735
        %v1061 = vunpack.c.l.b16 %v736
        %v1062 = vunpack.c.h.b16 %v736
        %v1063 = vunpack.c.l.b16 %v737
        %v1064 = vunpack.c.h.b16 %v737
        %v1065 = vunpack.c.l.b16 %v738
        %v1066 = vunpack.c.h.b16 %v738
        %v1067 = vunpack.c.l.b16 %v739
        %v1068 = vunpack.c.h.b16 %v739
        %v1069 = vunpack.c.l.b16 %v740
        %v1070 = vunpack.c.h.b16 %v740
        %v1071 = vunpack.c.l.b16 %v741
        %v1072 = vunpack.c.h.b16 %v741
        %v1073 = vunpack.c.l.b16 %v742
        %v1074 = vunpack.c.h.b16 %v742
        %v1075 = vunpack.c.l.b16 %v743
        %v1076 = vunpack.c.h.b16 %v743
        %v1077 = vunpack.c.l.b16 %v744
        %v1078 = vunpack.c.h.b16 %v744
        %v1079 = vunpack.c.l.b16 %v745
        %v1080 = vunpack.c.h.b16 %v745
        %v1081 = vunpack.c.l.b16 %v746
        %v1082 = vunpack.c.h.b16 %v746
        %v1083 = vunpack.c.l.b16 %v747
        %v1084 = vunpack.c.h.b16 %v747
        %v1085 = vunpack.c.l.b16 %v748
        %v1086 = vunpack.c.h.b16 %v748
        %v1087 = vunpack.c.l.b16 %v749
        %v1088 = vunpack.c.h.b16 %v749
        %v1089 = vunpack.c.l.b16 %v750
        %v1090 = vunpack.c.h.b16 %v750
        %v1091 = vunpack.c.l.b16 %v751
        %v1092 = vunpack.c.h.b16 %v751
        %v1093 = vunpack.c.l.b16 %v752
        %v1094 = vunpack.c.h.b16 %v752
        %v1095 = vunpack.c.l.b16 %v753
        %v1096 = vunpack.c.h.b16 %v753
        %v1097 = vunpack.c.l.b16 %v754
        %v1098 = vunpack.c.h.b16 %v754
        %v1099 = vunpack.c.l.b16 %v755
        %v1100 = vunpack.c.h.b16 %v755
        %v1101 = vunpack.c.l.b16 %v756
        %v1102 = vunpack.c.h.b16 %v756
        %v1103 = vunpack.c.l.b16 %v757
        %v1104 = vunpack.c.h.b16 %v757
        %v1105 = vunpack.c.l.b16 %v758
        %v1106 = vunpack.c.h.b16 %v758
        %v1107 = vunpack.c.l.b16 %v759
        %v1108 = vunpack.c.h.b16 %v759
        %v1109 = vunpack.c.l.b16 %v760
        %v1110 = vunpack.c.h.b16 %v760
        %v1111 = vunpack.c.l.b16 %v761
        %v1112 = vunpack.c.h.b16 %v761
        %v1113 = vunpack.c.l.b16 %v762
        %v1114 = vunpack.c.h.b16 %v762
        %v1115 = vunpack.c.l.b16 %v763
        %v1116 = vunpack.c.h.b16 %v763
        %v1117 = vunpack.c.l.b16 %v764
        %v1118 = vunpack.c.h.b16 %v764
        %v1119 = vunpack.c.l.b16 %v765
        %v1120 = vunpack.c.h.b16 %v765
        %v1121 = vunpack.c.l.b16 %v766
        %v1122 = vunpack.c.h.b16 %v766
        %v1123 = vunpack.c.l.b16 %v767
        %v1124 = vunpack.c.h.b16 %v767
        %v1125 = vunpack.c.l.b16 %v768
        %v1126 = vunpack.c.h.b16 %v768
        %v1127 = vunpack.c.l.b16 %v769
        %v1128 = vunpack.c.h.b16 %v769
        %v1129 = vunpack.c.l.b16 %v770
        %v1130 = vunpack.c.h.b16 %v770
        %v1131 = vunpack.c.l.b16 %v771
        %v1132 = vunpack.c.h.b16 %v771
        %v1133 = vunpack.c.l.b16 %v772
        %v1134 = vunpack.c.h.b16 %v772
        %v1135 = vunpack.c.l.b16 %v773
        %v1136 = vunpack.c.h.b16 %v773
        %v1137 = vunpack.c.l.b16 %v774
        %v1138 = vunpack.c.h.b16 %v774
        %v1139 = vunpack.c.l.b16 %v775
        %v1140 = vunpack.c.h.b16 %v775
        %v1141 = vunpack.c.l.b16 %v776
        %v1142 = vunpack.c.h.b16 %v776
        %v1143 = vunpack.c.l.b16 %v777
        %v1144 = vunpack.c.h.b16 %v777
        %v1145 = vunpack.c.l.b16 %v778
        %v1146 = vunpack.c.h.b16 %v778
        %v1147 = vunpack.c.l.b16 %v779
        %v1148 = vunpack.c.h.b16 %v779
        %v1149 = vunpack.c.l.b16 %v780
        %v1150 = vunpack.c.h.b16 %v780
        %v1151 = vunpack.c.l.b16 %v781
        %v1152 = vunpack.c.h.b16 %v781
        %v1153 = vunpack.c.l.b16 %v782
        %v1154 = vunpack.c.h.b16 %v782
        %v1155 = vunpack.c.l.b16 %v783
        %v1156 = vunpack.c.h.b16 %v783
        %v1157 = vunpack.c.l.b16 %v784
        %v1158 = vunpack.c.h.b16 %v784
        %v1159 = vunpack.c.l.b16 %v785
        %v1160 = vunpack.c.h.b16 %v785
        %v1161 = vunpack.c.l.b16 %v786
        %v1162 = vunpack.c.h.b16 %v786
        %v1163 = vunpack.c.l.b16 %v787
        %v1164 = vunpack.c.h.b16 %v787
        %v1165 = vunpack.c.l.b16 %v788
        %v1166 = vunpack.c.h.b16 %v788
        %v1167 = vunpack.c.l.b16 %v789
        %v1168 = vunpack.c.h.b16 %v789
        %v1169 = vunpack.c.l.b16 %v790
        %v1170 = vunpack.c.h.b16 %v790
        %v1171 = vunpack.c.l.b16 %v791
        %v1172 = vunpack.c.h.b16 %v791
        %v1173 = vunpack.c.l.b16 %v792
        %v1174 = vunpack.c.h.b16 %v792
        %v1175 = vunpack.c.l.b16 %v793
        %v1176 = vunpack.c.h.b16 %v793
        %v1177 = vunpack.c.l.b16 %v794
        %v1178 = vunpack.c.h.b16 %v794
        %v1179 = vpack.c.b16 %v927, %v923
        %v1180 = vpack.c.b16 %v928, %v924
        %v1181 = vpack.c.b16 %v929, %v925
        %v1182 = vpack.c.b16 %v930, %v926
        %v1183 = vpack.c.b16 %v935, %v931
        %v1184 = vpack.c.b16 %v936, %v932
        %v1185 = vpack.c.b16 %v937, %v933
        %v1186 = vpack.c.b16 %v938, %v934
        %v1187 = vpack.c.b16 %v943, %v939
        %v1188 = vpack.c.b16 %v944, %v940
        %v1189 = vpack.c.b16 %v945, %v941
        %v1190 = vpack.c.b16 %v946, %v942
        %v1191 = vpack.c.b16 %v951, %v947
        %v1192 = vpack.c.b16 %v952, %v948
        %v1193 = vpack.c.b16 %v953, %v949
        %v1194 = vpack.c.b16 %v954, %v950
        %v1195 = vpack.c.b16 %v959, %v955
        %v1196 = vpack.c.b16 %v960, %v956
        %v1197 = vpack.c.b16 %v961, %v957
        %v1198 = vpack.c.b16 %v962, %v958
        %v1199 = vpack.c.b16 %v967, %v963
        %v1200 = vpack.c.b16 %v968, %v964
        %v1201 = vpack.c.b16 %v969, %v965
        %v1202 = vpack.c.b16 %v970, %v966
        %v1203 = vpack.c.b16 %v975, %v971
        %v1204 = vpack.c.b16 %v976, %v972
        %v1205 = vpack.c.b16 %v977, %v973
        %v1206 = vpack.c.b16 %v978, %v974
        %v1207 = vpack.c.b16 %v983, %v979
        %v1208 = vpack.c.b16 %v984, %v980
        %v1209 = vpack.c.b16 %v985, %v981
        %v1210 = vpack.c.b16 %v986, %v982
        %v1211 = vpack.c.b16 %v991, %v987
        %v1212 = vpack.c.b16 %v992, %v988
        %v1213 = vpack.c.b16 %v993, %v989
        %v1214 = vpack.c.b16 %v994, %v990
        %v1215 = vpack.c.b16 %v999, %v995
        %v1216 = vpack.c.b16 %v1000, %v996
        %v1217 = vpack.c.b16 %v1001, %v997
        %v1218 = vpack.c.b16 %v1002, %v998
        %v1219 = vpack.c.b16 %v1007, %v1003
        %v1220 = vpack.c.b16 %v1008, %v1004
        %v1221 = vpack.c.b16 %v1009, %v1005
        %v1222 = vpack.c.b16 %v1010, %v1006
        %v1223 = vpack.c.b16 %v1015, %v1011
        %v1224 = vpack.c.b16 %v1016, %v1012
        %v1225 = vpack.c.b16 %v1017, %v1013
        %v1226 = vpack.c.b16 %v1018, %v1014
        %v1227 = vpack.c.b16 %v1023, %v1019
        %v1228 = vpack.c.b16 %v1024, %v1020
        %v1229 = vpack.c.b16 %v1025, %v1021
        %v1230 = vpack.c.b16 %v1026, %v1022
        %v1231 = vpack.c.b16 %v1031, %v1027
        %v1232 = vpack.c.b16 %v1032, %v1028
        %v1233 = vpack.c.b16 %v1033, %v1029
        %v1234 = vpack.c.b16 %v1034, %v1030
        %v1235 = vpack.c.b16 %v1039, %v1035
        %v1236 = vpack.c.b16 %v1040, %v1036
        %v1237 = vpack.c.b16 %v1041, %v1037
        %v1238 = vpack.c.b16 %v1042, %v1038
        %v1239 = vpack.c.b16 %v1047, %v1043
        %v1240 = vpack.c.b16 %v1048, %v1044
        %v1241 = vpack.c.b16 %v1049, %v1045
        %v1242 = vpack.c.b16 %v1050, %v1046
        %v1243 = vpack.c.b16 %v1055, %v1051
        %v1244 = vpack.c.b16 %v1056, %v1052
        %v1245 = vpack.c.b16 %v1057, %v1053
        %v1246 = vpack.c.b16 %v1058, %v1054
        %v1247 = vpack.c.b16 %v1063, %v1059
        %v1248 = vpack.c.b16 %v1064, %v1060
        %v1249 = vpack.c.b16 %v1065, %v1061
        %v1250 = vpack.c.b16 %v1066, %v1062
        %v1251 = vpack.c.b16 %v1071, %v1067
        %v1252 = vpack.c.b16 %v1072, %v1068
        %v1253 = vpack.c.b16 %v1073, %v1069
        %v1254 = vpack.c.b16 %v1074, %v1070
        %v1255 = vpack.c.b16 %v1079, %v1075
        %v1256 = vpack.c.b16 %v1080, %v1076
        %v1257 = vpack.c.b16 %v1081, %v1077
        %v1258 = vpack.c.b16 %v1082, %v1078
        %v1259 = vpack.c.b16 %v1087, %v1083
        %v1260 = vpack.c.b16 %v1088, %v1084
        %v1261 = vpack.c.b16 %v1089, %v1085
        %v1262 = vpack.c.b16 %v1090, %v1086
        %v1263 = vpack.c.b16 %v1095, %v1091
        %v1264 = vpack.c.b16 %v1096, %v1092
        %v1265 = vpack.c.b16 %v1097, %v1093
        %v1266 = vpack.c.b16 %v1098, %v1094
        %v1267 = vpack.c.b16 %v1103, %v1099
        %v1268 = vpack.c.b16 %v1104, %v1100
        %v1269 = vpack.c.b16 %v1105, %v1101
        %v1270 = vpack.c.b16 %v1106, %v1102
        %v1271 = vpack.c.b16 %v1111, %v1107
        %v1272 = vpack.c.b16 %v1112, %v1108
        %v1273 = vpack.c.b16 %v1113, %v1109
        %v1274 = vpack.c.b16 %v1114, %v1110
        %v1275 = vpack.c.b16 %v1119, %v1115
        %v1276 = vpack.c.b16 %v1120, %v1116
        %v1277 = vpack.c.b16 %v1121, %v1117
        %v1278 = vpack.c.b16 %v1122, %v1118
        %v1279 = vpack.c.b16 %v1127, %v1123
        %v1280 = vpack.c.b16 %v1128, %v1124
        %v1281 = vpack.c.b16 %v1129, %v1125
        %v1282 = vpack.c.b16 %v1130, %v1126
        %v1283 = vpack.c.b16 %v1135, %v1131
        %v1284 = vpack.c.b16 %v1136, %v1132
        %v1285 = vpack.c.b16 %v1137, %v1133
        %v1286 = vpack.c.b16 %v1138, %v1134
        %v1287 = vpack.c.b16 %v1143, %v1139
        %v1288 = vpack.c.b16 %v1144, %v1140
        %v1289 = vpack.c.b16 %v1145, %v1141
        %v1290 = vpack.c.b16 %v1146, %v1142
        %v1291 = vpack.c.b16 %v1151, %v1147
        %v1292 = vpack.c.b16 %v1152, %v1148
        %v1293 = vpack.c.b16 %v1153, %v1149
        %v1294 = vpack.c.b16 %v1154, %v1150
        %v1295 = vpack.c.b16 %v1159, %v1155
        %v1296 = vpack.c.b16 %v1160, %v1156
        %v1297 = vpack.c.b16 %v1161, %v1157
        %v1298 = vpack.c.b16 %v1162, %v1158
        %v1299 = vpack.c.b16 %v1167, %v1163
        %v1300 = vpack.c.b16 %v1168, %v1164
        %v1301 = vpack.c.b16 %v1169, %v1165
        %v1302 = vpack.c.b16 %v1170, %v1166
        %v1303 = vpack.c.b16 %v1175, %v1171
        %v1304 = vpack.c.b16 %v1176, %v1172
        %v1305 = vpack.c.b16 %v1177, %v1173
        %v1306 = vpack.c.b16 %v1178, %v1174
        %v1499 = vunpack.c.l.b16 %v539
        %v1500 = vunpack.c.l.b16 %v540
        %v1501 = vunpack.c.l.b16 %v541
        %v1502 = vunpack.c.l.b16 %v542
        %v1503 = vunpack.c.l.b16 %v543
        %v1504 = vunpack.c.l.b16 %v544
        %v1505 = vunpack.c.l.b16 %v545
        %v1506 = vunpack.c.l.b16 %v546
        %v1507 = vunpack.c.l.b16 %v547
        %v1508 = vunpack.c.l.b16 %v548
        %v1509 = vunpack.c.l.b16 %v549
        %v1510 = vunpack.c.l.b16 %v550
        %v1511 = vunpack.c.l.b16 %v551
        %v1512 = vunpack.c.l.b16 %v552
        %v1513 = vunpack.c.l.b16 %v553
        %v1514 = vunpack.c.l.b16 %v554
        %v1515 = vunpack.c.l.b16 %v555
        %v1516 = vunpack.c.l.b16 %v556
        %v1517 = vunpack.c.l.b16 %v557
        %v1518 = vunpack.c.l.b16 %v558
        %v1519 = vunpack.c.l.b16 %v559
        %v1520 = vunpack.c.l.b16 %v560
        %v1521 = vunpack.c.l.b16 %v561
        %v1522 = vunpack.c.l.b16 %v562
        %v1523 = vunpack.c.l.b16 %v563
        %v1524 = vunpack.c.l.b16 %v564
        %v1525 = vunpack.c.l.b16 %v565
        %v1526 = vunpack.c.l.b16 %v566
        %v1527 = vunpack.c.l.b16 %v567
        %v1528 = vunpack.c.l.b16 %v568
        %v1529 = vunpack.c.l.b16 %v569
        %v1530 = vunpack.c.l.b16 %v570
        %v1531 = vunpack.c.l.b16 %v571
        %v1532 = vunpack.c.l.b16 %v572
        %v1533 = vunpack.c.l.b16 %v573
        %v1534 = vunpack.c.l.b16 %v574
        %v1535 = vunpack.c.l.b16 %v575
        %v1536 = vunpack.c.l.b16 %v576
        %v1537 = vunpack.c.l.b16 %v577
        %v1538 = vunpack.c.l.b16 %v578
        %v1539 = vunpack.c.l.b16 %v579
        %v1540 = vunpack.c.l.b16 %v580
        %v1541 = vunpack.c.l.b16 %v581
        %v1542 = vunpack.c.l.b16 %v582
        %v1543 = vunpack.c.l.b16 %v583
        %v1544 = vunpack.c.l.b16 %v584
        %v1545 = vunpack.c.l.b16 %v585
        %v1546 = vunpack.c.l.b16 %v586
        %v1547 = vunpack.c.l.b16 %v587
        %v1548 = vunpack.c.l.b16 %v588
        %v1549 = vunpack.c.l.b16 %v589
        %v1550 = vunpack.c.l.b16 %v590
        %v1551 = vunpack.c.l.b16 %v591
        %v1552 = vunpack.c.l.b16 %v592
        %v1553 = vunpack.c.l.b16 %v593
        %v1554 = vunpack.c.l.b16 %v594
        %v1555 = vunpack.c.l.b16 %v595
        %v1556 = vunpack.c.l.b16 %v596
        %v1557 = vunpack.c.l.b16 %v597
        %v1558 = vunpack.c.l.b16 %v598
        %v1559 = vunpack.c.l.b16 %v599
        %v1560 = vunpack.c.l.b16 %v600
        %v1561 = vunpack.c.l.b16 %v601
        %v1562 = vunpack.c.l.b16 %v602
        %v1563 = vpack.c.b16 %v1500, %v1499
        %v1564 = vpack.c.b16 %v1502, %v1501
        %v1565 = vpack.c.b16 %v1504, %v1503
        %v1566 = vpack.c.b16 %v1506, %v1505
        %v1567 = vpack.c.b16 %v1508, %v1507
        %v1568 = vpack.c.b16 %v1510, %v1509
        %v1569 = vpack.c.b16 %v1512, %v1511
        %v1570 = vpack.c.b16 %v1514, %v1513
        %v1571 = vpack.c.b16 %v1516, %v1515
        %v1572 = vpack.c.b16 %v1518, %v1517
        %v1573 = vpack.c.b16 %v1520, %v1519
        %v1574 = vpack.c.b16 %v1522, %v1521
        %v1575 = vpack.c.b16 %v1524, %v1523
        %v1576 = vpack.c.b16 %v1526, %v1525
        %v1577 = vpack.c.b16 %v1528, %v1527
        %v1578 = vpack.c.b16 %v1530, %v1529
        %v1579 = vpack.c.b16 %v1532, %v1531
        %v1580 = vpack.c.b16 %v1534, %v1533
        %v1581 = vpack.c.b16 %v1536, %v1535
        %v1582 = vpack.c.b16 %v1538, %v1537
        %v1583 = vpack.c.b16 %v1540, %v1539
        %v1584 = vpack.c.b16 %v1542, %v1541
        %v1585 = vpack.c.b16 %v1544, %v1543
        %v1586 = vpack.c.b16 %v1546, %v1545
        %v1587 = vpack.c.b16 %v1548, %v1547
        %v1588 = vpack.c.b16 %v1550, %v1549
        %v1589 = vpack.c.b16 %v1552, %v1551
        %v1590 = vpack.c.b16 %v1554, %v1553
        %v1591 = vpack.c.b16 %v1556, %v1555
        %v1592 = vpack.c.b16 %v1558, %v1557
        %v1593 = vpack.c.b16 %v1560, %v1559
        %v1594 = vpack.c.b16 %v1562, %v1561
        %1627 = vmatprep.subr.bf16.mxu0 0
        %1628 = vmatpush1.bf16.msra.mxu0 %v1563
        %1629 = vmatprep.subr.bf16.mxu0 0
        %1630 = vmatpush1.bf16.msra.mxu0 %v1564
        %1631 = vmatprep.subr.bf16.mxu0 0
        %1632 = vmatpush1.bf16.msra.mxu0 %v1565
        %1633 = vmatprep.subr.bf16.mxu0 0
        %1634 = vmatpush1.bf16.msra.mxu0 %v1566
        %1635 = vmatprep.subr.bf16.mxu0 0
        %1636 = vmatpush1.bf16.msra.mxu0 %v1567
        %1637 = vmatprep.subr.bf16.mxu0 0
        %1638 = vmatpush1.bf16.msra.mxu0 %v1568
        %1639 = vmatprep.subr.bf16.mxu0 0
        %1640 = vmatpush1.bf16.msra.mxu0 %v1569
        %1641 = vmatprep.subr.bf16.mxu0 0
        %1642 = vmatpush1.bf16.msra.mxu0 %v1570
        %1643 = vmatprep.subr.bf16.mxu0 0
        %1644 = vmatpush1.bf16.msra.mxu0 %v1571
        %1645 = vmatprep.subr.bf16.mxu0 0
        %1646 = vmatpush1.bf16.msra.mxu0 %v1572
        %1647 = vmatprep.subr.bf16.mxu0 0
        %1648 = vmatpush1.bf16.msra.mxu0 %v1573
        %1649 = vmatprep.subr.bf16.mxu0 0
        %1650 = vmatpush1.bf16.msra.mxu0 %v1574
        %1651 = vmatprep.subr.bf16.mxu0 0
        %1652 = vmatpush1.bf16.msra.mxu0 %v1575
        %1653 = vmatprep.subr.bf16.mxu0 0
        %1654 = vmatpush1.bf16.msra.mxu0 %v1576
        %1655 = vmatprep.subr.bf16.mxu0 0
        %1656 = vmatpush1.bf16.msra.mxu0 %v1577
        %1657 = vmatprep.subr.bf16.mxu0 0
        %1658 = vmatpush1.bf16.msra.mxu0 %v1578
        %1659 = vmatprep.mubr.bf16.mxu0 %v1180
        %1660 = vmatmul.mubr.bf16.gmra.mrb[0].mxu0 %v1179
        %v1661 = vpop.f32.mrb[0].mxu0
        %v1662 = vadd.f32 0.0, %v1661
        %v1663 = vpop.f32.mrb[0].mxu0
        %v1664 = vpop.f32.mrb[0].mxu0
        %v1665 = vadd.f32 0.0, %v1664
        %v1666 = vpop.f32.mrb[0].mxu0
        %1667 = vmatprep.mubr.bf16.mxu0 %v1184
        %1668 = vmatmul.mubr.bf16.gmra.mrb[0].mxu0 %v1183
        %v1669 = vpop.f32.mrb[0].mxu0
        %v1670 = vadd.f32 0.0, %v1669
        %v1671 = vpop.f32.mrb[0].mxu0
        %v1672 = vpop.f32.mrb[0].mxu0
        %v1673 = vadd.f32 0.0, %v1672
        %v1674 = vpop.f32.mrb[0].mxu0
        %1675 = vmatprep.mubr.bf16.mxu0 %v1188
        %1676 = vmatmul.mubr.bf16.gmra.mrb[0].mxu0 %v1187
        %v1677 = vpop.f32.mrb[0].mxu0
        %v1678 = vadd.f32 0.0, %v1677
        %v1679 = vpop.f32.mrb[0].mxu0
        %v1680 = vpop.f32.mrb[0].mxu0
        %v1681 = vadd.f32 0.0, %v1680
        %v1682 = vpop.f32.mrb[0].mxu0
        %1683 = vmatprep.mubr.bf16.mxu0 %v1192
        %1684 = vmatmul.mubr.bf16.gmra.mrb[0].mxu0 %v1191
        %v1685 = vpop.f32.mrb[0].mxu0
        %v1686 = vadd.f32 0.0, %v1685
        %v1687 = vpop.f32.mrb[0].mxu0
        %v1688 = vpop.f32.mrb[0].mxu0
        %v1689 = vadd.f32 0.0, %v1688
        %v1690 = vpop.f32.mrb[0].mxu0
        %1691 = vmatprep.mubr.bf16.mxu0 %v1196
        %1692 = vmatmul.mubr.bf16.gmra.mrb[0].mxu0 %v1195
        %v1693 = vpop.f32.mrb[0].mxu0
        %v1694 = vadd.f32 0.0, %v1693
        %v1695 = vpop.f32.mrb[0].mxu0
        %v1696 = vpop.f32.mrb[0].mxu0
        %v1697 = vadd.f32 0.0, %v1696
        %v1698 = vpop.f32.mrb[0].mxu0
        %1699 = vmatprep.mubr.bf16.mxu0 %v1200
        %1700 = vmatmul.mubr.bf16.gmra.mrb[0].mxu0 %v1199
        %v1701 = vpop.f32.mrb[0].mxu0
        %v1702 = vadd.f32 0.0, %v1701
        %v1703 = vpop.f32.mrb[0].mxu0
        %v1704 = vpop.f32.mrb[0].mxu0
        %v1705 = vadd.f32 0.0, %v1704
        %v1706 = vpop.f32.mrb[0].mxu0
        %1707 = vmatprep.mubr.bf16.mxu0 %v1204
        %1708 = vmatmul.mubr.bf16.gmra.mrb[0].mxu0 %v1203
        %v1709 = vpop.f32.mrb[0].mxu0
        %v1710 = vadd.f32 0.0, %v1709
        %v1711 = vpop.f32.mrb[0].mxu0
        %v1712 = vpop.f32.mrb[0].mxu0
        %v1713 = vadd.f32 0.0, %v1712
        %v1714 = vpop.f32.mrb[0].mxu0
        %1715 = vmatprep.mubr.bf16.mxu0 %v1208
        %1716 = vmatmul.mubr.bf16.gmra.mrb[0].mxu0 %v1207
        %v1717 = vpop.f32.mrb[0].mxu0
        %v1718 = vadd.f32 0.0, %v1717
        %v1719 = vpop.f32.mrb[0].mxu0
        %v1720 = vpop.f32.mrb[0].mxu0
        %v1721 = vadd.f32 0.0, %v1720
        %v1722 = vpop.f32.mrb[0].mxu0
        %1723 = vmatprep.mubr.bf16.mxu0 %v1212
        %1724 = vmatmul.mubr.bf16.gmra.mrb[0].mxu0 %v1211
        %v1725 = vpop.f32.mrb[0].mxu0
        %v1726 = vadd.f32 0.0, %v1725
        %v1727 = vpop.f32.mrb[0].mxu0
        %v1728 = vpop.f32.mrb[0].mxu0
        %v1729 = vadd.f32 0.0, %v1728
        %v1730 = vpop.f32.mrb[0].mxu0
        %1731 = vmatprep.mubr.bf16.mxu0 %v1216
        %1732 = vmatmul.mubr.bf16.gmra.mrb[0].mxu0 %v1215
        %v1733 = vpop.f32.mrb[0].mxu0
        %v1734 = vadd.f32 0.0, %v1733
        %v1735 = vpop.f32.mrb[0].mxu0
        %v1736 = vpop.f32.mrb[0].mxu0
        %v1737 = vadd.f32 0.0, %v1736
        %v1738 = vpop.f32.mrb[0].mxu0
        %1739 = vmatprep.mubr.bf16.mxu0 %v1220
        %1740 = vmatmul.mubr.bf16.gmra.mrb[0].mxu0 %v1219
        %v1741 = vpop.f32.mrb[0].mxu0
        %v1742 = vadd.f32 0.0, %v1741
        %v1743 = vpop.f32.mrb[0].mxu0
        %v1744 = vpop.f32.mrb[0].mxu0
        %v1745 = vadd.f32 0.0, %v1744
        %v1746 = vpop.f32.mrb[0].mxu0
        %1747 = vmatprep.mubr.bf16.mxu0 %v1224
        %1748 = vmatmul.mubr.bf16.gmra.mrb[0].mxu0 %v1223
        %v1749 = vpop.f32.mrb[0].mxu0
        %v1750 = vadd.f32 0.0, %v1749
        %v1751 = vpop.f32.mrb[0].mxu0
        %v1752 = vpop.f32.mrb[0].mxu0
        %v1753 = vadd.f32 0.0, %v1752
        %v1754 = vpop.f32.mrb[0].mxu0
        %1755 = vmatprep.mubr.bf16.mxu0 %v1228
        %1756 = vmatmul.mubr.bf16.gmra.mrb[0].mxu0 %v1227
        %v1757 = vpop.f32.mrb[0].mxu0
        %v1758 = vadd.f32 0.0, %v1757
        %v1759 = vpop.f32.mrb[0].mxu0
        %v1760 = vpop.f32.mrb[0].mxu0
        %v1761 = vadd.f32 0.0, %v1760
        %v1762 = vpop.f32.mrb[0].mxu0
        %1763 = vmatprep.mubr.bf16.mxu0 %v1232
        %1764 = vmatmul.mubr.bf16.gmra.mrb[0].mxu0 %v1231
        %v1765 = vpop.f32.mrb[0].mxu0
        %v1766 = vadd.f32 0.0, %v1765
        %v1767 = vpop.f32.mrb[0].mxu0
        %v1768 = vpop.f32.mrb[0].mxu0
        %v1769 = vadd.f32 0.0, %v1768
        %v1770 = vpop.f32.mrb[0].mxu0
        %1771 = vmatprep.mubr.bf16.mxu0 %v1236
        %1772 = vmatmul.mubr.bf16.gmra.mrb[0].mxu0 %v1235
        %v1773 = vpop.f32.mrb[0].mxu0
        %v1774 = vadd.f32 0.0, %v1773
        %v1775 = vpop.f32.mrb[0].mxu0
        %v1776 = vpop.f32.mrb[0].mxu0
        %v1777 = vadd.f32 0.0, %v1776
        %v1778 = vpop.f32.mrb[0].mxu0
        %1779 = vmatprep.mubr.bf16.mxu0 %v1240
        %1780 = vmatmul.mubr.bf16.gmra.mrb[0].mxu0 %v1239
        %v1781 = vpop.f32.mrb[0].mxu0
        %v1782 = vadd.f32 0.0, %v1781
        %v1783 = vpop.f32.mrb[0].mxu0
        %v1784 = vpop.f32.mrb[0].mxu0
        %v1785 = vadd.f32 0.0, %v1784
        %v1786 = vpop.f32.mrb[0].mxu0
        %1787 = vmatprep.mubr.bf16.mxu0 %v1244
        %1788 = vmatmul.mubr.bf16.gmra.mrb[0].mxu0 %v1243
        %v1789 = vpop.f32.mrb[0].mxu0
        %v1790 = vadd.f32 0.0, %v1789
        %v1791 = vpop.f32.mrb[0].mxu0
        %v1792 = vpop.f32.mrb[0].mxu0
        %v1793 = vadd.f32 0.0, %v1792
        %v1794 = vpop.f32.mrb[0].mxu0
        %1795 = vmatprep.mubr.bf16.mxu0 %v1248
        %1796 = vmatmul.mubr.bf16.gmra.mrb[0].mxu0 %v1247
        %v1797 = vpop.f32.mrb[0].mxu0
        %v1798 = vadd.f32 0.0, %v1797
        %v1799 = vpop.f32.mrb[0].mxu0
        %v1800 = vpop.f32.mrb[0].mxu0
        %v1801 = vadd.f32 0.0, %v1800
        %v1802 = vpop.f32.mrb[0].mxu0
        %1803 = vmatprep.mubr.bf16.mxu0 %v1252
        %1804 = vmatmul.mubr.bf16.gmra.mrb[0].mxu0 %v1251
        %v1805 = vpop.f32.mrb[0].mxu0
        %v1806 = vadd.f32 0.0, %v1805
        %v1807 = vpop.f32.mrb[0].mxu0
        %v1808 = vpop.f32.mrb[0].mxu0
        %v1809 = vadd.f32 0.0, %v1808
        %v1810 = vpop.f32.mrb[0].mxu0
        %1811 = vmatprep.mubr.bf16.mxu0 %v1256
        %1812 = vmatmul.mubr.bf16.gmra.mrb[0].mxu0 %v1255
        %v1813 = vpop.f32.mrb[0].mxu0
        %v1814 = vadd.f32 0.0, %v1813
        %v1815 = vpop.f32.mrb[0].mxu0
        %v1816 = vpop.f32.mrb[0].mxu0
        %v1817 = vadd.f32 0.0, %v1816
        %v1818 = vpop.f32.mrb[0].mxu0
        %1819 = vmatprep.mubr.bf16.mxu0 %v1260
        %1820 = vmatmul.mubr.bf16.gmra.mrb[0].mxu0 %v1259
        %v1821 = vpop.f32.mrb[0].mxu0
        %v1822 = vadd.f32 0.0, %v1821
        %v1823 = vpop.f32.mrb[0].mxu0
        %v1824 = vpop.f32.mrb[0].mxu0
        %v1825 = vadd.f32 0.0, %v1824
        %v1826 = vpop.f32.mrb[0].mxu0
        %1827 = vmatprep.mubr.bf16.mxu0 %v1264
        %1828 = vmatmul.mubr.bf16.gmra.mrb[0].mxu0 %v1263
        %v1829 = vpop.f32.mrb[0].mxu0
        %v1830 = vadd.f32 0.0, %v1829
        %v1831 = vpop.f32.mrb[0].mxu0
        %v1832 = vpop.f32.mrb[0].mxu0
        %v1833 = vadd.f32 0.0, %v1832
        %v1834 = vpop.f32.mrb[0].mxu0
        %1835 = vmatprep.mubr.bf16.mxu0 %v1268
        %1836 = vmatmul.mubr.bf16.gmra.mrb[0].mxu0 %v1267
        %v1837 = vpop.f32.mrb[0].mxu0
        %v1838 = vadd.f32 0.0, %v1837
        %v1839 = vpop.f32.mrb[0].mxu0
        %v1840 = vpop.f32.mrb[0].mxu0
        %v1841 = vadd.f32 0.0, %v1840
        %v1842 = vpop.f32.mrb[0].mxu0
        %1843 = vmatprep.mubr.bf16.mxu0 %v1272
        %1844 = vmatmul.mubr.bf16.gmra.mrb[0].mxu0 %v1271
        %v1845 = vpop.f32.mrb[0].mxu0
        %v1846 = vadd.f32 0.0, %v1845
        %v1847 = vpop.f32.mrb[0].mxu0
        %v1848 = vpop.f32.mrb[0].mxu0
        %v1849 = vadd.f32 0.0, %v1848
        %v1850 = vpop.f32.mrb[0].mxu0
        %1851 = vmatprep.mubr.bf16.mxu0 %v1276
        %1852 = vmatmul.mubr.bf16.gmra.mrb[0].mxu0 %v1275
        %v1853 = vpop.f32.mrb[0].mxu0
        %v1854 = vadd.f32 0.0, %v1853
        %v1855 = vpop.f32.mrb[0].mxu0
        %v1856 = vpop.f32.mrb[0].mxu0
        %v1857 = vadd.f32 0.0, %v1856
        %v1858 = vpop.f32.mrb[0].mxu0
        %1859 = vmatprep.mubr.bf16.mxu0 %v1280
        %1860 = vmatmul.mubr.bf16.gmra.mrb[0].mxu0 %v1279
        %v1861 = vpop.f32.mrb[0].mxu0
        %v1862 = vadd.f32 0.0, %v1861
        %v1863 = vpop.f32.mrb[0].mxu0
        %v1864 = vpop.f32.mrb[0].mxu0
        %v1865 = vadd.f32 0.0, %v1864
        %v1866 = vpop.f32.mrb[0].mxu0
        %1867 = vmatprep.mubr.bf16.mxu0 %v1284
        %1868 = vmatmul.mubr.bf16.gmra.mrb[0].mxu0 %v1283
        %v1869 = vpop.f32.mrb[0].mxu0
        %v1870 = vadd.f32 0.0, %v1869
        %v1871 = vpop.f32.mrb[0].mxu0
        %v1872 = vpop.f32.mrb[0].mxu0
        %v1873 = vadd.f32 0.0, %v1872
        %v1874 = vpop.f32.mrb[0].mxu0
        %1875 = vmatprep.mubr.bf16.mxu0 %v1288
        %1876 = vmatmul.mubr.bf16.gmra.mrb[0].mxu0 %v1287
        %v1877 = vpop.f32.mrb[0].mxu0
        %v1878 = vadd.f32 0.0, %v1877
        %v1879 = vpop.f32.mrb[0].mxu0
        %v1880 = vpop.f32.mrb[0].mxu0
        %v1881 = vadd.f32 0.0, %v1880
        %v1882 = vpop.f32.mrb[0].mxu0
        %1883 = vmatprep.mubr.bf16.mxu0 %v1292
        %1884 = vmatmul.mubr.bf16.gmra.mrb[0].mxu0 %v1291
        %v1885 = vpop.f32.mrb[0].mxu0
        %v1886 = vadd.f32 0.0, %v1885
        %v1887 = vpop.f32.mrb[0].mxu0
        %v1888 = vpop.f32.mrb[0].mxu0
        %v1889 = vadd.f32 0.0, %v1888
        %v1890 = vpop.f32.mrb[0].mxu0
        %1891 = vmatprep.mubr.bf16.mxu0 %v1296
        %1892 = vmatmul.mubr.bf16.gmra.mrb[0].mxu0 %v1295
        %v1893 = vpop.f32.mrb[0].mxu0
        %v1894 = vadd.f32 0.0, %v1893
        %v1895 = vpop.f32.mrb[0].mxu0
        %v1896 = vpop.f32.mrb[0].mxu0
        %v1897 = vadd.f32 0.0, %v1896
        %v1898 = vpop.f32.mrb[0].mxu0
        %1899 = vmatprep.mubr.bf16.mxu0 %v1300
        %1900 = vmatmul.mubr.bf16.gmra.mrb[0].mxu0 %v1299
        %v1901 = vpop.f32.mrb[0].mxu0
        %v1902 = vadd.f32 0.0, %v1901
        %v1903 = vpop.f32.mrb[0].mxu0
        %v1904 = vpop.f32.mrb[0].mxu0
        %v1905 = vadd.f32 0.0, %v1904
        %v1906 = vpop.f32.mrb[0].mxu0
        %1907 = vmatprep.mubr.bf16.mxu0 %v1304
        %1908 = vmatmul.mubr.bf16.gmra.mrb[0].mxu0 %v1303
        %v1909 = vpop.f32.mrb[0].mxu0
        %v1910 = vadd.f32 0.0, %v1909
        %v1911 = vpop.f32.mrb[0].mxu0
        %v1912 = vpop.f32.mrb[0].mxu0
        %v1913 = vadd.f32 0.0, %v1912
        %v1914 = vpop.f32.mrb[0].mxu0
        %1915 = vdwg.mxu0
        %1916 = vmatprep.subr.bf16.mxu0 0
        %1917 = vmatpush1.bf16.msra.mxu0 %v1579
        %1918 = vmatprep.subr.bf16.mxu0 0
        %1919 = vmatpush1.bf16.msra.mxu0 %v1580
        %1920 = vmatprep.subr.bf16.mxu0 0
        %1921 = vmatpush1.bf16.msra.mxu0 %v1581
        %1922 = vmatprep.subr.bf16.mxu0 0
        %1923 = vmatpush1.bf16.msra.mxu0 %v1582
        %1924 = vmatprep.subr.bf16.mxu0 0
        %1925 = vmatpush1.bf16.msra.mxu0 %v1583
        %1926 = vmatprep.subr.bf16.mxu0 0
        %1927 = vmatpush1.bf16.msra.mxu0 %v1584
        %1928 = vmatprep.subr.bf16.mxu0 0
        %1929 = vmatpush1.bf16.msra.mxu0 %v1585
        %1930 = vmatprep.subr.bf16.mxu0 0
        %1931 = vmatpush1.bf16.msra.mxu0 %v1586
        %1932 = vmatprep.subr.bf16.mxu0 0
        %1933 = vmatpush1.bf16.msra.mxu0 %v1587
        %1934 = vmatprep.subr.bf16.mxu0 0
        %1935 = vmatpush1.bf16.msra.mxu0 %v1588
        %1936 = vmatprep.subr.bf16.mxu0 0
        %1937 = vmatpush1.bf16.msra.mxu0 %v1589
        %1938 = vmatprep.subr.bf16.mxu0 0
        %1939 = vmatpush1.bf16.msra.mxu0 %v1590
        %1940 = vmatprep.subr.bf16.mxu0 0
        %1941 = vmatpush1.bf16.msra.mxu0 %v1591
        %1942 = vmatprep.subr.bf16.mxu0 0
        %1943 = vmatpush1.bf16.msra.mxu0 %v1592
        %1944 = vmatprep.subr.bf16.mxu0 0
        %1945 = vmatpush1.bf16.msra.mxu0 %v1593
        %1946 = vmatprep.subr.bf16.mxu0 0
        %1947 = vmatpush1.bf16.msra.mxu0 %v1594
        %1948 = vmatprep.mubr.bf16.mxu0 %v1182
        %1949 = vmatmul.mubr.bf16.gmra.mrb[0].mxu0 %v1181
        %v1950 = vpop.f32.mrb[0].mxu0
        %v1951 = vadd.f32 %v1662, %v1950
        %v1952 = vpop.f32.mrb[0].mxu0
        %v1953 = vpop.f32.mrb[0].mxu0
        %v1954 = vadd.f32 %v1665, %v1953
        %v1955 = vpop.f32.mrb[0].mxu0
        %1956 = vmatprep.mubr.bf16.mxu0 %v1186
        %1957 = vmatmul.mubr.bf16.gmra.mrb[0].mxu0 %v1185
        %v1958 = vpop.f32.mrb[0].mxu0
        %v1959 = vadd.f32 %v1670, %v1958
        %v1960 = vpop.f32.mrb[0].mxu0
        %v1961 = vpop.f32.mrb[0].mxu0
        %v1962 = vadd.f32 %v1673, %v1961
        %v1963 = vpop.f32.mrb[0].mxu0
        %1964 = vmatprep.mubr.bf16.mxu0 %v1190
        %1965 = vmatmul.mubr.bf16.gmra.mrb[0].mxu0 %v1189
        %v1966 = vpop.f32.mrb[0].mxu0
        %v1967 = vadd.f32 %v1678, %v1966
        %v1968 = vpop.f32.mrb[0].mxu0
        %v1969 = vpop.f32.mrb[0].mxu0
        %v1970 = vadd.f32 %v1681, %v1969
        %v1971 = vpop.f32.mrb[0].mxu0
        %1972 = vmatprep.mubr.bf16.mxu0 %v1194
        %1973 = vmatmul.mubr.bf16.gmra.mrb[0].mxu0 %v1193
        %v1974 = vpop.f32.mrb[0].mxu0
        %v1975 = vadd.f32 %v1686, %v1974
        %v1976 = vpop.f32.mrb[0].mxu0
        %v1977 = vpop.f32.mrb[0].mxu0
        %v1978 = vadd.f32 %v1689, %v1977
        %v1979 = vpop.f32.mrb[0].mxu0
        %1980 = vmatprep.mubr.bf16.mxu0 %v1198
        %1981 = vmatmul.mubr.bf16.gmra.mrb[0].mxu0 %v1197
        %v1982 = vpop.f32.mrb[0].mxu0
        %v1983 = vadd.f32 %v1694, %v1982
        %v1984 = vpop.f32.mrb[0].mxu0
        %v1985 = vpop.f32.mrb[0].mxu0
        %v1986 = vadd.f32 %v1697, %v1985
        %v1987 = vpop.f32.mrb[0].mxu0
        %1988 = vmatprep.mubr.bf16.mxu0 %v1202
        %1989 = vmatmul.mubr.bf16.gmra.mrb[0].mxu0 %v1201
        %v1990 = vpop.f32.mrb[0].mxu0
        %v1991 = vadd.f32 %v1702, %v1990
        %v1992 = vpop.f32.mrb[0].mxu0
        %v1993 = vpop.f32.mrb[0].mxu0
        %v1994 = vadd.f32 %v1705, %v1993
        %v1995 = vpop.f32.mrb[0].mxu0
        %1996 = vmatprep.mubr.bf16.mxu0 %v1206
        %1997 = vmatmul.mubr.bf16.gmra.mrb[0].mxu0 %v1205
        %v1998 = vpop.f32.mrb[0].mxu0
        %v1999 = vadd.f32 %v1710, %v1998
        %v2000 = vpop.f32.mrb[0].mxu0
        %v2001 = vpop.f32.mrb[0].mxu0
        %v2002 = vadd.f32 %v1713, %v2001
        %v2003 = vpop.f32.mrb[0].mxu0
        %2004 = vmatprep.mubr.bf16.mxu0 %v1210
        %2005 = vmatmul.mubr.bf16.gmra.mrb[0].mxu0 %v1209
        %v2006 = vpop.f32.mrb[0].mxu0
        %v2007 = vadd.f32 %v1718, %v2006
        %v2008 = vpop.f32.mrb[0].mxu0
        %v2009 = vpop.f32.mrb[0].mxu0
        %v2010 = vadd.f32 %v1721, %v2009
        %v2011 = vpop.f32.mrb[0].mxu0
        %2012 = vmatprep.mubr.bf16.mxu0 %v1214
        %2013 = vmatmul.mubr.bf16.gmra.mrb[0].mxu0 %v1213
        %v2014 = vpop.f32.mrb[0].mxu0
        %v2015 = vadd.f32 %v1726, %v2014
        %v2016 = vpop.f32.mrb[0].mxu0
        %v2017 = vpop.f32.mrb[0].mxu0
        %v2018 = vadd.f32 %v1729, %v2017
        %v2019 = vpop.f32.mrb[0].mxu0
        %2020 = vmatprep.mubr.bf16.mxu0 %v1218
        %2021 = vmatmul.mubr.bf16.gmra.mrb[0].mxu0 %v1217
        %v2022 = vpop.f32.mrb[0].mxu0
        %v2023 = vadd.f32 %v1734, %v2022
        %v2024 = vpop.f32.mrb[0].mxu0
        %v2025 = vpop.f32.mrb[0].mxu0
        %v2026 = vadd.f32 %v1737, %v2025
        %v2027 = vpop.f32.mrb[0].mxu0
        %2028 = vmatprep.mubr.bf16.mxu0 %v1222
        %2029 = vmatmul.mubr.bf16.gmra.mrb[0].mxu0 %v1221
        %v2030 = vpop.f32.mrb[0].mxu0
        %v2031 = vadd.f32 %v1742, %v2030
        %v2032 = vpop.f32.mrb[0].mxu0
        %v2033 = vpop.f32.mrb[0].mxu0
        %v2034 = vadd.f32 %v1745, %v2033
        %v2035 = vpop.f32.mrb[0].mxu0
        %2036 = vmatprep.mubr.bf16.mxu0 %v1226
        %2037 = vmatmul.mubr.bf16.gmra.mrb[0].mxu0 %v1225
        %v2038 = vpop.f32.mrb[0].mxu0
        %v2039 = vadd.f32 %v1750, %v2038
        %v2040 = vpop.f32.mrb[0].mxu0
        %v2041 = vpop.f32.mrb[0].mxu0
        %v2042 = vadd.f32 %v1753, %v2041
        %v2043 = vpop.f32.mrb[0].mxu0
        %2044 = vmatprep.mubr.bf16.mxu0 %v1230
        %2045 = vmatmul.mubr.bf16.gmra.mrb[0].mxu0 %v1229
        %v2046 = vpop.f32.mrb[0].mxu0
        %v2047 = vadd.f32 %v1758, %v2046
        %v2048 = vpop.f32.mrb[0].mxu0
        %v2049 = vpop.f32.mrb[0].mxu0
        %v2050 = vadd.f32 %v1761, %v2049
        %v2051 = vpop.f32.mrb[0].mxu0
        %2052 = vmatprep.mubr.bf16.mxu0 %v1234
        %2053 = vmatmul.mubr.bf16.gmra.mrb[0].mxu0 %v1233
        %v2054 = vpop.f32.mrb[0].mxu0
        %v2055 = vadd.f32 %v1766, %v2054
        %v2056 = vpop.f32.mrb[0].mxu0
        %v2057 = vpop.f32.mrb[0].mxu0
        %v2058 = vadd.f32 %v1769, %v2057
        %v2059 = vpop.f32.mrb[0].mxu0
        %2060 = vmatprep.mubr.bf16.mxu0 %v1238
        %2061 = vmatmul.mubr.bf16.gmra.mrb[0].mxu0 %v1237
        %v2062 = vpop.f32.mrb[0].mxu0
        %v2063 = vadd.f32 %v1774, %v2062
        %v2064 = vpop.f32.mrb[0].mxu0
        %v2065 = vpop.f32.mrb[0].mxu0
        %v2066 = vadd.f32 %v1777, %v2065
        %v2067 = vpop.f32.mrb[0].mxu0
        %2068 = vmatprep.mubr.bf16.mxu0 %v1242
        %2069 = vmatmul.mubr.bf16.gmra.mrb[0].mxu0 %v1241
        %v2070 = vpop.f32.mrb[0].mxu0
        %v2071 = vadd.f32 %v1782, %v2070
        %v2072 = vpop.f32.mrb[0].mxu0
        %v2073 = vpop.f32.mrb[0].mxu0
        %v2074 = vadd.f32 %v1785, %v2073
        %v2075 = vpop.f32.mrb[0].mxu0
        %2076 = vmatprep.mubr.bf16.mxu0 %v1246
        %2077 = vmatmul.mubr.bf16.gmra.mrb[0].mxu0 %v1245
        %v2078 = vpop.f32.mrb[0].mxu0
        %v2079 = vadd.f32 %v1790, %v2078
        %v2080 = vpop.f32.mrb[0].mxu0
        %v2081 = vpop.f32.mrb[0].mxu0
        %v2082 = vadd.f32 %v1793, %v2081
        %v2083 = vpop.f32.mrb[0].mxu0
        %2084 = vmatprep.mubr.bf16.mxu0 %v1250
        %2085 = vmatmul.mubr.bf16.gmra.mrb[0].mxu0 %v1249
        %v2086 = vpop.f32.mrb[0].mxu0
        %v2087 = vadd.f32 %v1798, %v2086
        %v2088 = vpop.f32.mrb[0].mxu0
        %v2089 = vpop.f32.mrb[0].mxu0
        %v2090 = vadd.f32 %v1801, %v2089
        %v2091 = vpop.f32.mrb[0].mxu0
        %2092 = vmatprep.mubr.bf16.mxu0 %v1254
        %2093 = vmatmul.mubr.bf16.gmra.mrb[0].mxu0 %v1253
        %v2094 = vpop.f32.mrb[0].mxu0
        %v2095 = vadd.f32 %v1806, %v2094
        %v2096 = vpop.f32.mrb[0].mxu0
        %v2097 = vpop.f32.mrb[0].mxu0
        %v2098 = vadd.f32 %v1809, %v2097
        %v2099 = vpop.f32.mrb[0].mxu0
        %2100 = vmatprep.mubr.bf16.mxu0 %v1258
        %2101 = vmatmul.mubr.bf16.gmra.mrb[0].mxu0 %v1257
        %v2102 = vpop.f32.mrb[0].mxu0
        %v2103 = vadd.f32 %v1814, %v2102
        %v2104 = vpop.f32.mrb[0].mxu0
        %v2105 = vpop.f32.mrb[0].mxu0
        %v2106 = vadd.f32 %v1817, %v2105
        %v2107 = vpop.f32.mrb[0].mxu0
        %2108 = vmatprep.mubr.bf16.mxu0 %v1262
        %2109 = vmatmul.mubr.bf16.gmra.mrb[0].mxu0 %v1261
        %v2110 = vpop.f32.mrb[0].mxu0
        %v2111 = vadd.f32 %v1822, %v2110
        %v2112 = vpop.f32.mrb[0].mxu0
        %v2113 = vpop.f32.mrb[0].mxu0
        %v2114 = vadd.f32 %v1825, %v2113
        %v2115 = vpop.f32.mrb[0].mxu0
        %2116 = vmatprep.mubr.bf16.mxu0 %v1266
        %2117 = vmatmul.mubr.bf16.gmra.mrb[0].mxu0 %v1265
        %v2118 = vpop.f32.mrb[0].mxu0
        %v2119 = vadd.f32 %v1830, %v2118
        %v2120 = vpop.f32.mrb[0].mxu0
        %v2121 = vpop.f32.mrb[0].mxu0
        %v2122 = vadd.f32 %v1833, %v2121
        %v2123 = vpop.f32.mrb[0].mxu0
        %2124 = vmatprep.mubr.bf16.mxu0 %v1270
        %2125 = vmatmul.mubr.bf16.gmra.mrb[0].mxu0 %v1269
        %v2126 = vpop.f32.mrb[0].mxu0
        %v2127 = vadd.f32 %v1838, %v2126
        %v2128 = vpop.f32.mrb[0].mxu0
        %v2129 = vpop.f32.mrb[0].mxu0
        %v2130 = vadd.f32 %v1841, %v2129
        %v2131 = vpop.f32.mrb[0].mxu0
        %2132 = vmatprep.mubr.bf16.mxu0 %v1274
        %2133 = vmatmul.mubr.bf16.gmra.mrb[0].mxu0 %v1273
        %v2134 = vpop.f32.mrb[0].mxu0
        %v2135 = vadd.f32 %v1846, %v2134
        %v2136 = vpop.f32.mrb[0].mxu0
        %v2137 = vpop.f32.mrb[0].mxu0
        %v2138 = vadd.f32 %v1849, %v2137
        %v2139 = vpop.f32.mrb[0].mxu0
        %2140 = vmatprep.mubr.bf16.mxu0 %v1278
        %2141 = vmatmul.mubr.bf16.gmra.mrb[0].mxu0 %v1277
        %v2142 = vpop.f32.mrb[0].mxu0
        %v2143 = vadd.f32 %v1854, %v2142
        %v2144 = vpop.f32.mrb[0].mxu0
        %v2145 = vpop.f32.mrb[0].mxu0
        %v2146 = vadd.f32 %v1857, %v2145
        %v2147 = vpop.f32.mrb[0].mxu0
        %2148 = vmatprep.mubr.bf16.mxu0 %v1282
        %2149 = vmatmul.mubr.bf16.gmra.mrb[0].mxu0 %v1281
        %v2150 = vpop.f32.mrb[0].mxu0
        %v2151 = vadd.f32 %v1862, %v2150
        %v2152 = vpop.f32.mrb[0].mxu0
        %v2153 = vpop.f32.mrb[0].mxu0
        %v2154 = vadd.f32 %v1865, %v2153
        %v2155 = vpop.f32.mrb[0].mxu0
        %2156 = vmatprep.mubr.bf16.mxu0 %v1286
        %2157 = vmatmul.mubr.bf16.gmra.mrb[0].mxu0 %v1285
        %v2158 = vpop.f32.mrb[0].mxu0
        %v2159 = vadd.f32 %v1870, %v2158
        %v2160 = vpop.f32.mrb[0].mxu0
        %v2161 = vpop.f32.mrb[0].mxu0
        %v2162 = vadd.f32 %v1873, %v2161
        %v2163 = vpop.f32.mrb[0].mxu0
        %2164 = vmatprep.mubr.bf16.mxu0 %v1290
        %2165 = vmatmul.mubr.bf16.gmra.mrb[0].mxu0 %v1289
        %v2166 = vpop.f32.mrb[0].mxu0
        %v2167 = vadd.f32 %v1878, %v2166
        %v2168 = vpop.f32.mrb[0].mxu0
        %v2169 = vpop.f32.mrb[0].mxu0
        %v2170 = vadd.f32 %v1881, %v2169
        %v2171 = vpop.f32.mrb[0].mxu0
        %2172 = vmatprep.mubr.bf16.mxu0 %v1294
        %2173 = vmatmul.mubr.bf16.gmra.mrb[0].mxu0 %v1293
        %v2174 = vpop.f32.mrb[0].mxu0
        %v2175 = vadd.f32 %v1886, %v2174
        %v2176 = vpop.f32.mrb[0].mxu0
        %v2177 = vpop.f32.mrb[0].mxu0
        %v2178 = vadd.f32 %v1889, %v2177
        %v2179 = vpop.f32.mrb[0].mxu0
        %2180 = vmatprep.mubr.bf16.mxu0 %v1298
        %2181 = vmatmul.mubr.bf16.gmra.mrb[0].mxu0 %v1297
        %v2182 = vpop.f32.mrb[0].mxu0
        %v2183 = vadd.f32 %v1894, %v2182
        %v2184 = vpop.f32.mrb[0].mxu0
        %v2185 = vpop.f32.mrb[0].mxu0
        %v2186 = vadd.f32 %v1897, %v2185
        %v2187 = vpop.f32.mrb[0].mxu0
        %2188 = vmatprep.mubr.bf16.mxu0 %v1302
        %2189 = vmatmul.mubr.bf16.gmra.mrb[0].mxu0 %v1301
        %v2190 = vpop.f32.mrb[0].mxu0
        %v2191 = vadd.f32 %v1902, %v2190
        %v2192 = vpop.f32.mrb[0].mxu0
        %v2193 = vpop.f32.mrb[0].mxu0
        %v2194 = vadd.f32 %v1905, %v2193
        %v2195 = vpop.f32.mrb[0].mxu0
        %2196 = vmatprep.mubr.bf16.mxu0 %v1306
        %2197 = vmatmul.mubr.bf16.gmra.mrb[0].mxu0 %v1305
        %v2198 = vpop.f32.mrb[0].mxu0
        %v2199 = vadd.f32 %v1910, %v2198
        %v2200 = vpop.f32.mrb[0].mxu0
        %v2201 = vpop.f32.mrb[0].mxu0
        %v2202 = vadd.f32 %v1913, %v2201
        %v2203 = vpop.f32.mrb[0].mxu0
        %2204 = vdwg.mxu0
        %v2205 = vadd.f32 %v603, %v1951
        %v2206 = vadd.f32 %v604, %v1954
        %v2207 = vadd.f32 %v605, %v1959
        %v2208 = vadd.f32 %v606, %v1962
        %v2209 = vadd.f32 %v607, %v1967
        %v2210 = vadd.f32 %v608, %v1970
        %v2211 = vadd.f32 %v609, %v1975
        %v2212 = vadd.f32 %v610, %v1978
        %v2213 = vadd.f32 %v611, %v1983
        %v2214 = vadd.f32 %v612, %v1986
        %v2215 = vadd.f32 %v613, %v1991
        %v2216 = vadd.f32 %v614, %v1994
        %v2217 = vadd.f32 %v615, %v1999
        %v2218 = vadd.f32 %v616, %v2002
        %v2219 = vadd.f32 %v617, %v2007
        %v2220 = vadd.f32 %v618, %v2010
        %v2221 = vadd.f32 %v619, %v2015
        %v2222 = vadd.f32 %v620, %v2018
        %v2223 = vadd.f32 %v621, %v2023
        %v2224 = vadd.f32 %v622, %v2026
        %v2225 = vadd.f32 %v623, %v2031
        %v2226 = vadd.f32 %v624, %v2034
        %v2227 = vadd.f32 %v625, %v2039
        %v2228 = vadd.f32 %v626, %v2042
        %v2229 = vadd.f32 %v627, %v2047
        %v2230 = vadd.f32 %v628, %v2050
        %v2231 = vadd.f32 %v629, %v2055
        %v2232 = vadd.f32 %v630, %v2058
        %v2233 = vadd.f32 %v631, %v2063
        %v2234 = vadd.f32 %v632, %v2066
        %v2235 = vadd.f32 %v633, %v2071
        %v2236 = vadd.f32 %v634, %v2074
        %v2237 = vadd.f32 %v635, %v2079
        %v2238 = vadd.f32 %v636, %v2082
        %v2239 = vadd.f32 %v637, %v2087
        %v2240 = vadd.f32 %v638, %v2090
        %v2241 = vadd.f32 %v639, %v2095
        %v2242 = vadd.f32 %v640, %v2098
        %v2243 = vadd.f32 %v641, %v2103
        %v2244 = vadd.f32 %v642, %v2106
        %v2245 = vadd.f32 %v643, %v2111
        %v2246 = vadd.f32 %v644, %v2114
        %v2247 = vadd.f32 %v645, %v2119
        %v2248 = vadd.f32 %v646, %v2122
        %v2249 = vadd.f32 %v647, %v2127
        %v2250 = vadd.f32 %v648, %v2130
        %v2251 = vadd.f32 %v649, %v2135
        %v2252 = vadd.f32 %v650, %v2138
        %v2253 = vadd.f32 %v651, %v2143
        %v2254 = vadd.f32 %v652, %v2146
        %v2255 = vadd.f32 %v653, %v2151
        %v2256 = vadd.f32 %v654, %v2154
        %v2257 = vadd.f32 %v655, %v2159
        %v2258 = vadd.f32 %v656, %v2162
        %v2259 = vadd.f32 %v657, %v2167
        %v2260 = vadd.f32 %v658, %v2170
        %v2261 = vadd.f32 %v659, %v2175
        %v2262 = vadd.f32 %v660, %v2178
        %v2263 = vadd.f32 %v661, %v2183
        %v2264 = vadd.f32 %v662, %v2186
        %v2265 = vadd.f32 %v663, %v2191
        %v2266 = vadd.f32 %v664, %v2194
        %v2267 = vadd.f32 %v665, %v2199
        %v2268 = vadd.f32 %v666, %v2202
        %2269 = vst [vmem:[%s463] sm:$0xff] %v2205
        %2270 = vst [vmem:[%s463 + $0x8] sm:$0xff] %v2206
        %2271 = vst [vmem:[%s463 + $0x10] sm:$0xff] %v2207
        %2272 = vst [vmem:[%s463 + $0x18] sm:$0xff] %v2208
        %2273 = vst [vmem:[%s463 + $0x20] sm:$0xff] %v2209
        %2274 = vst [vmem:[%s463 + $0x28] sm:$0xff] %v2210
        %2275 = vst [vmem:[%s463 + $0x30] sm:$0xff] %v2211
        %2276 = vst [vmem:[%s463 + $0x38] sm:$0xff] %v2212
        %2277 = vst [vmem:[%s463 + $0x40] sm:$0xff] %v2213
        %2278 = vst [vmem:[%s463 + $0x48] sm:$0xff] %v2214
        %2279 = vst [vmem:[%s463 + $0x50] sm:$0xff] %v2215
        %2280 = vst [vmem:[%s463 + $0x58] sm:$0xff] %v2216
        %2281 = vst [vmem:[%s463 + $0x60] sm:$0xff] %v2217
        %2282 = vst [vmem:[%s463 + $0x68] sm:$0xff] %v2218
        %2283 = vst [vmem:[%s463 + $0x70] sm:$0xff] %v2219
        %2284 = vst [vmem:[%s463 + $0x78] sm:$0xff] %v2220
        %2285 = vst [vmem:[%s463 + $0x80] sm:$0xff] %v2221
        %2286 = vst [vmem:[%s463 + $0x88] sm:$0xff] %v2222
        %2287 = vst [vmem:[%s463 + $0x90] sm:$0xff] %v2223
        %2288 = vst [vmem:[%s463 + $0x98] sm:$0xff] %v2224
        %2289 = vst [vmem:[%s463 + $0xa0] sm:$0xff] %v2225
        %2290 = vst [vmem:[%s463 + $0xa8] sm:$0xff] %v2226
        %2291 = vst [vmem:[%s463 + $0xb0] sm:$0xff] %v2227
        %2292 = vst [vmem:[%s463 + $0xb8] sm:$0xff] %v2228
        %2293 = vst [vmem:[%s463 + $0xc0] sm:$0xff] %v2229
        %2294 = vst [vmem:[%s463 + $0xc8] sm:$0xff] %v2230
        %2295 = vst [vmem:[%s463 + $0xd0] sm:$0xff] %v2231
        %2296 = vst [vmem:[%s463 + $0xd8] sm:$0xff] %v2232
        %2297 = vst [vmem:[%s463 + $0xe0] sm:$0xff] %v2233
        %2298 = vst [vmem:[%s463 + $0xe8] sm:$0xff] %v2234
        %2299 = vst [vmem:[%s463 + $0xf0] sm:$0xff] %v2235
        %2300 = vst [vmem:[%s463 + $0xf8] sm:$0xff] %v2236
        %2301 = vst [vmem:[%s463 + $0x100] sm:$0xff] %v2237
        %2302 = vst [vmem:[%s463 + $0x108] sm:$0xff] %v2238
        %2303 = vst [vmem:[%s463 + $0x110] sm:$0xff] %v2239
        %2304 = vst [vmem:[%s463 + $0x118] sm:$0xff] %v2240
        %2305 = vst [vmem:[%s463 + $0x120] sm:$0xff] %v2241
        %2306 = vst [vmem:[%s463 + $0x128] sm:$0xff] %v2242
        %2307 = vst [vmem:[%s463 + $0x130] sm:$0xff] %v2243
        %2308 = vst [vmem:[%s463 + $0x138] sm:$0xff] %v2244
        %2309 = vst [vmem:[%s463 + $0x140] sm:$0xff] %v2245
        %2310 = vst [vmem:[%s463 + $0x148] sm:$0xff] %v2246
        %2311 = vst [vmem:[%s463 + $0x150] sm:$0xff] %v2247
        %2312 = vst [vmem:[%s463 + $0x158] sm:$0xff] %v2248
        %2313 = vst [vmem:[%s463 + $0x160] sm:$0xff] %v2249
        %2314 = vst [vmem:[%s463 + $0x168] sm:$0xff] %v2250
        %2315 = vst [vmem:[%s463 + $0x170] sm:$0xff] %v2251
        %2316 = vst [vmem:[%s463 + $0x178] sm:$0xff] %v2252
        %2317 = vst [vmem:[%s463 + $0x180] sm:$0xff] %v2253
        %2318 = vst [vmem:[%s463 + $0x188] sm:$0xff] %v2254
        %2319 = vst [vmem:[%s463 + $0x190] sm:$0xff] %v2255
        %2320 = vst [vmem:[%s463 + $0x198] sm:$0xff] %v2256
        %2321 = vst [vmem:[%s463 + $0x1a0] sm:$0xff] %v2257
        %2322 = vst [vmem:[%s463 + $0x1a8] sm:$0xff] %v2258
        %2323 = vst [vmem:[%s463 + $0x1b0] sm:$0xff] %v2259
        %2324 = vst [vmem:[%s463 + $0x1b8] sm:$0xff] %v2260
        %2325 = vst [vmem:[%s463 + $0x1c0] sm:$0xff] %v2261
        %2326 = vst [vmem:[%s463 + $0x1c8] sm:$0xff] %v2262
        %2327 = vst [vmem:[%s463 + $0x1d0] sm:$0xff] %v2263
        %2328 = vst [vmem:[%s463 + $0x1d8] sm:$0xff] %v2264
        %2329 = vst [vmem:[%s463 + $0x1e0] sm:$0xff] %v2265
        %2330 = vst [vmem:[%s463 + $0x1e8] sm:$0xff] %v2266
        %2331 = vst [vmem:[%s463 + $0x1f0] sm:$0xff] %v2267
        %2332 = vst [vmem:[%s463 + $0x1f8] sm:$0xff] %v2268
        %p2333 = scmp.eq.s32.totalorder %s19, 1
        // Predicated region
        $region60: #{gcn_encoder.3} parent=50 // pred_check
          %p2334 = pneg %p2333
        $region61: #{gcn_encoder.3} parent=50 // pred_check_branch
          %2336 = sbr.rel (%p2334) target = $region63
        $region62: #{gcn_encoder.3} parent=50 // pred_region
          %v2337 = vld [vmem:[%s463] sm:$0xff]
          %v2338 = vld [vmem:[%s463 + $0x8] sm:$0xff]
          %v2339 = vld [vmem:[%s463 + $0x10] sm:$0xff]
          %v2340 = vld [vmem:[%s463 + $0x18] sm:$0xff]
          %v2341 = vld [vmem:[%s463 + $0x20] sm:$0xff]
          %v2342 = vld [vmem:[%s463 + $0x28] sm:$0xff]
          %v2343 = vld [vmem:[%s463 + $0x30] sm:$0xff]
          %v2344 = vld [vmem:[%s463 + $0x38] sm:$0xff]
          %v2345 = vld [vmem:[%s463 + $0x40] sm:$0xff]
          %v2346 = vld [vmem:[%s463 + $0x48] sm:$0xff]
          %v2347 = vld [vmem:[%s463 + $0x50] sm:$0xff]
          %v2348 = vld [vmem:[%s463 + $0x58] sm:$0xff]
          %v2349 = vld [vmem:[%s463 + $0x60] sm:$0xff]
          %v2350 = vld [vmem:[%s463 + $0x68] sm:$0xff]
          %v2351 = vld [vmem:[%s463 + $0x70] sm:$0xff]
          %v2352 = vld [vmem:[%s463 + $0x78] sm:$0xff]
          %v2353 = vld [vmem:[%s463 + $0x80] sm:$0xff]
          %v2354 = vld [vmem:[%s463 + $0x88] sm:$0xff]
          %v2355 = vld [vmem:[%s463 + $0x90] sm:$0xff]
          %v2356 = vld [vmem:[%s463 + $0x98] sm:$0xff]
          %v2357 = vld [vmem:[%s463 + $0xa0] sm:$0xff]
          %v2358 = vld [vmem:[%s463 + $0xa8] sm:$0xff]
          %v2359 = vld [vmem:[%s463 + $0xb0] sm:$0xff]
          %v2360 = vld [vmem:[%s463 + $0xb8] sm:$0xff]
          %v2361 = vld [vmem:[%s463 + $0xc0] sm:$0xff]
          %v2362 = vld [vmem:[%s463 + $0xc8] sm:$0xff]
          %v2363 = vld [vmem:[%s463 + $0xd0] sm:$0xff]
          %v2364 = vld [vmem:[%s463 + $0xd8] sm:$0xff]
          %v2365 = vld [vmem:[%s463 + $0xe0] sm:$0xff]
          %v2366 = vld [vmem:[%s463 + $0xe8] sm:$0xff]
          %v2367 = vld [vmem:[%s463 + $0xf0] sm:$0xff]
          %v2368 = vld [vmem:[%s463 + $0xf8] sm:$0xff]
          %v2369 = vld [vmem:[%s463 + $0x100] sm:$0xff]
          %v2370 = vld [vmem:[%s463 + $0x108] sm:$0xff]
          %v2371 = vld [vmem:[%s463 + $0x110] sm:$0xff]
          %v2372 = vld [vmem:[%s463 + $0x118] sm:$0xff]
          %v2373 = vld [vmem:[%s463 + $0x120] sm:$0xff]
          %v2374 = vld [vmem:[%s463 + $0x128] sm:$0xff]
          %v2375 = vld [vmem:[%s463 + $0x130] sm:$0xff]
          %v2376 = vld [vmem:[%s463 + $0x138] sm:$0xff]
          %v2377 = vld [vmem:[%s463 + $0x140] sm:$0xff]
          %v2378 = vld [vmem:[%s463 + $0x148] sm:$0xff]
          %v2379 = vld [vmem:[%s463 + $0x150] sm:$0xff]
          %v2380 = vld [vmem:[%s463 + $0x158] sm:$0xff]
          %v2381 = vld [vmem:[%s463 + $0x160] sm:$0xff]
          %v2382 = vld [vmem:[%s463 + $0x168] sm:$0xff]
          %v2383 = vld [vmem:[%s463 + $0x170] sm:$0xff]
          %v2384 = vld [vmem:[%s463 + $0x178] sm:$0xff]
          %v2385 = vld [vmem:[%s463 + $0x180] sm:$0xff]
          %v2386 = vld [vmem:[%s463 + $0x188] sm:$0xff]
          %v2387 = vld [vmem:[%s463 + $0x190] sm:$0xff]
          %v2388 = vld [vmem:[%s463 + $0x198] sm:$0xff]
          %v2389 = vld [vmem:[%s463 + $0x1a0] sm:$0xff]
          %v2390 = vld [vmem:[%s463 + $0x1a8] sm:$0xff]
          %v2391 = vld [vmem:[%s463 + $0x1b0] sm:$0xff]
          %v2392 = vld [vmem:[%s463 + $0x1b8] sm:$0xff]
          %v2393 = vld [vmem:[%s463 + $0x1c0] sm:$0xff]
          %v2394 = vld [vmem:[%s463 + $0x1c8] sm:$0xff]
          %v2395 = vld [vmem:[%s463 + $0x1d0] sm:$0xff]
          %v2396 = vld [vmem:[%s463 + $0x1d8] sm:$0xff]
          %v2397 = vld [vmem:[%s463 + $0x1e0] sm:$0xff]
          %v2398 = vld [vmem:[%s463 + $0x1e8] sm:$0xff]
          %v2399 = vld [vmem:[%s463 + $0x1f0] sm:$0xff]
          %v2400 = vld [vmem:[%s463 + $0x1f8] sm:$0xff]
          %v2401 = vld [vmem:[%s2] sm:$0x1]
          %v2403 = vlaneseq
          %v2404 = vshrl.u32 %v2403, 7
          %v2405 = vsub.s32 0, %v2404
          %v2406 = vrot.slane %v2401, %v2405
          %v2408 = vadd.f32 %v2337, %v2406
          %v2409 = vadd.f32 %v2338, %v2406
          %v2410 = vadd.f32 %v2339, %v2406
          %v2411 = vadd.f32 %v2340, %v2406
          %v2412 = vadd.f32 %v2341, %v2406
          %v2413 = vadd.f32 %v2342, %v2406
          %v2414 = vadd.f32 %v2343, %v2406
          %v2415 = vadd.f32 %v2344, %v2406
          %v2416 = vadd.f32 %v2345, %v2406
          %v2417 = vadd.f32 %v2346, %v2406
          %v2418 = vadd.f32 %v2347, %v2406
          %v2419 = vadd.f32 %v2348, %v2406
          %v2420 = vadd.f32 %v2349, %v2406
          %v2421 = vadd.f32 %v2350, %v2406
          %v2422 = vadd.f32 %v2351, %v2406
          %v2423 = vadd.f32 %v2352, %v2406
          %v2424 = vadd.f32 %v2353, %v2406
          %v2425 = vadd.f32 %v2354, %v2406
          %v2426 = vadd.f32 %v2355, %v2406
          %v2427 = vadd.f32 %v2356, %v2406
          %v2428 = vadd.f32 %v2357, %v2406
          %v2429 = vadd.f32 %v2358, %v2406
          %v2430 = vadd.f32 %v2359, %v2406
          %v2431 = vadd.f32 %v2360, %v2406
          %v2432 = vadd.f32 %v2361, %v2406
          %v2433 = vadd.f32 %v2362, %v2406
          %v2434 = vadd.f32 %v2363, %v2406
          %v2435 = vadd.f32 %v2364, %v2406
          %v2436 = vadd.f32 %v2365, %v2406
          %v2437 = vadd.f32 %v2366, %v2406
          %v2438 = vadd.f32 %v2367, %v2406
          %v2439 = vadd.f32 %v2368, %v2406
          %v2440 = vadd.f32 %v2369, %v2406
          %v2441 = vadd.f32 %v2370, %v2406
          %v2442 = vadd.f32 %v2371, %v2406
          %v2443 = vadd.f32 %v2372, %v2406
          %v2444 = vadd.f32 %v2373, %v2406
          %v2445 = vadd.f32 %v2374, %v2406
          %v2446 = vadd.f32 %v2375, %v2406
          %v2447 = vadd.f32 %v2376, %v2406
          %v2448 = vadd.f32 %v2377, %v2406
          %v2449 = vadd.f32 %v2378, %v2406
          %v2450 = vadd.f32 %v2379, %v2406
          %v2451 = vadd.f32 %v2380, %v2406
          %v2452 = vadd.f32 %v2381, %v2406
          %v2453 = vadd.f32 %v2382, %v2406
          %v2454 = vadd.f32 %v2383, %v2406
          %v2455 = vadd.f32 %v2384, %v2406
          %v2456 = vadd.f32 %v2385, %v2406
          %v2457 = vadd.f32 %v2386, %v2406
          %v2458 = vadd.f32 %v2387, %v2406
          %v2459 = vadd.f32 %v2388, %v2406
          %v2460 = vadd.f32 %v2389, %v2406
          %v2461 = vadd.f32 %v2390, %v2406
          %v2462 = vadd.f32 %v2391, %v2406
          %v2463 = vadd.f32 %v2392, %v2406
          %v2464 = vadd.f32 %v2393, %v2406
          %v2465 = vadd.f32 %v2394, %v2406
          %v2466 = vadd.f32 %v2395, %v2406
          %v2467 = vadd.f32 %v2396, %v2406
          %v2468 = vadd.f32 %v2397, %v2406
          %v2469 = vadd.f32 %v2398, %v2406
          %v2470 = vadd.f32 %v2399, %v2406
          %v2471 = vadd.f32 %v2400, %v2406
          %2472 = vst [vmem:[%s463] sm:$0xff] %v2408
          %2473 = vst [vmem:[%s463 + $0x8] sm:$0xff] %v2409
          %2474 = vst [vmem:[%s463 + $0x10] sm:$0xff] %v2410
          %2475 = vst [vmem:[%s463 + $0x18] sm:$0xff] %v2411
          %2476 = vst [vmem:[%s463 + $0x20] sm:$0xff] %v2412
          %2477 = vst [vmem:[%s463 + $0x28] sm:$0xff] %v2413
          %2478 = vst [vmem:[%s463 + $0x30] sm:$0xff] %v2414
          %2479 = vst [vmem:[%s463 + $0x38] sm:$0xff] %v2415
          %2480 = vst [vmem:[%s463 + $0x40] sm:$0xff] %v2416
          %2481 = vst [vmem:[%s463 + $0x48] sm:$0xff] %v2417
          %2482 = vst [vmem:[%s463 + $0x50] sm:$0xff] %v2418
          %2483 = vst [vmem:[%s463 + $0x58] sm:$0xff] %v2419
          %2484 = vst [vmem:[%s463 + $0x60] sm:$0xff] %v2420
          %2485 = vst [vmem:[%s463 + $0x68] sm:$0xff] %v2421
          %2486 = vst [vmem:[%s463 + $0x70] sm:$0xff] %v2422
          %2487 = vst [vmem:[%s463 + $0x78] sm:$0xff] %v2423
          %2488 = vst [vmem:[%s463 + $0x80] sm:$0xff] %v2424
          %2489 = vst [vmem:[%s463 + $0x88] sm:$0xff] %v2425
          %2490 = vst [vmem:[%s463 + $0x90] sm:$0xff] %v2426
          %2491 = vst [vmem:[%s463 + $0x98] sm:$0xff] %v2427
          %2492 = vst [vmem:[%s463 + $0xa0] sm:$0xff] %v2428
          %2493 = vst [vmem:[%s463 + $0xa8] sm:$0xff] %v2429
          %2494 = vst [vmem:[%s463 + $0xb0] sm:$0xff] %v2430
          %2495 = vst [vmem:[%s463 + $0xb8] sm:$0xff] %v2431
          %2496 = vst [vmem:[%s463 + $0xc0] sm:$0xff] %v2432
          %2497 = vst [vmem:[%s463 + $0xc8] sm:$0xff] %v2433
          %2498 = vst [vmem:[%s463 + $0xd0] sm:$0xff] %v2434
          %2499 = vst [vmem:[%s463 + $0xd8] sm:$0xff] %v2435
          %2500 = vst [vmem:[%s463 + $0xe0] sm:$0xff] %v2436
          %2501 = vst [vmem:[%s463 + $0xe8] sm:$0xff] %v2437
          %2502 = vst [vmem:[%s463 + $0xf0] sm:$0xff] %v2438
          %2503 = vst [vmem:[%s463 + $0xf8] sm:$0xff] %v2439
          %2504 = vst [vmem:[%s463 + $0x100] sm:$0xff] %v2440
          %2505 = vst [vmem:[%s463 + $0x108] sm:$0xff] %v2441
          %2506 = vst [vmem:[%s463 + $0x110] sm:$0xff] %v2442
          %2507 = vst [vmem:[%s463 + $0x118] sm:$0xff] %v2443
          %2508 = vst [vmem:[%s463 + $0x120] sm:$0xff] %v2444
          %2509 = vst [vmem:[%s463 + $0x128] sm:$0xff] %v2445
          %2510 = vst [vmem:[%s463 + $0x130] sm:$0xff] %v2446
          %2511 = vst [vmem:[%s463 + $0x138] sm:$0xff] %v2447
          %2512 = vst [vmem:[%s463 + $0x140] sm:$0xff] %v2448
          %2513 = vst [vmem:[%s463 + $0x148] sm:$0xff] %v2449
          %2514 = vst [vmem:[%s463 + $0x150] sm:$0xff] %v2450
          %2515 = vst [vmem:[%s463 + $0x158] sm:$0xff] %v2451
          %2516 = vst [vmem:[%s463 + $0x160] sm:$0xff] %v2452
          %2517 = vst [vmem:[%s463 + $0x168] sm:$0xff] %v2453
          %2518 = vst [vmem:[%s463 + $0x170] sm:$0xff] %v2454
          %2519 = vst [vmem:[%s463 + $0x178] sm:$0xff] %v2455
          %2520 = vst [vmem:[%s463 + $0x180] sm:$0xff] %v2456
          %2521 = vst [vmem:[%s463 + $0x188] sm:$0xff] %v2457
          %2522 = vst [vmem:[%s463 + $0x190] sm:$0xff] %v2458
          %2523 = vst [vmem:[%s463 + $0x198] sm:$0xff] %v2459
          %2524 = vst [vmem:[%s463 + $0x1a0] sm:$0xff] %v2460
          %2525 = vst [vmem:[%s463 + $0x1a8] sm:$0xff] %v2461
          %2526 = vst [vmem:[%s463 + $0x1b0] sm:$0xff] %v2462
          %2527 = vst [vmem:[%s463 + $0x1b8] sm:$0xff] %v2463
          %2528 = vst [vmem:[%s463 + $0x1c0] sm:$0xff] %v2464
          %2529 = vst [vmem:[%s463 + $0x1c8] sm:$0xff] %v2465
          %2530 = vst [vmem:[%s463 + $0x1d0] sm:$0xff] %v2466
          %2531 = vst [vmem:[%s463 + $0x1d8] sm:$0xff] %v2467
          %2532 = vst [vmem:[%s463 + $0x1e0] sm:$0xff] %v2468
          %2533 = vst [vmem:[%s463 + $0x1e8] sm:$0xff] %v2469
          %2534 = vst [vmem:[%s463 + $0x1f0] sm:$0xff] %v2470
          %2535 = vst [vmem:[%s463 + $0x1f8] sm:$0xff] %v2471
        $region63: #{gcn_encoder.3} parent=50 // pred_fallthru
          _
        %s2536 = smul.u32 64, %s18
        %p2537 = scmp.lt.s32.totalorder %s2536, 127
        %s2538 = scalar_select %p2537, %s2536, 127
        %s2539 = smul.addr %s2538, 8
        %s2540 = scalar_lea.vmem %s3, %s2539
        // Predicated region
        $region64: #{gcn_encoder.3} parent=50 // pred_check
          %p2541 = pneg %p114
        $region65: #{gcn_encoder.3} parent=50 // pred_check_branch
          %2543 = sbr.rel (%p2541) target = $region67
        $region66: #{gcn_encoder.3} parent=50 // pred_region
          %s2544 = smul.u32 64, %s18
        $region67: #{gcn_encoder.3} parent=50 // pred_fallthru
          _
      $region51: #{gcn_encoder.3} parent=5 // pred_fallthru
        _
      %p2545 = scmp.le.s32.totalorder 2, %s9
      // Predicated region
      $region68: #{gcn_encoder.3} parent=5 // pred_check
        %p2546 = pneg %p2545
      $region69: #{gcn_encoder.3} parent=5 // pred_check_branch
        %2548 = sbr.rel (%p2546) target = $region71
      $region70: #{gcn_encoder.3} parent=5 // pred_region
        %s2549 = ssub.s32 %s9, 2
        // Predicated region
        $region72: #{gcn_encoder.3} parent=70 // pred_check
          %p2550 = pneg %p120
        $region73: #{gcn_encoder.3} parent=70 // pred_check_branch
          %2552 = sbr.rel (%p2550) target = $region75
        $region74: #{gcn_encoder.3} parent=70 // pred_region
          %s2553 = smul.u32 64, %s20
          %p2554 = scmp.lt.s32.totalorder %s2553, 127
          %s2555 = scalar_select %p2554, %s2553, 127
          %s2556 = smul.addr %s2555, 8
          %s2557 = scalar_lea.vmem %s3, %s2556
        $region75: #{gcn_encoder.3} parent=70 // pred_fallthru
          _
      $region71: #{gcn_encoder.3} parent=5 // pred_fallthru
        _
    $region6: #{gcn_encoder.3} parent=1 // loop_footer
      %s13 = sadd.s32 1, %s9
    $region7: #{gcn_encoder.3} parent=1 // loop_footer_branch
      %8 = sbr.rel target = $region3
    $region8: #{gcn_encoder.3} parent=1 // loop_exit
      _

</llo_original>
